<compile_context>
chip_gen: v7x
topology: tpu7x:2x2x1
jax: 0.10.0
libtpu: 0.0.40
codegen_flags: <defaults>
</compile_context>

<pallas_src>
import functools

import jax
import jax.numpy as jnp
from jax import lax
from jax.experimental import pallas as pl
from jax.experimental.pallas import tpu as pltpu


def _swish(v):
    return v * jax.nn.sigmoid(v)


def _round_up(n, m):
    return ((n + m - 1) // m) * m


# ---------------------------------------------------------------------------
# Fused kernel: one (batch image, row tile) per grid step.
#   x_hbm : (B, H+4, W+2, Cin)  zero-padded x, raw HBM ref (manual halo DMA)
#   output: (1, TH, W, Cout) block
# ---------------------------------------------------------------------------
def _fused_resblock_kernel(x_hbm, w1_ref, b1_ref, w2_ref, b2_ref, *rest,
                           H, W, TH, Cin, Cout, has_res_conv, compute_dtype):
    if has_res_conv:
        wr_ref, br_ref, o_ref, xbuf, sem, s1buf = rest
    else:
        o_ref, xbuf, sem, s1buf = rest

    b = pl.program_id(0)
    t = pl.program_id(1)
    nt = pl.num_programs(1)
    slab_rows = TH + 4            # TH output rows + 2-row halo on each side

    def fetch(tile_idx, slot):
        r0 = pl.multiple_of(tile_idx * TH, TH)
        pltpu.make_async_copy(
            x_hbm.at[b, pl.ds(r0, slab_rows)], xbuf.at[slot], sem.at[slot]
        ).start()

    # Prime the double buffer at the start of every image.
    @pl.when(t == 0)
    def _():
        fetch(0, 0)

    slot = lax.rem(t, 2)

    # Wait for the slab belonging to this row tile.
    pltpu.make_async_copy(
        x_hbm.at[b, pl.ds(0, slab_rows)], xbuf.at[slot], sem.at[slot]
    ).wait()

    # Prefetch the next row tile of the same image while computing this one.
    @pl.when(t + 1 < nt)
    def _():
        fetch(t + 1, 1 - slot)

    xraw = xbuf[slot]                                        # (TH+4, W+2, Cin) f32
    xs = _swish(xraw.astype(jnp.float32)).astype(compute_dtype)

    # ---- block1: h1 rows [r0-1, r0+TH+1) (one-row halo for block2) -------
    P1 = (TH + 2) * W
    acc1 = jnp.zeros((P1, Cout), jnp.float32)
    for dx in range(3):                                      # dx outer: 3 shifted copies
        xcol = xs[:, dx:dx + W, :].reshape((TH + 4) * W, Cin)
        for dy in range(3):                                  # dy = free row offset
            acc1 = acc1 + jnp.dot(xcol[dy * W: dy * W + P1, :], w1_ref[dy, dx],
                                  preferred_element_type=jnp.float32)
    h1 = acc1.reshape(TH + 2, W, Cout) + b1_ref[...]

    # Zero halo rows that fall outside the image (zero padding of h1 for block2).
    r0 = t * TH
    grow = lax.broadcasted_iota(jnp.int32, (TH + 2, W, Cout), 0) + (r0 - 1)
    h1 = jnp.where((grow >= 0) & (grow < H), h1, 0.0)

    # swish(h1) into VMEM scratch with zero column border (never written to HBM).
    s1 = _swish(h1).astype(compute_dtype)
    zcol = jnp.zeros((TH + 2, 1, Cout), compute_dtype)
    s1buf[:, 0:1, :] = zcol
    s1buf[:, W + 1:W + 2, :] = zcol
    s1buf[:, 1:W + 1, :] = s1

    # ---- block2 -----------------------------------------------------------
    P2 = TH * W
    s1p = s1buf[...]                                         # (TH+2, W+2, Cout)
    acc2 = jnp.zeros((P2, Cout), jnp.float32)
    for dx in range(3):
        scol = s1p[:, dx:dx + W, :].reshape((TH + 2) * W, Cout)
        for dy in range(3):
            acc2 = acc2 + jnp.dot(scol[dy * W: dy * W + P2, :], w2_ref[dy, dx],
                                  preferred_element_type=jnp.float32)
    h2 = acc2.reshape(TH, W, Cout) + b2_ref[...]

    # ---- residual ----------------------------------------------------------
    xres = xraw[2:2 + TH, 1:1 + W, :]                        # raw x tile (TH, W, Cin)
    if has_res_conv:                                         # 1x1 conv == per-pixel matmul
        res = jnp.dot(xres.astype(compute_dtype).reshape(TH * W, Cin), wr_ref[...],
                      preferred_element_type=jnp.float32).reshape(TH, W, Cout)
        res = res + br_ref[...]
    else:                                                    # nn.Identity (dim == dim_out)
        res = xres.astype(jnp.float32)

    o_ref[0] = (h2 + res).astype(o_ref.dtype)


# ---------------------------------------------------------------------------
# Wrapper (NCHW in / NCHW out, like the PyTorch module)
# ---------------------------------------------------------------------------
def resnet_block_no_emb(x_nchw, params, *, dim, dim_out, tile_h=8,
                        compute_dtype=jnp.bfloat16, lane_align=128):
    B, C, H, W = x_nchw.shape
    assert C == dim
    has_res_conv = dim != dim_out

    # Lane/MXU friendly channel padding (exact: padded weights/activations are 0).
    la = lane_align if lane_align else 1
    Cin_p = _round_up(dim, la)
    Cout_p = _round_up(dim_out, la)
    if not has_res_conv:
        assert Cin_p == Cout_p, "identity residual requires equal (padded) channels"

    # Row tile that divides H.
    TH = min(tile_h, H)
    while H % TH:
        TH -= 1

    x = jnp.transpose(x_nchw, (0, 2, 3, 1)).astype(jnp.float32)        # NHWC
    # 2-row / 1-col zero halo + channel padding (swish(0)=0, so pre-swish pad is ok)
    xpp = jnp.pad(x, ((0, 0), (2, 2), (1, 1), (0, Cin_p - dim)))

    def padw(w, ci, co):
        pads = [(0, 0)] * (w.ndim - 2) + [(0, ci - w.shape[-2]), (0, co - w.shape[-1])]
        return jnp.pad(w.astype(jnp.float32), pads)

    def padb(bv, co):
        return jnp.pad(bv.astype(jnp.float32), ((0, 0), (0, co - bv.shape[-1])))

    w1 = padw(params["w1"], Cin_p, Cout_p).astype(compute_dtype)
    w2 = padw(params["w2"], Cout_p, Cout_p).astype(compute_dtype)
    b1 = padb(params["b1"], Cout_p)
    b2 = padb(params["b2"], Cout_p)

    operands = [xpp, w1, b1, w2, b2]
    in_specs = [
        pl.BlockSpec(memory_space=pl.ANY),                              # manual halo DMA
        pl.BlockSpec((3, 3, Cin_p, Cout_p), lambda b, t: (0, 0, 0, 0)),
        pl.BlockSpec((1, Cout_p), lambda b, t: (0, 0)),
        pl.BlockSpec((3, 3, Cout_p, Cout_p), lambda b, t: (0, 0, 0, 0)),
        pl.BlockSpec((1, Cout_p), lambda b, t: (0, 0)),
    ]
    if has_res_conv:
        wr = padw(params["wr"], Cin_p, Cout_p).astype(compute_dtype)
        br = padb(params["br"], Cout_p)
        operands += [wr, br]
        in_specs += [
            pl.BlockSpec((Cin_p, Cout_p), lambda b, t: (0, 0)),
            pl.BlockSpec((1, Cout_p), lambda b, t: (0, 0)),
        ]

    kernel = functools.partial(
        _fused_resblock_kernel, H=H, W=W, TH=TH, Cin=Cin_p, Cout=Cout_p,
        has_res_conv=has_res_conv, compute_dtype=compute_dtype)

    out = pl.pallas_call(
        kernel,
        out_shape=jax.ShapeDtypeStruct((B, H, W, Cout_p), jnp.float32),
        grid=(B, H // TH),
        in_specs=in_specs,
        out_specs=pl.BlockSpec((1, TH, W, Cout_p), lambda b, t: (b, t, 0, 0)),
        scratch_shapes=[
            pltpu.VMEM((2, TH + 4, W + 2, Cin_p), jnp.float32),   # double-buffered x slab
            pltpu.SemaphoreType.DMA((2,)),
            pltpu.VMEM((TH + 2, W + 2, Cout_p), compute_dtype),   # swish(h1) with zero border
        ],
        compiler_params=pltpu.CompilerParams(
            dimension_semantics=("parallel", "arbitrary"),
            vmem_limit_bytes=64 * 1024 * 1024),
    )(*operands)

    out = out[..., :dim_out]                                          # drop channel padding
    return jnp.transpose(out, (0, 3, 1, 2))                           # NCHW


# ---------------------------------------------------------------------------
# Pure-JAX reference (for correctness check)
# ---------------------------------------------------------------------------
def reference(x_nchw, params, *, dim, dim_out):
    x = jnp.transpose(x_nchw, (0, 2, 3, 1)).astype(jnp.float32)

    def conv3(v, w, b):
        y = lax.conv_general_dilated(
            v, w, (1, 1), "SAME",
            dimension_numbers=("NHWC", "HWIO", "NHWC"),
            precision=lax.Precision.HIGHEST)
        return y + b.reshape(1, 1, 1, -1)

    h = conv3(_swish(x), params["w1"], params["b1"])
    h = conv3(_swish(h), params["w2"], params["b2"])
    if dim != dim_out:
        res = jnp.einsum("bhwc,co->bhwo", x, params["wr"],
                         precision=lax.Precision.HIGHEST) + params["br"].reshape(1, 1, 1, -1)
    else:
        res = x
    return jnp.transpose(h + res, (0, 3, 1, 2))


if __name__ == "__main__":
    def uinit(k, shape, fan_in):
        bound = 1.0 / (fan_in ** 0.5)                 # PyTorch Conv2d default init range
        return jax.random.uniform(k, shape, jnp.float32, -bound, bound)

    def make_params(key, dim, dim_out):
        ks = jax.random.split(key, 6)
        return {
            "w1": uinit(ks[0], (3, 3, dim, dim_out), dim * 9),        # HWIO
            "b1": uinit(ks[1], (1, dim_out), dim * 9),
            "w2": uinit(ks[2], (3, 3, dim_out, dim_out), dim_out * 9),
            "b2": uinit(ks[3], (1, dim_out), dim_out * 9),
            "wr": uinit(ks[4], (dim, dim_out), dim),                  # 1x1 conv as (Cin, Cout)
            "br": uinit(ks[5], (1, dim_out), dim),
        }

    key = jax.random.PRNGKey(0)
    k1, k2, k3, k4 = jax.random.split(key, 4)

    # --- case 1: dim != dim_out (1x1 res conv), f32 MXU inputs, tight tol ---
    B, dim, dim_out, H, W = 2, 4, 8, 16, 16
    params = make_params(k1, dim, dim_out)
    x = jax.random.normal(k2, (B, dim, H, W), jnp.float32)            # NCHW, like PyTorch
    out = resnet_block_no_emb(x, params, dim=dim, dim_out=dim_out,
                              compute_dtype=jnp.float32)
    out = jax.block_until_ready(out)
    ref = reference(x, params, dim=dim, dim_out=dim_out)
    assert out.shape == (B, dim_out, H, W)
    err = float(jnp.max(jnp.abs(out - ref)))
    assert jnp.allclose(out, ref, atol=1e-4, rtol=1e-4), f"f32 max abs err {err}"

    # --- case 2: dim == dim_out (identity residual), bf16 MXU inputs --------
    dim2 = dim_out2 = 8
    params2 = make_params(k3, dim2, dim_out2)
    x2 = jax.random.normal(k4, (B, dim2, H, W), jnp.float32)
    out2 = resnet_block_no_emb(x2, params2, dim=dim2, dim_out=dim_out2,
                               compute_dtype=jnp.bfloat16)
    out2 = jax.block_until_ready(out2)
    ref2 = reference(x2, params2, dim=dim2, dim_out=dim_out2)
    assert out2.shape == (B, dim_out2, H, W)
    err2 = float(jnp.max(jnp.abs(out2 - ref2)))
    assert jnp.allclose(out2, ref2, atol=5e-2, rtol=5e-2), f"bf16 max abs err {err2}"

    print("KERNEL_OK")
</pallas_src>

<mosaic_0001>
module attributes {stable_mosaic.version = 11 : i64} {
  func.func @_fused_resblock_kernel(%arg0: i32, %arg1: i32, %arg2: memref<2x20x18x128xf32, #tpu.memory_space<any>>, %arg3: memref<3x3x128x128xf32, #tpu.memory_space<vmem>>, %arg4: memref<1x128xf32, #tpu.memory_space<vmem>>, %arg5: memref<3x3x128x128xf32, #tpu.memory_space<vmem>>, %arg6: memref<1x128xf32, #tpu.memory_space<vmem>>, %arg7: memref<128x128xf32, #tpu.memory_space<vmem>>, %arg8: memref<1x128xf32, #tpu.memory_space<vmem>>, %arg9: memref<1x8x16x128xf32, #tpu.memory_space<vmem>>, %arg10: memref<2x12x18x128xf32, #tpu.memory_space<vmem>>, %arg11: memref<2x!tpu.dma_semaphore, #tpu.memory_space<semaphore_mem>>, %arg12: memref<10x18x128xf32, #tpu.memory_space<vmem>>) attributes {dimension_semantics = [#tpu.dimension_semantics<parallel>, #tpu.dimension_semantics<arbitrary>], iteration_bounds = array<i64: 2, 2>, scalar_prefetch = 0 : i64, scratch_operands = 3 : i64, tpu.core_type = #tpu.core_type<tc>, window_params = [{}, {pipeline_mode = #tpu.pipeline_mode<synchronous>, transform_indices = @transform_1, window_bounds = array<i64: 3, 3, 128, 128>}, {pipeline_mode = #tpu.pipeline_mode<synchronous>, transform_indices = @transform_2, window_bounds = array<i64: 1, 128>}, {pipeline_mode = #tpu.pipeline_mode<synchronous>, transform_indices = @transform_3, window_bounds = array<i64: 3, 3, 128, 128>}, {pipeline_mode = #tpu.pipeline_mode<synchronous>, transform_indices = @transform_4, window_bounds = array<i64: 1, 128>}, {pipeline_mode = #tpu.pipeline_mode<synchronous>, transform_indices = @transform_5, window_bounds = array<i64: 128, 128>}, {pipeline_mode = #tpu.pipeline_mode<synchronous>, transform_indices = @transform_6, window_bounds = array<i64: 1, 128>}, {transform_indices = @transform_7, window_bounds = array<i64: 1, 8, 16, 128>}]} {
    %c0_i32 = arith.constant 0 : i32
    %0 = arith.cmpi eq, %arg1, %c0_i32 : i32
    %1 = arith.extui %0 : i1 to i32
    %c0_i32_0 = arith.constant 0 : i32
    %2 = arith.cmpi ne, %1, %c0_i32_0 : i32
    scf.if %2 {
      %c0_i32_130 = arith.constant 0 : i32
      %173 = tpu.assume_multiple %c0_i32_130, 8 : i32
      %c0_i32_131 = arith.constant 0 : i32
      %c0_i32_132 = arith.constant 0 : i32
      %c0_i32_133 = arith.constant 0 : i32
      %c0_i32_134 = arith.constant 0 : i32
      %174 = tpu.memref_slice %arg2[%arg0, %173, %c0_i32_133, %c0_i32_134] : memref<2x20x18x128xf32, #tpu.memory_space<any>> -> memref<1x12x18x128xf32, #tpu.memory_space<any>>
      %175 = tpu.memref_squeeze %174 : memref<1x12x18x128xf32, #tpu.memory_space<any>> -> memref<12x18x128xf32, #tpu.memory_space<any>>
      %c0_i32_135 = arith.constant 0 : i32
      %c0_i32_136 = arith.constant 0 : i32
      %c0_i32_137 = arith.constant 0 : i32
      %176 = tpu.memref_slice %arg10[%c0_i32_131, %c0_i32_135, %c0_i32_136, %c0_i32_137] : memref<2x12x18x128xf32, #tpu.memory_space<vmem>> -> memref<1x12x18x128xf32, #tpu.memory_space<vmem>>
      %177 = tpu.memref_squeeze %176 : memref<1x12x18x128xf32, #tpu.memory_space<vmem>> -> memref<12x18x128xf32, #tpu.memory_space<vmem>>
      %178 = tpu.memref_slice %arg11[%c0_i32_132] : memref<2x!tpu.dma_semaphore, #tpu.memory_space<semaphore_mem>> -> memref<1x!tpu.dma_semaphore, #tpu.memory_space<semaphore_mem>>
      %179 = tpu.memref_squeeze %178 : memref<1x!tpu.dma_semaphore, #tpu.memory_space<semaphore_mem>> -> memref<!tpu.dma_semaphore, #tpu.memory_space<semaphore_mem>>
      tpu.enqueue_dma source(%175 : memref<12x18x128xf32, #tpu.memory_space<any>>) target(%177 : memref<12x18x128xf32, #tpu.memory_space<vmem>>) target_semaphore(%179 : memref<!tpu.dma_semaphore, #tpu.memory_space<semaphore_mem>>)
    } else {
    }
    %c2_i32 = arith.constant 2 : i32
    %3 = arith.remsi %arg1, %c2_i32 : i32
    %c0_i32_1 = arith.constant 0 : i32
    %c0_i32_2 = arith.constant 0 : i32
    %c0_i32_3 = arith.constant 0 : i32
    %4 = tpu.memref_slice %arg2[%arg0, %c0_i32_1, %c0_i32_2, %c0_i32_3] : memref<2x20x18x128xf32, #tpu.memory_space<any>> -> memref<1x12x18x128xf32, #tpu.memory_space<any>>
    %5 = tpu.memref_squeeze %4 : memref<1x12x18x128xf32, #tpu.memory_space<any>> -> memref<12x18x128xf32, #tpu.memory_space<any>>
    %c0_i32_4 = arith.constant 0 : i32
    %c0_i32_5 = arith.constant 0 : i32
    %c0_i32_6 = arith.constant 0 : i32
    %6 = tpu.memref_slice %arg10[%3, %c0_i32_4, %c0_i32_5, %c0_i32_6] : memref<2x12x18x128xf32, #tpu.memory_space<vmem>> -> memref<1x12x18x128xf32, #tpu.memory_space<vmem>>
    %7 = tpu.memref_squeeze %6 : memref<1x12x18x128xf32, #tpu.memory_space<vmem>> -> memref<12x18x128xf32, #tpu.memory_space<vmem>>
    %8 = tpu.memref_slice %arg11[%3] : memref<2x!tpu.dma_semaphore, #tpu.memory_space<semaphore_mem>> -> memref<1x!tpu.dma_semaphore, #tpu.memory_space<semaphore_mem>>
    %9 = tpu.memref_squeeze %8 : memref<1x!tpu.dma_semaphore, #tpu.memory_space<semaphore_mem>> -> memref<!tpu.dma_semaphore, #tpu.memory_space<semaphore_mem>>
    tpu.wait_dma2 semaphore(%9 : memref<!tpu.dma_semaphore, #tpu.memory_space<semaphore_mem>>) src(%5 : memref<12x18x128xf32, #tpu.memory_space<any>>) dst(%7 : memref<12x18x128xf32, #tpu.memory_space<vmem>>)
    %c1_i32 = arith.constant 1 : i32
    %10 = arith.addi %arg1, %c1_i32 : i32
    %c2_i32_7 = arith.constant 2 : i32
    %11 = arith.cmpi slt, %10, %c2_i32_7 : i32
    %12 = arith.extui %11 : i1 to i32
    %c0_i32_8 = arith.constant 0 : i32
    %13 = arith.cmpi ne, %12, %c0_i32_8 : i32
    scf.if %13 {
      %c1_i32_130 = arith.constant 1 : i32
      %173 = arith.addi %arg1, %c1_i32_130 : i32
      %c1_i32_131 = arith.constant 1 : i32
      %174 = arith.subi %c1_i32_131, %3 : i32
      %c8_i32_132 = arith.constant 8 : i32
      %175 = arith.muli %173, %c8_i32_132 : i32
      %176 = tpu.assume_multiple %175, 8 : i32
      %c0_i32_133 = arith.constant 0 : i32
      %c0_i32_134 = arith.constant 0 : i32
      %177 = tpu.memref_slice %arg2[%arg0, %176, %c0_i32_133, %c0_i32_134] : memref<2x20x18x128xf32, #tpu.memory_space<any>> -> memref<1x12x18x128xf32, #tpu.memory_space<any>>
      %178 = tpu.memref_squeeze %177 : memref<1x12x18x128xf32, #tpu.memory_space<any>> -> memref<12x18x128xf32, #tpu.memory_space<any>>
      %c0_i32_135 = arith.constant 0 : i32
      %c0_i32_136 = arith.constant 0 : i32
      %c0_i32_137 = arith.constant 0 : i32
      %179 = tpu.memref_slice %arg10[%174, %c0_i32_135, %c0_i32_136, %c0_i32_137] : memref<2x12x18x128xf32, #tpu.memory_space<vmem>> -> memref<1x12x18x128xf32, #tpu.memory_space<vmem>>
      %180 = tpu.memref_squeeze %179 : memref<1x12x18x128xf32, #tpu.memory_space<vmem>> -> memref<12x18x128xf32, #tpu.memory_space<vmem>>
      %181 = tpu.memref_slice %arg11[%174] : memref<2x!tpu.dma_semaphore, #tpu.memory_space<semaphore_mem>> -> memref<1x!tpu.dma_semaphore, #tpu.memory_space<semaphore_mem>>
      %182 = tpu.memref_squeeze %181 : memref<1x!tpu.dma_semaphore, #tpu.memory_space<semaphore_mem>> -> memref<!tpu.dma_semaphore, #tpu.memory_space<semaphore_mem>>
      tpu.enqueue_dma source(%178 : memref<12x18x128xf32, #tpu.memory_space<any>>) target(%180 : memref<12x18x128xf32, #tpu.memory_space<vmem>>) target_semaphore(%182 : memref<!tpu.dma_semaphore, #tpu.memory_space<semaphore_mem>>)
    } else {
    }
    %14 = arith.index_cast %3 : i32 to index
    %c0 = arith.constant 0 : index
    %c0_9 = arith.constant 0 : index
    %c0_10 = arith.constant 0 : index
    %15 = vector.load %arg10[%14, %c0, %c0_9, %c0_10] : memref<2x12x18x128xf32, #tpu.memory_space<vmem>>, vector<1x12x18x128xf32>
    %16 = vector.shape_cast %15 : vector<1x12x18x128xf32> to vector<12x18x128xf32>
    %17 = arith.negf %16 : vector<12x18x128xf32>
    %18 = math.exp %17 : vector<12x18x128xf32>
    %cst = arith.constant 1.000000e+00 : f32
    %19 = vector.broadcast %cst : f32 to vector<12x18x128xf32>
    %20 = arith.addf %19, %18 : vector<12x18x128xf32>
    %21 = arith.divf %19, %20 : vector<12x18x128xf32>
    %22 = arith.mulf %16, %21 : vector<12x18x128xf32>
    %cst_11 = arith.constant 0.000000e+00 : f32
    %23 = vector.broadcast %cst_11 : f32 to vector<160x128xf32>
    %24 = vector.extract_strided_slice %22 {offsets = [0, 0, 0], sizes = [12, 16, 128], strides = [1, 1, 1]} : vector<12x18x128xf32> to vector<12x16x128xf32>
    %25 = vector.shape_cast %24 : vector<12x16x128xf32> to vector<192x128xf32>
    %26 = vector.extract_strided_slice %25 {offsets = [0, 0], sizes = [160, 128], strides = [1, 1]} : vector<192x128xf32> to vector<160x128xf32>
    %c0_12 = arith.constant 0 : index
    %c0_13 = arith.constant 0 : index
    %c0_14 = arith.constant 0 : index
    %c0_15 = arith.constant 0 : index
    %27 = vector.load %arg3[%c0_12, %c0_13, %c0_14, %c0_15] : memref<3x3x128x128xf32, #tpu.memory_space<vmem>>, vector<1x1x128x128xf32>
    %28 = vector.shape_cast %27 : vector<1x1x128x128xf32> to vector<128x128xf32>
    %cst_16 = arith.constant dense<0.000000e+00> : vector<160x128xf32>
    %29 = tpu.matmul %26, %28, %cst_16 {dimension_numbers = #tpu.dot_dimension_numbers<[1], [0], [0], [1], [0, 0, 1, 1], [], []>} : vector<160x128xf32>, vector<128x128xf32>, vector<160x128xf32> -> vector<160x128xf32>
    %30 = arith.addf %23, %29 : vector<160x128xf32>
    %31 = vector.extract_strided_slice %25 {offsets = [16, 0], sizes = [160, 128], strides = [1, 1]} : vector<192x128xf32> to vector<160x128xf32>
    %c1 = arith.constant 1 : index
    %c0_17 = arith.constant 0 : index
    %c0_18 = arith.constant 0 : index
    %c0_19 = arith.constant 0 : index
    %32 = vector.load %arg3[%c1, %c0_17, %c0_18, %c0_19] : memref<3x3x128x128xf32, #tpu.memory_space<vmem>>, vector<1x1x128x128xf32>
    %33 = vector.shape_cast %32 : vector<1x1x128x128xf32> to vector<128x128xf32>
    %cst_20 = arith.constant dense<0.000000e+00> : vector<160x128xf32>
    %34 = tpu.matmul %31, %33, %cst_20 {dimension_numbers = #tpu.dot_dimension_numbers<[1], [0], [0], [1], [0, 0, 1, 1], [], []>} : vector<160x128xf32>, vector<128x128xf32>, vector<160x128xf32> -> vector<160x128xf32>
    %35 = arith.addf %30, %34 : vector<160x128xf32>
    %36 = vector.extract_strided_slice %25 {offsets = [32, 0], sizes = [160, 128], strides = [1, 1]} : vector<192x128xf32> to vector<160x128xf32>
    %c2 = arith.constant 2 : index
    %c0_21 = arith.constant 0 : index
    %c0_22 = arith.constant 0 : index
    %c0_23 = arith.constant 0 : index
    %37 = vector.load %arg3[%c2, %c0_21, %c0_22, %c0_23] : memref<3x3x128x128xf32, #tpu.memory_space<vmem>>, vector<1x1x128x128xf32>
    %38 = vector.shape_cast %37 : vector<1x1x128x128xf32> to vector<128x128xf32>
    %cst_24 = arith.constant dense<0.000000e+00> : vector<160x128xf32>
    %39 = tpu.matmul %36, %38, %cst_24 {dimension_numbers = #tpu.dot_dimension_numbers<[1], [0], [0], [1], [0, 0, 1, 1], [], []>} : vector<160x128xf32>, vector<128x128xf32>, vector<160x128xf32> -> vector<160x128xf32>
    %40 = arith.addf %35, %39 : vector<160x128xf32>
    %41 = vector.extract_strided_slice %22 {offsets = [0, 1, 0], sizes = [12, 16, 128], strides = [1, 1, 1]} : vector<12x18x128xf32> to vector<12x16x128xf32>
    %42 = vector.shape_cast %41 : vector<12x16x128xf32> to vector<192x128xf32>
    %43 = vector.extract_strided_slice %42 {offsets = [0, 0], sizes = [160, 128], strides = [1, 1]} : vector<192x128xf32> to vector<160x128xf32>
    %c0_25 = arith.constant 0 : index
    %c1_26 = arith.constant 1 : index
    %c0_27 = arith.constant 0 : index
    %c0_28 = arith.constant 0 : index
    %44 = vector.load %arg3[%c0_25, %c1_26, %c0_27, %c0_28] : memref<3x3x128x128xf32, #tpu.memory_space<vmem>>, vector<1x1x128x128xf32>
    %45 = vector.shape_cast %44 : vector<1x1x128x128xf32> to vector<128x128xf32>
    %cst_29 = arith.constant dense<0.000000e+00> : vector<160x128xf32>
    %46 = tpu.matmul %43, %45, %cst_29 {dimension_numbers = #tpu.dot_dimension_numbers<[1], [0], [0], [1], [0, 0, 1, 1], [], []>} : vector<160x128xf32>, vector<128x128xf32>, vector<160x128xf32> -> vector<160x128xf32>
    %47 = arith.addf %40, %46 : vector<160x128xf32>
    %48 = vector.extract_strided_slice %42 {offsets = [16, 0], sizes = [160, 128], strides = [1, 1]} : vector<192x128xf32> to vector<160x128xf32>
    %c1_30 = arith.constant 1 : index
    %c1_31 = arith.constant 1 : index
    %c0_32 = arith.constant 0 : index
    %c0_33 = arith.constant 0 : index
    %49 = vector.load %arg3[%c1_30, %c1_31, %c0_32, %c0_33] : memref<3x3x128x128xf32, #tpu.memory_space<vmem>>, vector<1x1x128x128xf32>
    %50 = vector.shape_cast %49 : vector<1x1x128x128xf32> to vector<128x128xf32>
    %cst_34 = arith.constant dense<0.000000e+00> : vector<160x128xf32>
    %51 = tpu.matmul %48, %50, %cst_34 {dimension_numbers = #tpu.dot_dimension_numbers<[1], [0], [0], [1], [0, 0, 1, 1], [], []>} : vector<160x128xf32>, vector<128x128xf32>, vector<160x128xf32> -> vector<160x128xf32>
    %52 = arith.addf %47, %51 : vector<160x128xf32>
    %53 = vector.extract_strided_slice %42 {offsets = [32, 0], sizes = [160, 128], strides = [1, 1]} : vector<192x128xf32> to vector<160x128xf32>
    %c2_35 = arith.constant 2 : index
    %c1_36 = arith.constant 1 : index
    %c0_37 = arith.constant 0 : index
    %c0_38 = arith.constant 0 : index
    %54 = vector.load %arg3[%c2_35, %c1_36, %c0_37, %c0_38] : memref<3x3x128x128xf32, #tpu.memory_space<vmem>>, vector<1x1x128x128xf32>
    %55 = vector.shape_cast %54 : vector<1x1x128x128xf32> to vector<128x128xf32>
    %cst_39 = arith.constant dense<0.000000e+00> : vector<160x128xf32>
    %56 = tpu.matmul %53, %55, %cst_39 {dimension_numbers = #tpu.dot_dimension_numbers<[1], [0], [0], [1], [0, 0, 1, 1], [], []>} : vector<160x128xf32>, vector<128x128xf32>, vector<160x128xf32> -> vector<160x128xf32>
    %57 = arith.addf %52, %56 : vector<160x128xf32>
    %58 = vector.extract_strided_slice %22 {offsets = [0, 2, 0], sizes = [12, 16, 128], strides = [1, 1, 1]} : vector<12x18x128xf32> to vector<12x16x128xf32>
    %59 = vector.shape_cast %58 : vector<12x16x128xf32> to vector<192x128xf32>
    %60 = vector.extract_strided_slice %59 {offsets = [0, 0], sizes = [160, 128], strides = [1, 1]} : vector<192x128xf32> to vector<160x128xf32>
    %c0_40 = arith.constant 0 : index
    %c2_41 = arith.constant 2 : index
    %c0_42 = arith.constant 0 : index
    %c0_43 = arith.constant 0 : index
    %61 = vector.load %arg3[%c0_40, %c2_41, %c0_42, %c0_43] : memref<3x3x128x128xf32, #tpu.memory_space<vmem>>, vector<1x1x128x128xf32>
    %62 = vector.shape_cast %61 : vector<1x1x128x128xf32> to vector<128x128xf32>
    %cst_44 = arith.constant dense<0.000000e+00> : vector<160x128xf32>
    %63 = tpu.matmul %60, %62, %cst_44 {dimension_numbers = #tpu.dot_dimension_numbers<[1], [0], [0], [1], [0, 0, 1, 1], [], []>} : vector<160x128xf32>, vector<128x128xf32>, vector<160x128xf32> -> vector<160x128xf32>
    %64 = arith.addf %57, %63 : vector<160x128xf32>
    %65 = vector.extract_strided_slice %59 {offsets = [16, 0], sizes = [160, 128], strides = [1, 1]} : vector<192x128xf32> to vector<160x128xf32>
    %c1_45 = arith.constant 1 : index
    %c2_46 = arith.constant 2 : index
    %c0_47 = arith.constant 0 : index
    %c0_48 = arith.constant 0 : index
    %66 = vector.load %arg3[%c1_45, %c2_46, %c0_47, %c0_48] : memref<3x3x128x128xf32, #tpu.memory_space<vmem>>, vector<1x1x128x128xf32>
    %67 = vector.shape_cast %66 : vector<1x1x128x128xf32> to vector<128x128xf32>
    %cst_49 = arith.constant dense<0.000000e+00> : vector<160x128xf32>
    %68 = tpu.matmul %65, %67, %cst_49 {dimension_numbers = #tpu.dot_dimension_numbers<[1], [0], [0], [1], [0, 0, 1, 1], [], []>} : vector<160x128xf32>, vector<128x128xf32>, vector<160x128xf32> -> vector<160x128xf32>
    %69 = arith.addf %64, %68 : vector<160x128xf32>
    %70 = vector.extract_strided_slice %59 {offsets = [32, 0], sizes = [160, 128], strides = [1, 1]} : vector<192x128xf32> to vector<160x128xf32>
    %c2_50 = arith.constant 2 : index
    %c2_51 = arith.constant 2 : index
    %c0_52 = arith.constant 0 : index
    %c0_53 = arith.constant 0 : index
    %71 = vector.load %arg3[%c2_50, %c2_51, %c0_52, %c0_53] : memref<3x3x128x128xf32, #tpu.memory_space<vmem>>, vector<1x1x128x128xf32>
    %72 = vector.shape_cast %71 : vector<1x1x128x128xf32> to vector<128x128xf32>
    %cst_54 = arith.constant dense<0.000000e+00> : vector<160x128xf32>
    %73 = tpu.matmul %70, %72, %cst_54 {dimension_numbers = #tpu.dot_dimension_numbers<[1], [0], [0], [1], [0, 0, 1, 1], [], []>} : vector<160x128xf32>, vector<128x128xf32>, vector<160x128xf32> -> vector<160x128xf32>
    %74 = arith.addf %69, %73 : vector<160x128xf32>
    %75 = vector.shape_cast %74 : vector<160x128xf32> to vector<10x16x128xf32>
    %c0_55 = arith.constant 0 : index
    %c0_56 = arith.constant 0 : index
    %76 = vector.load %arg4[%c0_55, %c0_56] : memref<1x128xf32, #tpu.memory_space<vmem>>, vector<1x128xf32>
    %77 = vector.shape_cast %76 : vector<1x128xf32> to vector<1x1x128xf32>
    %78 = vector.broadcast %77 : vector<1x1x128xf32> to vector<10x16x128xf32>
    %79 = arith.addf %75, %78 : vector<10x16x128xf32>
    %c8_i32 = arith.constant 8 : i32
    %80 = arith.muli %arg1, %c8_i32 : i32
    %81 = tpu.iota {dimensions = array<i32: 0>} : vector<10x16x128xi32>
    %c1_i32_57 = arith.constant 1 : i32
    %82 = arith.subi %80, %c1_i32_57 : i32
    %83 = vector.broadcast %82 : i32 to vector<10x16x128xi32>
    %84 = arith.addi %81, %83 : vector<10x16x128xi32>
    %c0_i32_58 = arith.constant 0 : i32
    %85 = vector.broadcast %c0_i32_58 : i32 to vector<10x16x128xi32>
    %86 = arith.cmpi sge, %84, %85 : vector<10x16x128xi32>
    %c16_i32 = arith.constant 16 : i32
    %87 = vector.broadcast %c16_i32 : i32 to vector<10x16x128xi32>
    %88 = arith.cmpi slt, %84, %87 : vector<10x16x128xi32>
    %89 = arith.andi %86, %88 : vector<10x16x128xi1>
    %cst_59 = arith.constant 0.000000e+00 : f32
    %90 = vector.broadcast %cst_59 : f32 to vector<10x16x128xf32>
    %91 = arith.select %89, %79, %90 : vector<10x16x128xi1>, vector<10x16x128xf32>
    %92 = arith.negf %91 : vector<10x16x128xf32>
    %93 = math.exp %92 : vector<10x16x128xf32>
    %cst_60 = arith.constant 1.000000e+00 : f32
    %94 = vector.broadcast %cst_60 : f32 to vector<10x16x128xf32>
    %95 = arith.addf %94, %93 : vector<10x16x128xf32>
    %96 = arith.divf %94, %95 : vector<10x16x128xf32>
    %97 = arith.mulf %91, %96 : vector<10x16x128xf32>
    %cst_61 = arith.constant 0.000000e+00 : f32
    %98 = vector.broadcast %cst_61 : f32 to vector<10x1x128xf32>
    %c0_62 = arith.constant 0 : index
    %c0_63 = arith.constant 0 : index
    %c0_64 = arith.constant 0 : index
    %99 = vector.load %arg12[%c0_62, %c0_63, %c0_64] : memref<10x18x128xf32, #tpu.memory_space<vmem>>, vector<10x1x128xf32>
    tpu.vector_store %arg12[%c0_62, %c0_63, %c0_64], %98 {strides = array<i32>} : memref<10x18x128xf32, #tpu.memory_space<vmem>>, vector<10x1x128xf32>,
    %c0_65 = arith.constant 0 : index
    %c17 = arith.constant 17 : index
    %c0_66 = arith.constant 0 : index
    %100 = vector.load %arg12[%c0_65, %c17, %c0_66] : memref<10x18x128xf32, #tpu.memory_space<vmem>>, vector<10x1x128xf32>
    tpu.vector_store %arg12[%c0_65, %c17, %c0_66], %98 {strides = array<i32>} : memref<10x18x128xf32, #tpu.memory_space<vmem>>, vector<10x1x128xf32>,
    %c0_67 = arith.constant 0 : index
    %c1_68 = arith.constant 1 : index
    %c0_69 = arith.constant 0 : index
    %101 = vector.load %arg12[%c0_67, %c1_68, %c0_69] : memref<10x18x128xf32, #tpu.memory_space<vmem>>, vector<10x16x128xf32>
    tpu.vector_store %arg12[%c0_67, %c1_68, %c0_69], %97 {strides = array<i32>} : memref<10x18x128xf32, #tpu.memory_space<vmem>>, vector<10x16x128xf32>,
    %c0_70 = arith.constant 0 : index
    %c0_71 = arith.constant 0 : index
    %c0_72 = arith.constant 0 : index
    %102 = vector.load %arg12[%c0_70, %c0_71, %c0_72] : memref<10x18x128xf32, #tpu.memory_space<vmem>>, vector<10x18x128xf32>
    %cst_73 = arith.constant 0.000000e+00 : f32
    %103 = vector.broadcast %cst_73 : f32 to vector<128x128xf32>
    %104 = vector.extract_strided_slice %102 {offsets = [0, 0, 0], sizes = [10, 16, 128], strides = [1, 1, 1]} : vector<10x18x128xf32> to vector<10x16x128xf32>
    %105 = vector.shape_cast %104 : vector<10x16x128xf32> to vector<160x128xf32>
    %106 = vector.extract_strided_slice %105 {offsets = [0, 0], sizes = [128, 128], strides = [1, 1]} : vector<160x128xf32> to vector<128x128xf32>
    %c0_74 = arith.constant 0 : index
    %c0_75 = arith.constant 0 : index
    %c0_76 = arith.constant 0 : index
    %c0_77 = arith.constant 0 : index
    %107 = vector.load %arg5[%c0_74, %c0_75, %c0_76, %c0_77] : memref<3x3x128x128xf32, #tpu.memory_space<vmem>>, vector<1x1x128x128xf32>
    %108 = vector.shape_cast %107 : vector<1x1x128x128xf32> to vector<128x128xf32>
    %cst_78 = arith.constant dense<0.000000e+00> : vector<128x128xf32>
    %109 = tpu.matmul %106, %108, %cst_78 {dimension_numbers = #tpu.dot_dimension_numbers<[1], [0], [0], [1], [0, 0, 1, 1], [], []>} : vector<128x128xf32>, vector<128x128xf32>, vector<128x128xf32> -> vector<128x128xf32>
    %110 = arith.addf %103, %109 : vector<128x128xf32>
    %111 = vector.extract_strided_slice %105 {offsets = [16, 0], sizes = [128, 128], strides = [1, 1]} : vector<160x128xf32> to vector<128x128xf32>
    %c1_79 = arith.constant 1 : index
    %c0_80 = arith.constant 0 : index
    %c0_81 = arith.constant 0 : index
    %c0_82 = arith.constant 0 : index
    %112 = vector.load %arg5[%c1_79, %c0_80, %c0_81, %c0_82] : memref<3x3x128x128xf32, #tpu.memory_space<vmem>>, vector<1x1x128x128xf32>
    %113 = vector.shape_cast %112 : vector<1x1x128x128xf32> to vector<128x128xf32>
    %cst_83 = arith.constant dense<0.000000e+00> : vector<128x128xf32>
    %114 = tpu.matmul %111, %113, %cst_83 {dimension_numbers = #tpu.dot_dimension_numbers<[1], [0], [0], [1], [0, 0, 1, 1], [], []>} : vector<128x128xf32>, vector<128x128xf32>, vector<128x128xf32> -> vector<128x128xf32>
    %115 = arith.addf %110, %114 : vector<128x128xf32>
    %116 = vector.extract_strided_slice %105 {offsets = [32, 0], sizes = [128, 128], strides = [1, 1]} : vector<160x128xf32> to vector<128x128xf32>
    %c2_84 = arith.constant 2 : index
    %c0_85 = arith.constant 0 : index
    %c0_86 = arith.constant 0 : index
    %c0_87 = arith.constant 0 : index
    %117 = vector.load %arg5[%c2_84, %c0_85, %c0_86, %c0_87] : memref<3x3x128x128xf32, #tpu.memory_space<vmem>>, vector<1x1x128x128xf32>
    %118 = vector.shape_cast %117 : vector<1x1x128x128xf32> to vector<128x128xf32>
    %cst_88 = arith.constant dense<0.000000e+00> : vector<128x128xf32>
    %119 = tpu.matmul %116, %118, %cst_88 {dimension_numbers = #tpu.dot_dimension_numbers<[1], [0], [0], [1], [0, 0, 1, 1], [], []>} : vector<128x128xf32>, vector<128x128xf32>, vector<128x128xf32> -> vector<128x128xf32>
    %120 = arith.addf %115, %119 : vector<128x128xf32>
    %121 = vector.extract_strided_slice %102 {offsets = [0, 1, 0], sizes = [10, 16, 128], strides = [1, 1, 1]} : vector<10x18x128xf32> to vector<10x16x128xf32>
    %122 = vector.shape_cast %121 : vector<10x16x128xf32> to vector<160x128xf32>
    %123 = vector.extract_strided_slice %122 {offsets = [0, 0], sizes = [128, 128], strides = [1, 1]} : vector<160x128xf32> to vector<128x128xf32>
    %c0_89 = arith.constant 0 : index
    %c1_90 = arith.constant 1 : index
    %c0_91 = arith.constant 0 : index
    %c0_92 = arith.constant 0 : index
    %124 = vector.load %arg5[%c0_89, %c1_90, %c0_91, %c0_92] : memref<3x3x128x128xf32, #tpu.memory_space<vmem>>, vector<1x1x128x128xf32>
    %125 = vector.shape_cast %124 : vector<1x1x128x128xf32> to vector<128x128xf32>
    %cst_93 = arith.constant dense<0.000000e+00> : vector<128x128xf32>
    %126 = tpu.matmul %123, %125, %cst_93 {dimension_numbers = #tpu.dot_dimension_numbers<[1], [0], [0], [1], [0, 0, 1, 1], [], []>} : vector<128x128xf32>, vector<128x128xf32>, vector<128x128xf32> -> vector<128x128xf32>
    %127 = arith.addf %120, %126 : vector<128x128xf32>
    %128 = vector.extract_strided_slice %122 {offsets = [16, 0], sizes = [128, 128], strides = [1, 1]} : vector<160x128xf32> to vector<128x128xf32>
    %c1_94 = arith.constant 1 : index
    %c1_95 = arith.constant 1 : index
    %c0_96 = arith.constant 0 : index
    %c0_97 = arith.constant 0 : index
    %129 = vector.load %arg5[%c1_94, %c1_95, %c0_96, %c0_97] : memref<3x3x128x128xf32, #tpu.memory_space<vmem>>, vector<1x1x128x128xf32>
    %130 = vector.shape_cast %129 : vector<1x1x128x128xf32> to vector<128x128xf32>
    %cst_98 = arith.constant dense<0.000000e+00> : vector<128x128xf32>
    %131 = tpu.matmul %128, %130, %cst_98 {dimension_numbers = #tpu.dot_dimension_numbers<[1], [0], [0], [1], [0, 0, 1, 1], [], []>} : vector<128x128xf32>, vector<128x128xf32>, vector<128x128xf32> -> vector<128x128xf32>
    %132 = arith.addf %127, %131 : vector<128x128xf32>
    %133 = vector.extract_strided_slice %122 {offsets = [32, 0], sizes = [128, 128], strides = [1, 1]} : vector<160x128xf32> to vector<128x128xf32>
    %c2_99 = arith.constant 2 : index
    %c1_100 = arith.constant 1 : index
    %c0_101 = arith.constant 0 : index
    %c0_102 = arith.constant 0 : index
    %134 = vector.load %arg5[%c2_99, %c1_100, %c0_101, %c0_102] : memref<3x3x128x128xf32, #tpu.memory_space<vmem>>, vector<1x1x128x128xf32>
    %135 = vector.shape_cast %134 : vector<1x1x128x128xf32> to vector<128x128xf32>
    %cst_103 = arith.constant dense<0.000000e+00> : vector<128x128xf32>
    %136 = tpu.matmul %133, %135, %cst_103 {dimension_numbers = #tpu.dot_dimension_numbers<[1], [0], [0], [1], [0, 0, 1, 1], [], []>} : vector<128x128xf32>, vector<128x128xf32>, vector<128x128xf32> -> vector<128x128xf32>
    %137 = arith.addf %132, %136 : vector<128x128xf32>
    %138 = vector.extract_strided_slice %102 {offsets = [0, 2, 0], sizes = [10, 16, 128], strides = [1, 1, 1]} : vector<10x18x128xf32> to vector<10x16x128xf32>
    %139 = vector.shape_cast %138 : vector<10x16x128xf32> to vector<160x128xf32>
    %140 = vector.extract_strided_slice %139 {offsets = [0, 0], sizes = [128, 128], strides = [1, 1]} : vector<160x128xf32> to vector<128x128xf32>
    %c0_104 = arith.constant 0 : index
    %c2_105 = arith.constant 2 : index
    %c0_106 = arith.constant 0 : index
    %c0_107 = arith.constant 0 : index
    %141 = vector.load %arg5[%c0_104, %c2_105, %c0_106, %c0_107] : memref<3x3x128x128xf32, #tpu.memory_space<vmem>>, vector<1x1x128x128xf32>
    %142 = vector.shape_cast %141 : vector<1x1x128x128xf32> to vector<128x128xf32>
    %cst_108 = arith.constant dense<0.000000e+00> : vector<128x128xf32>
    %143 = tpu.matmul %140, %142, %cst_108 {dimension_numbers = #tpu.dot_dimension_numbers<[1], [0], [0], [1], [0, 0, 1, 1], [], []>} : vector<128x128xf32>, vector<128x128xf32>, vector<128x128xf32> -> vector<128x128xf32>
    %144 = arith.addf %137, %143 : vector<128x128xf32>
    %145 = vector.extract_strided_slice %139 {offsets = [16, 0], sizes = [128, 128], strides = [1, 1]} : vector<160x128xf32> to vector<128x128xf32>
    %c1_109 = arith.constant 1 : index
    %c2_110 = arith.constant 2 : index
    %c0_111 = arith.constant 0 : index
    %c0_112 = arith.constant 0 : index
    %146 = vector.load %arg5[%c1_109, %c2_110, %c0_111, %c0_112] : memref<3x3x128x128xf32, #tpu.memory_space<vmem>>, vector<1x1x128x128xf32>
    %147 = vector.shape_cast %146 : vector<1x1x128x128xf32> to vector<128x128xf32>
    %cst_113 = arith.constant dense<0.000000e+00> : vector<128x128xf32>
    %148 = tpu.matmul %145, %147, %cst_113 {dimension_numbers = #tpu.dot_dimension_numbers<[1], [0], [0], [1], [0, 0, 1, 1], [], []>} : vector<128x128xf32>, vector<128x128xf32>, vector<128x128xf32> -> vector<128x128xf32>
    %149 = arith.addf %144, %148 : vector<128x128xf32>
    %150 = vector.extract_strided_slice %139 {offsets = [32, 0], sizes = [128, 128], strides = [1, 1]} : vector<160x128xf32> to vector<128x128xf32>
    %c2_114 = arith.constant 2 : index
    %c2_115 = arith.constant 2 : index
    %c0_116 = arith.constant 0 : index
    %c0_117 = arith.constant 0 : index
    %151 = vector.load %arg5[%c2_114, %c2_115, %c0_116, %c0_117] : memref<3x3x128x128xf32, #tpu.memory_space<vmem>>, vector<1x1x128x128xf32>
    %152 = vector.shape_cast %151 : vector<1x1x128x128xf32> to vector<128x128xf32>
    %cst_118 = arith.constant dense<0.000000e+00> : vector<128x128xf32>
    %153 = tpu.matmul %150, %152, %cst_118 {dimension_numbers = #tpu.dot_dimension_numbers<[1], [0], [0], [1], [0, 0, 1, 1], [], []>} : vector<128x128xf32>, vector<128x128xf32>, vector<128x128xf32> -> vector<128x128xf32>
    %154 = arith.addf %149, %153 : vector<128x128xf32>
    %155 = vector.shape_cast %154 : vector<128x128xf32> to vector<8x16x128xf32>
    %c0_119 = arith.constant 0 : index
    %c0_120 = arith.constant 0 : index
    %156 = vector.load %arg6[%c0_119, %c0_120] : memref<1x128xf32, #tpu.memory_space<vmem>>, vector<1x128xf32>
    %157 = vector.shape_cast %156 : vector<1x128xf32> to vector<1x1x128xf32>
    %158 = vector.broadcast %157 : vector<1x1x128xf32> to vector<8x16x128xf32>
    %159 = arith.addf %155, %158 : vector<8x16x128xf32>
    %160 = vector.extract_strided_slice %16 {offsets = [2, 1, 0], sizes = [8, 16, 128], strides = [1, 1, 1]} : vector<12x18x128xf32> to vector<8x16x128xf32>
    %161 = vector.shape_cast %160 : vector<8x16x128xf32> to vector<128x128xf32>
    %c0_121 = arith.constant 0 : index
    %c0_122 = arith.constant 0 : index
    %162 = vector.load %arg7[%c0_121, %c0_122] : memref<128x128xf32, #tpu.memory_space<vmem>>, vector<128x128xf32>
    %cst_123 = arith.constant dense<0.000000e+00> : vector<128x128xf32>
    %163 = tpu.matmul %161, %162, %cst_123 {dimension_numbers = #tpu.dot_dimension_numbers<[1], [0], [0], [1], [0, 0, 1, 1], [], []>} : vector<128x128xf32>, vector<128x128xf32>, vector<128x128xf32> -> vector<128x128xf32>
    %164 = vector.shape_cast %163 : vector<128x128xf32> to vector<8x16x128xf32>
    %c0_124 = arith.constant 0 : index
    %c0_125 = arith.constant 0 : index
    %165 = vector.load %arg8[%c0_124, %c0_125] : memref<1x128xf32, #tpu.memory_space<vmem>>, vector<1x128xf32>
    %166 = vector.shape_cast %165 : vector<1x128xf32> to vector<1x1x128xf32>
    %167 = vector.broadcast %166 : vector<1x1x128xf32> to vector<8x16x128xf32>
    %168 = arith.addf %164, %167 : vector<8x16x128xf32>
    %169 = arith.addf %159, %168 : vector<8x16x128xf32>
    %c0_126 = arith.constant 0 : index
    %c0_127 = arith.constant 0 : index
    %c0_128 = arith.constant 0 : index
    %c0_129 = arith.constant 0 : index
    %170 = vector.load %arg9[%c0_126, %c0_127, %c0_128, %c0_129] : memref<1x8x16x128xf32, #tpu.memory_space<vmem>>, vector<1x8x16x128xf32>
    %171 = vector.shape_cast %170 : vector<1x8x16x128xf32> to vector<8x16x128xf32>
    %172 = vector.shape_cast %169 : vector<8x16x128xf32> to vector<1x8x16x128xf32>
    tpu.vector_store %arg9[%c0_126, %c0_127, %c0_128, %c0_129], %172 {strides = array<i32>} : memref<1x8x16x128xf32, #tpu.memory_space<vmem>>, vector<1x8x16x128xf32>,
    return
  }
  func.func @transform_1(%arg0: i32, %arg1: i32) -> (i32, i32, i32, i32) {
    %c0_i32 = arith.constant 0 : i32
    %c0_i32_0 = arith.constant 0 : i32
    %c0_i32_1 = arith.constant 0 : i32
    %c0_i32_2 = arith.constant 0 : i32
    %c0_i32_3 = arith.constant 0 : i32
    return %c0_i32, %c0_i32_0, %c0_i32_1, %c0_i32_2 : i32, i32, i32, i32
  }
  func.func @transform_2(%arg0: i32, %arg1: i32) -> (i32, i32) {
    %c0_i32 = arith.constant 0 : i32
    %c0_i32_0 = arith.constant 0 : i32
    %c0_i32_1 = arith.constant 0 : i32
    return %c0_i32, %c0_i32_0 : i32, i32
  }
  func.func @transform_3(%arg0: i32, %arg1: i32) -> (i32, i32, i32, i32) {
    %c0_i32 = arith.constant 0 : i32
    %c0_i32_0 = arith.constant 0 : i32
    %c0_i32_1 = arith.constant 0 : i32
    %c0_i32_2 = arith.constant 0 : i32
    %c0_i32_3 = arith.constant 0 : i32
    return %c0_i32, %c0_i32_0, %c0_i32_1, %c0_i32_2 : i32, i32, i32, i32
  }
  func.func @transform_4(%arg0: i32, %arg1: i32) -> (i32, i32) {
    %c0_i32 = arith.constant 0 : i32
    %c0_i32_0 = arith.constant 0 : i32
    %c0_i32_1 = arith.constant 0 : i32
    return %c0_i32, %c0_i32_0 : i32, i32
  }
  func.func @transform_5(%arg0: i32, %arg1: i32) -> (i32, i32) {
    %c0_i32 = arith.constant 0 : i32
    %c0_i32_0 = arith.constant 0 : i32
    %c0_i32_1 = arith.constant 0 : i32
    return %c0_i32, %c0_i32_0 : i32, i32
  }
  func.func @transform_6(%arg0: i32, %arg1: i32) -> (i32, i32) {
    %c0_i32 = arith.constant 0 : i32
    %c0_i32_0 = arith.constant 0 : i32
    %c0_i32_1 = arith.constant 0 : i32
    return %c0_i32, %c0_i32_0 : i32, i32
  }
  func.func @transform_7(%arg0: i32, %arg1: i32) -> (i32, i32, i32, i32) {
    %c0_i32 = arith.constant 0 : i32
    %c0_i32_0 = arith.constant 0 : i32
    %c0_i32_1 = arith.constant 0 : i32
    return %arg0, %arg1, %c0_i32, %c0_i32_0 : i32, i32, i32, i32
  }
}

</mosaic_0001>

<llo_original>
// kernel: tpu_custom_call.1
$region0: #{tpu_custom_call.1}
  #allocation0 [shape = 'u32[]', space=smem, size = 0x4, offset = 0x4, fixed_abs, tag = 'smem constant byte address 0x4 - core index']
  #allocation1 [shape = 'u32[144,128]{1,0:T(1,128)}', space=vmem, size = 0x12000, scoped, tag = 'internal scratch']
  #allocation2 [shape = 'f32[2,12,18,128]{3,2,1,0:T(8,128)}', space=vmem, size = 0x48000, scoped, tag = 'scratch operand']
  #allocation3 [shape = 's32[2]{0}', space=sflag, size = 0x8, scoped, tag = 'scratch operand']
  #allocation4 [shape = 'f32[10,18,128]{2,1,0:T(8,128)}', space=vmem, size = 0x1e000, scoped, tag = 'scratch operand']
  #allocation17 [shape = 's32[]', space=sflag, size = 0x4, offset = 0, fixed_abs, tag = 'sflag constant byte address 0x0 - dummy sync flag']
  #allocation18 [shape = 's32[]', space=sflag, size = 0x4, offset = 0, fixed_abs, tag = 'sflag constant byte address 0x0 - dummy sync flag']
  %s0 = inlined_call_operand.hbm [shape: f32[2,20,18,128], index: 0, kind: input, shape index: {}]
  %s1 = inlined_call_operand.hbm [shape: f32[3,3,128,128], index: 1, kind: input, shape index: {}]
  %s2 = inlined_call_operand.hbm [shape: f32[1,128], index: 2, kind: input, shape index: {}]
  %s3 = inlined_call_operand.hbm [shape: f32[3,3,128,128], index: 3, kind: input, shape index: {}]
  %s4 = inlined_call_operand.hbm [shape: f32[1,128], index: 4, kind: input, shape index: {}]
  %s5 = inlined_call_operand.hbm [shape: f32[128,128], index: 5, kind: input, shape index: {}]
  %s6 = inlined_call_operand.hbm [shape: f32[1,128], index: 6, kind: input, shape index: {}]
  %s7 = inlined_call_operand.hbm [shape: f32[2,16,16,128], index: 7, kind: output, shape index: {}]
  %s8 = sld [smem:[#allocation0]]
  $region89: #{tpu_custom_call.1} parent=0
    _
  %s10 = ssub.s32 1, %s8
  %s11 = scalar_select 0, %s10, %s8
  $region1: #{tpu_custom_call.1} parent=0
    #allocation5 [shape = 'u8[589824]{0}', space=vmem, size = 0x90000, scoped, tag = 'input window, operand 1, single buffered']
    #allocation6 [shape = 's32[2]{0}', space=sflag, size = 0x8, scoped, tag = 'scoped memory for tpu_custom_call.1']
    #allocation7 [shape = 's32[2]{0}', space=sflag, size = 0x8, scoped, tag = 'scoped memory for tpu_custom_call.1']
    #allocation8 [shape = 'u8[512]{0}', space=vmem, size = 0x400, scoped, tag = 'input window, operand 2, single buffered']
    #allocation9 [shape = 's32[1]{0}', space=sflag, size = 0x4, scoped, tag = 'scoped memory for tpu_custom_call.1']
    #allocation10 [shape = 'u8[589824]{0}', space=vmem, size = 0x90000, scoped, tag = 'input window, operand 3, single buffered']
    #allocation11 [shape = 'u8[512]{0}', space=vmem, size = 0x400, scoped, tag = 'input window, operand 4, single buffered']
    #allocation12 [shape = 's32[1]{0}', space=sflag, size = 0x4, scoped, tag = 'scoped memory for tpu_custom_call.1']
    #allocation13 [shape = 'u8[65536]{0}', space=vmem, size = 0x10000, scoped, tag = 'input window, operand 5, single buffered']
    #allocation14 [shape = 'u8[512]{0}', space=vmem, size = 0x400, scoped, tag = 'input window, operand 6, single buffered']
    #allocation15 [shape = 's32[1]{0}', space=sflag, size = 0x4, scoped, tag = 'scoped memory for tpu_custom_call.1']
    #allocation16 [shape = 'u8[131072]{0}', space=vmem, size = 0x20000, scoped, tag = 'output window, operand 0']
    %12 = vsyncpa [#allocation6], 0
    %13 = vsyncpa [#allocation9], 0
    %14 = vsyncpa [#allocation12], 0
    %15 = vsyncpa [#allocation15], 0
    %16 = vsyncpa [#allocation7], 0
    %s17 = scalar_lea.sflag [#allocation7], 1
    %18 = vsyncpa %s17, 0
    loop: start=0, step=1, limit=6
    $region2: #{tpu_custom_call.1} parent=1 // loop_pre_header
      _
    $region3: #{tpu_custom_call.1} parent=1 // loop_header
      %s20 = sphi 0, %s24
      %p21 = scmp.ge.s32.totalorder %s20, 6
      %s27 = sphi 0, %s39
      %s28 = sphi 0, %s35
      %s29 = sphi 0, %s27
      %s30 = sphi 0, %s28
      %s31 = sphi 0, %s29
      %s32 = sphi 0, %s30
      %s40 = sphi 0, %s40
      %s42 = sphi 0, %s40
      %s43 = sphi 0, %s42
      %s57 = sphi 0, %s43
      %s61 = sphi 0, %s61
      %s63 = sphi 0, %s61
      %s64 = sphi 0, %s63
      %s78 = sphi 0, %s64
      %s82 = sphi 0, %s82
      %s84 = sphi 0, %s82
      %s85 = sphi 0, %s84
      %s99 = sphi 0, %s85
      %s103 = sphi 0, %s103
      %s105 = sphi 0, %s103
      %s106 = sphi 0, %s105
      %s120 = sphi 0, %s106
      %s124 = sphi 0, %s124
      %s126 = sphi 0, %s124
      %s127 = sphi 0, %s126
      %s141 = sphi 0, %s127
      %s145 = sphi 0, %s145
      %s147 = sphi 0, %s145
      %s148 = sphi 0, %s147
      %s162 = sphi 0, %s148
      %s170 = sphi 0, %s172
      %s173 = sphi 0, %s170
      %s174 = sphi 0, %s173
      %s190 = sphi 0, %s174
    $region4: #{tpu_custom_call.1} parent=1 // loop_header_branch
      %23 = sbr.rel (%p21) target = $region8
    $region5: #{tpu_custom_call.1} parent=1 // loop_body
      %s25 = ssub.s32 %s20, 1
      %s26 = ssub.s32 %s20, 2
      %s33 = sadd.s32 1, %s28
      %p34 = scmp.ge.s32.totalorder %s33, 2
      %s35 = scalar_select %p34, 0, %s33
      %s36 = sadd.s32 1, %s27
      %s37 = scalar_select %p34, %s36, %s27
      %p38 = scmp.ge.s32.totalorder %s37, 2
      %s39 = scalar_select %p38, 0, %s37
      %s41 = sadd.s32 %s40, 1
      %p44 = scmp.eq.s32.totalorder %s20, 3
      %p45 = scmp.ne.s32.totalorder %s40, %s42
      %p46 = scmp.eq.s32.totalorder %s20, 0
      %p47 = por %p45, %p46
      %p48 = scmp.ne.s32.totalorder %s40, %s42
      %p49 = scmp.eq.s32.totalorder %s25, 3
      %p50 = por %p48, %p49
      %p51 = scmp.ne.s32.totalorder %s42, %s43
      %p52 = scmp.eq.s32.totalorder %s25, 0
      %p53 = por %p51, %p52
      %p54 = scmp.ne.s32.totalorder %s42, %s43
      %p55 = scmp.eq.s32.totalorder %s26, 3
      %p56 = por %p54, %p55
      %p58 = scmp.ne.s32.totalorder %s43, %s57
      %p59 = scmp.eq.s32.totalorder %s26, 0
      %p60 = por %p58, %p59
      %s62 = sadd.s32 %s61, 1
      %p65 = scmp.eq.s32.totalorder %s20, 3
      %p66 = scmp.ne.s32.totalorder %s61, %s63
      %p67 = scmp.eq.s32.totalorder %s20, 0
      %p68 = por %p66, %p67
      %p69 = scmp.ne.s32.totalorder %s61, %s63
      %p70 = scmp.eq.s32.totalorder %s25, 3
      %p71 = por %p69, %p70
      %p72 = scmp.ne.s32.totalorder %s63, %s64
      %p73 = scmp.eq.s32.totalorder %s25, 0
      %p74 = por %p72, %p73
      %p75 = scmp.ne.s32.totalorder %s63, %s64
      %p76 = scmp.eq.s32.totalorder %s26, 3
      %p77 = por %p75, %p76
      %p79 = scmp.ne.s32.totalorder %s64, %s78
      %p80 = scmp.eq.s32.totalorder %s26, 0
      %p81 = por %p79, %p80
      %s83 = sadd.s32 %s82, 1
      %p86 = scmp.eq.s32.totalorder %s20, 3
      %p87 = scmp.ne.s32.totalorder %s82, %s84
      %p88 = scmp.eq.s32.totalorder %s20, 0
      %p89 = por %p87, %p88
      %p90 = scmp.ne.s32.totalorder %s82, %s84
      %p91 = scmp.eq.s32.totalorder %s25, 3
      %p92 = por %p90, %p91
      %p93 = scmp.ne.s32.totalorder %s84, %s85
      %p94 = scmp.eq.s32.totalorder %s25, 0
      %p95 = por %p93, %p94
      %p96 = scmp.ne.s32.totalorder %s84, %s85
      %p97 = scmp.eq.s32.totalorder %s26, 3
      %p98 = por %p96, %p97
      %p100 = scmp.ne.s32.totalorder %s85, %s99
      %p101 = scmp.eq.s32.totalorder %s26, 0
      %p102 = por %p100, %p101
      %s104 = sadd.s32 %s103, 1
      %p107 = scmp.eq.s32.totalorder %s20, 3
      %p108 = scmp.ne.s32.totalorder %s103, %s105
      %p109 = scmp.eq.s32.totalorder %s20, 0
      %p110 = por %p108, %p109
      %p111 = scmp.ne.s32.totalorder %s103, %s105
      %p112 = scmp.eq.s32.totalorder %s25, 3
      %p113 = por %p111, %p112
      %p114 = scmp.ne.s32.totalorder %s105, %s106
      %p115 = scmp.eq.s32.totalorder %s25, 0
      %p116 = por %p114, %p115
      %p117 = scmp.ne.s32.totalorder %s105, %s106
      %p118 = scmp.eq.s32.totalorder %s26, 3
      %p119 = por %p117, %p118
      %p121 = scmp.ne.s32.totalorder %s106, %s120
      %p122 = scmp.eq.s32.totalorder %s26, 0
      %p123 = por %p121, %p122
      %s125 = sadd.s32 %s124, 1
      %p128 = scmp.eq.s32.totalorder %s20, 3
      %p129 = scmp.ne.s32.totalorder %s124, %s126
      %p130 = scmp.eq.s32.totalorder %s20, 0
      %p131 = por %p129, %p130
      %p132 = scmp.ne.s32.totalorder %s124, %s126
      %p133 = scmp.eq.s32.totalorder %s25, 3
      %p134 = por %p132, %p133
      %p135 = scmp.ne.s32.totalorder %s126, %s127
      %p136 = scmp.eq.s32.totalorder %s25, 0
      %p137 = por %p135, %p136
      %p138 = scmp.ne.s32.totalorder %s126, %s127
      %p139 = scmp.eq.s32.totalorder %s26, 3
      %p140 = por %p138, %p139
      %p142 = scmp.ne.s32.totalorder %s127, %s141
      %p143 = scmp.eq.s32.totalorder %s26, 0
      %p144 = por %p142, %p143
      %s146 = sadd.s32 %s145, 1
      %p149 = scmp.eq.s32.totalorder %s20, 3
      %p150 = scmp.ne.s32.totalorder %s145, %s147
      %p151 = scmp.eq.s32.totalorder %s20, 0
      %p152 = por %p150, %p151
      %p153 = scmp.ne.s32.totalorder %s145, %s147
      %p154 = scmp.eq.s32.totalorder %s25, 3
      %p155 = por %p153, %p154
      %p156 = scmp.ne.s32.totalorder %s147, %s148
      %p157 = scmp.eq.s32.totalorder %s25, 0
      %p158 = por %p156, %p157
      %p159 = scmp.ne.s32.totalorder %s147, %s148
      %p160 = scmp.eq.s32.totalorder %s26, 3
      %p161 = por %p159, %p160
      %p163 = scmp.ne.s32.totalorder %s148, %s162
      %p164 = scmp.eq.s32.totalorder %s26, 0
      %p165 = por %p163, %p164
      %s166 = ssub.s32 %s27, %s39
      %s167 = ssub.s32 %s28, %s35
      %s168 = sor.u32 %s166, %s167
      %p169 = scmp.eq.s32.totalorder %s168, 0
      %s171 = sadd.s32 %s170, 1
      %s172 = scalar_select %p169, %s170, %s171
      %p175 = pneg %p169
      %p176 = scmp.eq.s32.totalorder %s20, 3
      %p177 = por %p175, %p176
      %p178 = scmp.ne.s32.totalorder %s170, %s173
      %p179 = scmp.eq.s32.totalorder %s20, 0
      %p180 = por %p178, %p179
      %p181 = scmp.ne.s32.totalorder %s170, %s173
      %p182 = scmp.eq.s32.totalorder %s25, 3
      %p183 = por %p181, %p182
      %p184 = scmp.ne.s32.totalorder %s173, %s174
      %p185 = scmp.eq.s32.totalorder %s25, 0
      %p186 = por %p184, %p185
      %p187 = scmp.ne.s32.totalorder %s173, %s174
      %p188 = scmp.eq.s32.totalorder %s26, 3
      %p189 = por %p187, %p188
      %p191 = scmp.ne.s32.totalorder %s174, %s190
      %p192 = scmp.eq.s32.totalorder %s26, 0
      %p193 = por %p191, %p192
      %p194 = scmp.le.s32.totalorder 1, %s20
      %p195 = scmp.lt.s32.totalorder %s20, 5
      %p196 = pnand %p194, %p195
      %p197 = pneg %p196
      // Predicated region
      $region9: #{tpu_custom_call.1} parent=5 // pred_check
        _
      $region10: #{tpu_custom_call.1} parent=5 // pred_check_branch
        %199 = sbr.rel (%p196) target = $region12
      $region11: #{tpu_custom_call.1} parent=5 // pred_region
        %s200 = ssub.s32 %s20, 1
        // Predicated region
        $region13: #{tpu_custom_call.1} parent=11 // pred_check
          %p201 = pneg %p53
        $region14: #{tpu_custom_call.1} parent=11 // pred_check_branch
          %203 = sbr.rel (%p201) target = $region16
        $region15: #{tpu_custom_call.1} parent=11 // pred_region
          %s205 = ssub.s32 18432, 18432
          %206 = vsyncadd [#allocation6], %s205
          %s207 = sshll.u32 [#allocation5], 4
          %s208 = int_to_ptr.vmem [resolvable:$true] %s207
          %213 = dma.hbm_to_vmem [thread:$0]  %s1, 18432, %s208, [#allocation6], 128, 128, 8
        $region16: #{tpu_custom_call.1} parent=11 // pred_fallthru
          _
        // Predicated region
        $region17: #{tpu_custom_call.1} parent=11 // pred_check
          %p214 = pneg %p74
        $region18: #{tpu_custom_call.1} parent=11 // pred_check_branch
          %216 = sbr.rel (%p214) target = $region20
        $region19: #{tpu_custom_call.1} parent=11 // pred_region
          %s218 = ssub.s32 16, 16
          %219 = vsyncadd [#allocation9], %s218
          %s221 = sshll.u32 [#allocation8], 4
          %s222 = int_to_ptr.vmem [resolvable:$true] %s221
          %224 = dma.hbm_to_vmem [thread:$0]  %s2, 16, %s222, [#allocation9]
        $region20: #{tpu_custom_call.1} parent=11 // pred_fallthru
          _
        // Predicated region
        $region21: #{tpu_custom_call.1} parent=11 // pred_check
          %p225 = pneg %p95
        $region22: #{tpu_custom_call.1} parent=11 // pred_check_branch
          %227 = sbr.rel (%p225) target = $region24
        $region23: #{tpu_custom_call.1} parent=11 // pred_region
          %s229 = ssub.s32 18432, 18432
          %230 = vsyncadd [#allocation9], %s229
          %s231 = sshll.u32 [#allocation10], 4
          %s232 = int_to_ptr.vmem [resolvable:$true] %s231
          %237 = dma.hbm_to_vmem [thread:$0]  %s3, 18432, %s232, [#allocation9], 128, 128, 8
        $region24: #{tpu_custom_call.1} parent=11 // pred_fallthru
          _
        // Predicated region
        $region25: #{tpu_custom_call.1} parent=11 // pred_check
          %p238 = pneg %p116
        $region26: #{tpu_custom_call.1} parent=11 // pred_check_branch
          %240 = sbr.rel (%p238) target = $region28
        $region27: #{tpu_custom_call.1} parent=11 // pred_region
          %s242 = ssub.s32 16, 16
          %243 = vsyncadd [#allocation12], %s242
          %s245 = sshll.u32 [#allocation11], 4
          %s246 = int_to_ptr.vmem [resolvable:$true] %s245
          %248 = dma.hbm_to_vmem [thread:$0]  %s4, 16, %s246, [#allocation12]
        $region28: #{tpu_custom_call.1} parent=11 // pred_fallthru
          _
        // Predicated region
        $region29: #{tpu_custom_call.1} parent=11 // pred_check
          %p249 = pneg %p137
        $region30: #{tpu_custom_call.1} parent=11 // pred_check_branch
          %251 = sbr.rel (%p249) target = $region32
        $region31: #{tpu_custom_call.1} parent=11 // pred_region
          %s253 = ssub.s32 2048, 2048
          %254 = vsyncadd [#allocation12], %s253
          %s255 = sshll.u32 [#allocation13], 4
          %s256 = int_to_ptr.vmem [resolvable:$true] %s255
          %261 = dma.hbm_to_vmem [thread:$0]  %s5, 2048, %s256, [#allocation12], 128, 128, 8
        $region32: #{tpu_custom_call.1} parent=11 // pred_fallthru
          _
        // Predicated region
        $region33: #{tpu_custom_call.1} parent=11 // pred_check
          %p262 = pneg %p158
        $region34: #{tpu_custom_call.1} parent=11 // pred_check_branch
          %264 = sbr.rel (%p262) target = $region36
        $region35: #{tpu_custom_call.1} parent=11 // pred_region
          %s266 = ssub.s32 16, 16
          %267 = vsyncadd [#allocation15], %s266
          %s269 = sshll.u32 [#allocation14], 4
          %s270 = int_to_ptr.vmem [resolvable:$true] %s269
          %272 = dma.hbm_to_vmem [thread:$0]  %s6, 16, %s270, [#allocation15]
        $region36: #{tpu_custom_call.1} parent=11 // pred_fallthru
          _
      $region12: #{tpu_custom_call.1} parent=5 // pred_fallthru
        _
      %p273 = scmp.lt.s32.totalorder %s20, 4
      // Predicated region
      $region37: #{tpu_custom_call.1} parent=5 // pred_check
        %p274 = pneg %p273
      $region38: #{tpu_custom_call.1} parent=5 // pred_check_branch
        %276 = sbr.rel (%p274) target = $region40
      $region39: #{tpu_custom_call.1} parent=5 // pred_region
        _
      $region40: #{tpu_custom_call.1} parent=5 // pred_fallthru
        _
      %p277 = scmp.le.s32.totalorder 1, %s20
      %p278 = scmp.lt.s32.totalorder %s20, 5
      %p279 = pnand %p277, %p278
      %p280 = pneg %p279
      // Predicated region
      $region41: #{tpu_custom_call.1} parent=5 // pred_check
        _
      $region42: #{tpu_custom_call.1} parent=5 // pred_check_branch
        %282 = sbr.rel (%p279) target = $region44
      $region43: #{tpu_custom_call.1} parent=5 // pred_region
        %s283 = ssub.s32 %s20, 1
        // Predicated region
        $region45: #{tpu_custom_call.1} parent=43 // pred_check
          %p284 = pneg %p53
        $region46: #{tpu_custom_call.1} parent=43 // pred_check_branch
          %286 = sbr.rel (%p284) target = $region48
        $region47: #{tpu_custom_call.1} parent=43 // pred_region
          %287 = dma.done [#allocation6], 18432
        $region48: #{tpu_custom_call.1} parent=43 // pred_fallthru
          _
        // Predicated region
        $region49: #{tpu_custom_call.1} parent=43 // pred_check
          %p288 = pneg %p74
        $region50: #{tpu_custom_call.1} parent=43 // pred_check_branch
          %290 = sbr.rel (%p288) target = $region52
        $region51: #{tpu_custom_call.1} parent=43 // pred_region
          %291 = dma.done [#allocation9], 16
        $region52: #{tpu_custom_call.1} parent=43 // pred_fallthru
          _
        // Predicated region
        $region53: #{tpu_custom_call.1} parent=43 // pred_check
          %p292 = pneg %p95
        $region54: #{tpu_custom_call.1} parent=43 // pred_check_branch
          %294 = sbr.rel (%p292) target = $region56
        $region55: #{tpu_custom_call.1} parent=43 // pred_region
          %295 = dma.done [#allocation9], 18432
        $region56: #{tpu_custom_call.1} parent=43 // pred_fallthru
          _
        // Predicated region
        $region57: #{tpu_custom_call.1} parent=43 // pred_check
          %p296 = pneg %p116
        $region58: #{tpu_custom_call.1} parent=43 // pred_check_branch
          %298 = sbr.rel (%p296) target = $region60
        $region59: #{tpu_custom_call.1} parent=43 // pred_region
          %299 = dma.done [#allocation12], 16
        $region60: #{tpu_custom_call.1} parent=43 // pred_fallthru
          _
        // Predicated region
        $region61: #{tpu_custom_call.1} parent=43 // pred_check
          %p300 = pneg %p137
        $region62: #{tpu_custom_call.1} parent=43 // pred_check_branch
          %302 = sbr.rel (%p300) target = $region64
        $region63: #{tpu_custom_call.1} parent=43 // pred_region
          %303 = dma.done [#allocation12], 2048
        $region64: #{tpu_custom_call.1} parent=43 // pred_fallthru
          _
        // Predicated region
        $region65: #{tpu_custom_call.1} parent=43 // pred_check
          %p304 = pneg %p158
        $region66: #{tpu_custom_call.1} parent=43 // pred_check_branch
          %306 = sbr.rel (%p304) target = $region68
        $region67: #{tpu_custom_call.1} parent=43 // pred_region
          %307 = dma.done [#allocation15], 16
        $region68: #{tpu_custom_call.1} parent=43 // pred_fallthru
          _
        %p308 = pneg %p53
        %p309 = pneg %p50
        %p310 = pneg %p74
        %p311 = pneg %p71
        %p312 = pneg %p95
        %p313 = pneg %p92
        %p314 = pneg %p116
        %p315 = pneg %p113
        %p316 = pneg %p137
        %p317 = pneg %p134
        %p318 = pneg %p158
        %p319 = pneg %p155
        %p320 = pneg %p186
        %p321 = pneg %p183
        %s322 = sand.u32 %s173, 1
        %s323 = scalar_lea.sflag [#allocation7], %s322
        %s324 = sand.u32 %s173, 1
        %s325 = smul.addr %s324, 128
        %s326 = scalar_lea.vmem [#allocation16], %s325
        %s327 = smul.u32 8, %s30
        %p328 = scmp.eq.s32.totalorder %s30, 0
        // Predicated region
        $region69: #{tpu_custom_call.1} parent=43 // pred_check
          %p329 = pneg %p328
        $region70: #{tpu_custom_call.1} parent=43 // pred_check_branch
          %331 = sbr.rel (%p329) target = $region72
        $region71: #{tpu_custom_call.1} parent=43 // pred_region
          %s332 = smul.u32 0, 24
          %s333 = smul.u32 %s29, 480
          %s334 = sadd.s32 %s332, %s333
          %s335 = smul.addr %s334, 16
          %s336 = scalar_lea.hbm %s0, %s335
          %s338 = sshll.u32 [#allocation2], 4
          %s339 = int_to_ptr.vmem [resolvable:$true] %s338
          %341 = dma.hbm_to_vmem [thread:$0]  %s336, 3456, %s339, [#allocation3], 384, 384, 18
        $region72: #{tpu_custom_call.1} parent=43 // pred_fallthru
          _
        %p342 = scmp.lt.s32.totalorder %s30, 0
        %s343 = ssub.s32 0, %s30
        %s344 = scalar_select %p342, %s343, %s30
        %s345 = sand.u32 %s344, 1
        %s346 = ssub.s32 0, %s345
        %s347 = scalar_select %p342, %s346, %s345
        %s348 = smul.u32 %s347, 288
        %s349 = scalar_lea.vmem [#allocation2], %s348
        %s350 = scalar_lea.sflag [#allocation3], %s347
        %s351 = smul.u32 12, 18
        %s352 = smul.u32 %s351, 1
        %s353 = sshll.u32 %s352, 4
        %354 = dma.done %s350, %s353
        %s355 = sadd.s32 %s30, 1
        %p356 = scmp.lt.s32.totalorder %s355, 2
        // Predicated region
        $region73: #{tpu_custom_call.1} parent=43 // pred_check
          %p357 = pneg %p356
        $region74: #{tpu_custom_call.1} parent=43 // pred_check_branch
          %359 = sbr.rel (%p357) target = $region76
        $region75: #{tpu_custom_call.1} parent=43 // pred_region
          %s360 = ssub.s32 1, %s347
          %s361 = smul.u32 %s355, 8
          %s362 = smul.u32 %s361, 24
          %s363 = smul.u32 %s29, 480
          %s364 = sadd.s32 %s362, %s363
          %s365 = smul.addr %s364, 16
          %s366 = scalar_lea.hbm %s0, %s365
          %s367 = smul.u32 %s360, 288
          %s368 = scalar_lea.vmem [#allocation2], %s367
          %s369 = scalar_lea.sflag [#allocation3], %s360
          %s371 = sshll.u32 %s368, 4
          %s372 = int_to_ptr.vmem [resolvable:$true] %s371
          %374 = dma.hbm_to_vmem [thread:$0]  %s366, 3456, %s372, %s369, 384, 384, 18
        $region76: #{tpu_custom_call.1} parent=43 // pred_fallthru
          _
        %v375 = vld [vmem:[%s349] sm:$0xff]
        %v376 = vld [vmem:[%s349 + $0x8] sm:$0xff]
        %v377 = vld [vmem:[%s349 + $0x10] sm:$0x3]
        %v378 = vld [vmem:[%s349 + $0x18] sm:$0xff]
        %v379 = vld [vmem:[%s349 + $0x20] sm:$0xff]
        %v380 = vld [vmem:[%s349 + $0x28] sm:$0x3]
        %v381 = vld [vmem:[%s349 + $0x30] sm:$0xff]
        %v382 = vld [vmem:[%s349 + $0x38] sm:$0xff]
        %v383 = vld [vmem:[%s349 + $0x40] sm:$0x3]
        %v384 = vld [vmem:[%s349 + $0x48] sm:$0xff]
        %v385 = vld [vmem:[%s349 + $0x50] sm:$0xff]
        %v386 = vld [vmem:[%s349 + $0x58] sm:$0x3]
        %v387 = vld [vmem:[%s349 + $0x60] sm:$0xff]
        %v388 = vld [vmem:[%s349 + $0x68] sm:$0xff]
        %v389 = vld [vmem:[%s349 + $0x70] sm:$0x3]
        %v390 = vld [vmem:[%s349 + $0x78] sm:$0xff]
        %v391 = vld [vmem:[%s349 + $0x80] sm:$0xff]
        %v392 = vld [vmem:[%s349 + $0x88] sm:$0x3]
        %v393 = vld [vmem:[%s349 + $0x90] sm:$0xff]
        %v394 = vld [vmem:[%s349 + $0x98] sm:$0xff]
        %v395 = vld [vmem:[%s349 + $0xa0] sm:$0x3]
        %v396 = vld [vmem:[%s349 + $0xa8] sm:$0xff]
        %v397 = vld [vmem:[%s349 + $0xb0] sm:$0xff]
        %v398 = vld [vmem:[%s349 + $0xb8] sm:$0x3]
        %v399 = vld [vmem:[%s349 + $0xc0] sm:$0xff]
        %v400 = vld [vmem:[%s349 + $0xc8] sm:$0xff]
        %v401 = vld [vmem:[%s349 + $0xd0] sm:$0x3]
        %v402 = vld [vmem:[%s349 + $0xd8] sm:$0xff]
        %v403 = vld [vmem:[%s349 + $0xe0] sm:$0xff]
        %v404 = vld [vmem:[%s349 + $0xe8] sm:$0x3]
        %v405 = vld [vmem:[%s349 + $0xf0] sm:$0xff]
        %v406 = vld [vmem:[%s349 + $0xf8] sm:$0xff]
        %v407 = vld [vmem:[%s349 + $0x100] sm:$0x3]
        %v408 = vld [vmem:[%s349 + $0x108] sm:$0xff]
        %v409 = vld [vmem:[%s349 + $0x110] sm:$0xff]
        %v410 = vld [vmem:[%s349 + $0x118] sm:$0x3]
        %v411 = vxor.u32 %v375, 2147483648
        %v412 = vxor.u32 %v376, 2147483648
        %v413 = vxor.u32 %v377, 2147483648
        %v414 = vxor.u32 %v378, 2147483648
        %v415 = vxor.u32 %v379, 2147483648
        %v416 = vxor.u32 %v380, 2147483648
        %v417 = vxor.u32 %v381, 2147483648
        %v418 = vxor.u32 %v382, 2147483648
        %v419 = vxor.u32 %v383, 2147483648
        %v420 = vxor.u32 %v384, 2147483648
        %v421 = vxor.u32 %v385, 2147483648
        %v422 = vxor.u32 %v386, 2147483648
        %v423 = vxor.u32 %v387, 2147483648
        %v424 = vxor.u32 %v388, 2147483648
        %v425 = vxor.u32 %v389, 2147483648
        %v426 = vxor.u32 %v390, 2147483648
        %v427 = vxor.u32 %v391, 2147483648
        %v428 = vxor.u32 %v392, 2147483648
        %v429 = vxor.u32 %v393, 2147483648
        %v430 = vxor.u32 %v394, 2147483648
        %v431 = vxor.u32 %v395, 2147483648
        %v432 = vxor.u32 %v396, 2147483648
        %v433 = vxor.u32 %v397, 2147483648
        %v434 = vxor.u32 %v398, 2147483648
        %v435 = vxor.u32 %v399, 2147483648
        %v436 = vxor.u32 %v400, 2147483648
        %v437 = vxor.u32 %v401, 2147483648
        %v438 = vxor.u32 %v402, 2147483648
        %v439 = vxor.u32 %v403, 2147483648
        %v440 = vxor.u32 %v404, 2147483648
        %v441 = vxor.u32 %v405, 2147483648
        %v442 = vxor.u32 %v406, 2147483648
        %v443 = vxor.u32 %v407, 2147483648
        %v444 = vxor.u32 %v408, 2147483648
        %v445 = vxor.u32 %v409, 2147483648
        %v446 = vxor.u32 %v410, 2147483648
        %v447 = vmul.f32 %v411, 1.442695
        %v448 = vpow.pop %v447
        %v449 = vmul.f32 %v412, 1.442695
        %v450 = vpow.pop %v449
        %v451 = vmul.f32 %v413, 1.442695
        %v452 = vpow.pop %v451
        %v453 = vmul.f32 %v414, 1.442695
        %v454 = vpow.pop %v453
        %v455 = vmul.f32 %v415, 1.442695
        %v456 = vpow.pop %v455
        %v457 = vmul.f32 %v416, 1.442695
        %v458 = vpow.pop %v457
        %v459 = vmul.f32 %v417, 1.442695
        %v460 = vpow.pop %v459
        %v461 = vmul.f32 %v418, 1.442695
        %v462 = vpow.pop %v461
        %v463 = vmul.f32 %v419, 1.442695
        %v464 = vpow.pop %v463
        %v465 = vmul.f32 %v420, 1.442695
        %v466 = vpow.pop %v465
        %v467 = vmul.f32 %v421, 1.442695
        %v468 = vpow.pop %v467
        %v469 = vmul.f32 %v422, 1.442695
        %v470 = vpow.pop %v469
        %v471 = vmul.f32 %v423, 1.442695
        %v472 = vpow.pop %v471
        %v473 = vmul.f32 %v424, 1.442695
        %v474 = vpow.pop %v473
        %v475 = vmul.f32 %v425, 1.442695
        %v476 = vpow.pop %v475
        %v477 = vmul.f32 %v426, 1.442695
        %v478 = vpow.pop %v477
        %v479 = vmul.f32 %v427, 1.442695
        %v480 = vpow.pop %v479
        %v481 = vmul.f32 %v428, 1.442695
        %v482 = vpow.pop %v481
        %v483 = vmul.f32 %v429, 1.442695
        %v484 = vpow.pop %v483
        %v485 = vmul.f32 %v430, 1.442695
        %v486 = vpow.pop %v485
        %v487 = vmul.f32 %v431, 1.442695
        %v488 = vpow.pop %v487
        %v489 = vmul.f32 %v432, 1.442695
        %v490 = vpow.pop %v489
        %v491 = vmul.f32 %v433, 1.442695
        %v492 = vpow.pop %v491
        %v493 = vmul.f32 %v434, 1.442695
        %v494 = vpow.pop %v493
        %v495 = vmul.f32 %v435, 1.442695
        %v496 = vpow.pop %v495
        %v497 = vmul.f32 %v436, 1.442695
        %v498 = vpow.pop %v497
        %v499 = vmul.f32 %v437, 1.442695
        %v500 = vpow.pop %v499
        %v501 = vmul.f32 %v438, 1.442695
        %v502 = vpow.pop %v501
        %v503 = vmul.f32 %v439, 1.442695
        %v504 = vpow.pop %v503
        %v505 = vmul.f32 %v440, 1.442695
        %v506 = vpow.pop %v505
        %v507 = vmul.f32 %v441, 1.442695
        %v508 = vpow.pop %v507
        %v509 = vmul.f32 %v442, 1.442695
        %v510 = vpow.pop %v509
        %v511 = vmul.f32 %v443, 1.442695
        %v512 = vpow.pop %v511
        %v513 = vmul.f32 %v444, 1.442695
        %v514 = vpow.pop %v513
        %v515 = vmul.f32 %v445, 1.442695
        %v516 = vpow.pop %v515
        %v517 = vmul.f32 %v446, 1.442695
        %v518 = vpow.pop %v517
        %v519 = vadd.f32 %v448, 1.0
        %v520 = vadd.f32 %v450, 1.0
        %v521 = vadd.f32 %v452, 1.0
        %v522 = vadd.f32 %v454, 1.0
        %v523 = vadd.f32 %v456, 1.0
        %v524 = vadd.f32 %v458, 1.0
        %v525 = vadd.f32 %v460, 1.0
        %v526 = vadd.f32 %v462, 1.0
        %v527 = vadd.f32 %v464, 1.0
        %v528 = vadd.f32 %v466, 1.0
        %v529 = vadd.f32 %v468, 1.0
        %v530 = vadd.f32 %v470, 1.0
        %v531 = vadd.f32 %v472, 1.0
        %v532 = vadd.f32 %v474, 1.0
        %v533 = vadd.f32 %v476, 1.0
        %v534 = vadd.f32 %v478, 1.0
        %v535 = vadd.f32 %v480, 1.0
        %v536 = vadd.f32 %v482, 1.0
        %v537 = vadd.f32 %v484, 1.0
        %v538 = vadd.f32 %v486, 1.0
        %v539 = vadd.f32 %v488, 1.0
        %v540 = vadd.f32 %v490, 1.0
        %v541 = vadd.f32 %v492, 1.0
        %v542 = vadd.f32 %v494, 1.0
        %v543 = vadd.f32 %v496, 1.0
        %v544 = vadd.f32 %v498, 1.0
        %v545 = vadd.f32 %v500, 1.0
        %v546 = vadd.f32 %v502, 1.0
        %v547 = vadd.f32 %v504, 1.0
        %v548 = vadd.f32 %v506, 1.0
        %v549 = vadd.f32 %v508, 1.0
        %v550 = vadd.f32 %v510, 1.0
        %v551 = vadd.f32 %v512, 1.0
        %v552 = vadd.f32 %v514, 1.0
        %v553 = vadd.f32 %v516, 1.0
        %v554 = vadd.f32 %v518, 1.0
        %v555 = vrcp.pop %v519
        %v556 = vmul.f32 1.0, %v555
        %v557 = vrcp.pop %v520
        %v558 = vmul.f32 1.0, %v557
        %v559 = vrcp.pop %v521
        %v560 = vmul.f32 1.0, %v559
        %v561 = vrcp.pop %v522
        %v562 = vmul.f32 1.0, %v561
        %v563 = vrcp.pop %v523
        %v564 = vmul.f32 1.0, %v563
        %v565 = vrcp.pop %v524
        %v566 = vmul.f32 1.0, %v565
        %v567 = vrcp.pop %v525
        %v568 = vmul.f32 1.0, %v567
        %v569 = vrcp.pop %v526
        %v570 = vmul.f32 1.0, %v569
        %v571 = vrcp.pop %v527
        %v572 = vmul.f32 1.0, %v571
        %v573 = vrcp.pop %v528
        %v574 = vmul.f32 1.0, %v573
        %v575 = vrcp.pop %v529
        %v576 = vmul.f32 1.0, %v575
        %v577 = vrcp.pop %v530
        %v578 = vmul.f32 1.0, %v577
        %v579 = vrcp.pop %v531
        %v580 = vmul.f32 1.0, %v579
        %v581 = vrcp.pop %v532
        %v582 = vmul.f32 1.0, %v581
        %v583 = vrcp.pop %v533
        %v584 = vmul.f32 1.0, %v583
        %v585 = vrcp.pop %v534
        %v586 = vmul.f32 1.0, %v585
        %v587 = vrcp.pop %v535
        %v588 = vmul.f32 1.0, %v587
        %v589 = vrcp.pop %v536
        %v590 = vmul.f32 1.0, %v589
        %v591 = vrcp.pop %v537
        %v592 = vmul.f32 1.0, %v591
        %v593 = vrcp.pop %v538
        %v594 = vmul.f32 1.0, %v593
        %v595 = vrcp.pop %v539
        %v596 = vmul.f32 1.0, %v595
        %v597 = vrcp.pop %v540
        %v598 = vmul.f32 1.0, %v597
        %v599 = vrcp.pop %v541
        %v600 = vmul.f32 1.0, %v599
        %v601 = vrcp.pop %v542
        %v602 = vmul.f32 1.0, %v601
        %v603 = vrcp.pop %v543
        %v604 = vmul.f32 1.0, %v603
        %v605 = vrcp.pop %v544
        %v606 = vmul.f32 1.0, %v605
        %v607 = vrcp.pop %v545
        %v608 = vmul.f32 1.0, %v607
        %v609 = vrcp.pop %v546
        %v610 = vmul.f32 1.0, %v609
        %v611 = vrcp.pop %v547
        %v612 = vmul.f32 1.0, %v611
        %v613 = vrcp.pop %v548
        %v614 = vmul.f32 1.0, %v613
        %v615 = vrcp.pop %v549
        %v616 = vmul.f32 1.0, %v615
        %v617 = vrcp.pop %v550
        %v618 = vmul.f32 1.0, %v617
        %v619 = vrcp.pop %v551
        %v620 = vmul.f32 1.0, %v619
        %v621 = vrcp.pop %v552
        %v622 = vmul.f32 1.0, %v621
        %v623 = vrcp.pop %v553
        %v624 = vmul.f32 1.0, %v623
        %v625 = vrcp.pop %v554
        %v626 = vmul.f32 1.0, %v625
        %v627 = vmul.f32 %v375, %v556
        %v628 = vmul.f32 %v376, %v558
        %v629 = vmul.f32 %v377, %v560
        %v630 = vmul.f32 %v378, %v562
        %v631 = vmul.f32 %v379, %v564
        %v632 = vmul.f32 %v380, %v566
        %v633 = vmul.f32 %v381, %v568
        %v634 = vmul.f32 %v382, %v570
        %v635 = vmul.f32 %v383, %v572
        %v636 = vmul.f32 %v384, %v574
        %v637 = vmul.f32 %v385, %v576
        %v638 = vmul.f32 %v386, %v578
        %v639 = vmul.f32 %v387, %v580
        %v640 = vmul.f32 %v388, %v582
        %v641 = vmul.f32 %v389, %v584
        %v642 = vmul.f32 %v390, %v586
        %v643 = vmul.f32 %v391, %v588
        %v644 = vmul.f32 %v392, %v590
        %v645 = vmul.f32 %v393, %v592
        %v646 = vmul.f32 %v394, %v594
        %v647 = vmul.f32 %v395, %v596
        %v648 = vmul.f32 %v396, %v598
        %v649 = vmul.f32 %v397, %v600
        %v650 = vmul.f32 %v398, %v602
        %v651 = vmul.f32 %v399, %v604
        %v652 = vmul.f32 %v400, %v606
        %v653 = vmul.f32 %v401, %v608
        %v654 = vmul.f32 %v402, %v610
        %v655 = vmul.f32 %v403, %v612
        %v656 = vmul.f32 %v404, %v614
        %v657 = vmul.f32 %v405, %v616
        %v658 = vmul.f32 %v406, %v618
        %v659 = vmul.f32 %v407, %v620
        %v660 = vmul.f32 %v408, %v622
        %v661 = vmul.f32 %v409, %v624
        %v662 = vmul.f32 %v410, %v626
        %v663 = vld [vmem:[#allocation5] sm:$0xff]
        %v664 = vld [vmem:[#allocation5 + $0x8] sm:$0xff]
        %v665 = vld [vmem:[#allocation5 + $0x10] sm:$0xff]
        %v666 = vld [vmem:[#allocation5 + $0x18] sm:$0xff]
        %v667 = vld [vmem:[#allocation5 + $0x20] sm:$0xff]
        %v668 = vld [vmem:[#allocation5 + $0x28] sm:$0xff]
        %v669 = vld [vmem:[#allocation5 + $0x30] sm:$0xff]
        %v670 = vld [vmem:[#allocation5 + $0x38] sm:$0xff]
        %v671 = vld [vmem:[#allocation5 + $0x40] sm:$0xff]
        %v672 = vld [vmem:[#allocation5 + $0x48] sm:$0xff]
        %v673 = vld [vmem:[#allocation5 + $0x50] sm:$0xff]
        %v674 = vld [vmem:[#allocation5 + $0x58] sm:$0xff]
        %v675 = vld [vmem:[#allocation5 + $0x60] sm:$0xff]
        %v676 = vld [vmem:[#allocation5 + $0x68] sm:$0xff]
        %v677 = vld [vmem:[#allocation5 + $0x70] sm:$0xff]
        %v678 = vld [vmem:[#allocation5 + $0x78] sm:$0xff]
        %s679 = scalar_lea.vmem [#allocation5], 384
        %v680 = vld [vmem:[%s679] sm:$0xff]
        %v681 = vld [vmem:[%s679 + $0x8] sm:$0xff]
        %v682 = vld [vmem:[%s679 + $0x10] sm:$0xff]
        %v683 = vld [vmem:[%s679 + $0x18] sm:$0xff]
        %v684 = vld [vmem:[%s679 + $0x20] sm:$0xff]
        %v685 = vld [vmem:[%s679 + $0x28] sm:$0xff]
        %v686 = vld [vmem:[%s679 + $0x30] sm:$0xff]
        %v687 = vld [vmem:[%s679 + $0x38] sm:$0xff]
        %v688 = vld [vmem:[%s679 + $0x40] sm:$0xff]
        %v689 = vld [vmem:[%s679 + $0x48] sm:$0xff]
        %v690 = vld [vmem:[%s679 + $0x50] sm:$0xff]
        %v691 = vld [vmem:[%s679 + $0x58] sm:$0xff]
        %v692 = vld [vmem:[%s679 + $0x60] sm:$0xff]
        %v693 = vld [vmem:[%s679 + $0x68] sm:$0xff]
        %v694 = vld [vmem:[%s679 + $0x70] sm:$0xff]
        %v695 = vld [vmem:[%s679 + $0x78] sm:$0xff]
        %696 = vmatprep.subr.mxu0 0.0
        %697 = vmatpush1.msra.mxu0 %v680
        %698 = vmatprep.subr.mxu0 0.0
        %699 = vmatpush1.msra.mxu0 %v681
        %700 = vmatprep.subr.mxu0 0.0
        %701 = vmatpush1.msra.mxu0 %v682
        %702 = vmatprep.subr.mxu0 0.0
        %703 = vmatpush1.msra.mxu0 %v683
        %704 = vmatprep.subr.mxu0 0.0
        %705 = vmatpush1.msra.mxu0 %v684
        %706 = vmatprep.subr.mxu0 0.0
        %707 = vmatpush1.msra.mxu0 %v685
        %708 = vmatprep.subr.mxu0 0.0
        %709 = vmatpush1.msra.mxu0 %v686
        %710 = vmatprep.subr.mxu0 0.0
        %711 = vmatpush1.msra.mxu0 %v687
        %712 = vmatprep.subr.mxu0 0.0
        %713 = vmatpush1.msra.mxu0 %v688
        %714 = vmatprep.subr.mxu0 0.0
        %715 = vmatpush1.msra.mxu0 %v689
        %716 = vmatprep.subr.mxu0 0.0
        %717 = vmatpush1.msra.mxu0 %v690
        %718 = vmatprep.subr.mxu0 0.0
        %719 = vmatpush1.msra.mxu0 %v691
        %720 = vmatprep.subr.mxu0 0.0
        %721 = vmatpush1.msra.mxu0 %v692
        %722 = vmatprep.subr.mxu0 0.0
        %723 = vmatpush1.msra.mxu0 %v693
        %724 = vmatprep.subr.mxu0 0.0
        %725 = vmatpush1.msra.mxu0 %v694
        %726 = vmatprep.subr.mxu0 0.0
        %727 = vmatpush1.msra.mxu0 %v695
        %728 = vmatprep.subr.mxu0 0.0
        %729 = vmatpush1.msra.mxu0 0.0
        %730 = vmatprep.subr.mxu0 0.0
        %731 = vmatpush1.msra.mxu0 0.0
        %732 = vmatprep.subr.mxu0 0.0
        %733 = vmatpush1.msra.mxu0 0.0
        %734 = vmatprep.subr.mxu0 0.0
        %735 = vmatpush1.msra.mxu0 0.0
        %736 = vmatprep.subr.mxu0 0.0
        %737 = vmatpush1.msra.mxu0 0.0
        %738 = vmatprep.subr.mxu0 0.0
        %739 = vmatpush1.msra.mxu0 0.0
        %740 = vmatprep.subr.mxu0 0.0
        %741 = vmatpush1.msra.mxu0 0.0
        %742 = vmatprep.subr.mxu0 0.0
        %743 = vmatpush1.msra.mxu0 0.0
        %744 = vmatprep.subr.mxu0 0.0
        %745 = vmatpush1.msra.mxu0 0.0
        %746 = vmatprep.subr.mxu0 0.0
        %747 = vmatpush1.msra.mxu0 0.0
        %748 = vmatprep.subr.mxu0 0.0
        %749 = vmatpush1.msra.mxu0 0.0
        %750 = vmatprep.subr.mxu0 0.0
        %751 = vmatpush1.msra.mxu0 0.0
        %752 = vmatprep.subr.mxu0 0.0
        %753 = vmatpush1.msra.mxu0 0.0
        %754 = vmatprep.subr.mxu0 0.0
        %755 = vmatpush1.msra.mxu0 0.0
        %756 = vmatprep.subr.mxu0 0.0
        %757 = vmatpush1.msra.mxu0 0.0
        %758 = vmatprep.subr.mxu0 0.0
        %759 = vmatpush1.msra.mxu0 0.0
        %760 = vmatprep.mubr.f32.mxu0 0.0
        %761 = vmatmul.mubr.f32.gmra.mrb[0].mxu0 %v630
        %v762 = vpop.f32.mrb[0].mxu0
        %v763 = vadd.f32 0.0, %v762
        %v764 = vpop.f32.mrb[0].mxu0
        %765 = vmatprep.mubr.f32.mxu0 0.0
        %766 = vmatmul.mubr.f32.gmra.mrb[0].mxu0 %v631
        %v767 = vpop.f32.mrb[0].mxu0
        %v768 = vadd.f32 0.0, %v767
        %v769 = vpop.f32.mrb[0].mxu0
        %770 = vmatprep.mubr.f32.mxu0 0.0
        %771 = vmatmul.mubr.f32.gmra.mrb[0].mxu0 %v633
        %v772 = vpop.f32.mrb[0].mxu0
        %v773 = vadd.f32 0.0, %v772
        %v774 = vpop.f32.mrb[0].mxu0
        %775 = vmatprep.mubr.f32.mxu0 0.0
        %776 = vmatmul.mubr.f32.gmra.mrb[0].mxu0 %v634
        %v777 = vpop.f32.mrb[0].mxu0
        %v778 = vadd.f32 0.0, %v777
        %v779 = vpop.f32.mrb[0].mxu0
        %780 = vmatprep.mubr.f32.mxu0 0.0
        %781 = vmatmul.mubr.f32.gmra.mrb[0].mxu0 %v636
        %v782 = vpop.f32.mrb[0].mxu0
        %v783 = vadd.f32 0.0, %v782
        %v784 = vpop.f32.mrb[0].mxu0
        %785 = vmatprep.mubr.f32.mxu0 0.0
        %786 = vmatmul.mubr.f32.gmra.mrb[0].mxu0 %v637
        %v787 = vpop.f32.mrb[0].mxu0
        %v788 = vadd.f32 0.0, %v787
        %v789 = vpop.f32.mrb[0].mxu0
        %790 = vmatprep.mubr.f32.mxu0 0.0
        %791 = vmatmul.mubr.f32.gmra.mrb[0].mxu0 %v639
        %v792 = vpop.f32.mrb[0].mxu0
        %v793 = vadd.f32 0.0, %v792
        %v794 = vpop.f32.mrb[0].mxu0
        %795 = vmatprep.mubr.f32.mxu0 0.0
        %796 = vmatmul.mubr.f32.gmra.mrb[0].mxu0 %v640
        %v797 = vpop.f32.mrb[0].mxu0
        %v798 = vadd.f32 0.0, %v797
        %v799 = vpop.f32.mrb[0].mxu0
        %800 = vmatprep.mubr.f32.mxu0 0.0
        %801 = vmatmul.mubr.f32.gmra.mrb[0].mxu0 %v642
        %v802 = vpop.f32.mrb[0].mxu0
        %v803 = vadd.f32 0.0, %v802
        %v804 = vpop.f32.mrb[0].mxu0
        %805 = vmatprep.mubr.f32.mxu0 0.0
        %806 = vmatmul.mubr.f32.gmra.mrb[0].mxu0 %v643
        %v807 = vpop.f32.mrb[0].mxu0
        %v808 = vadd.f32 0.0, %v807
        %v809 = vpop.f32.mrb[0].mxu0
        %810 = vmatprep.mubr.f32.mxu0 0.0
        %811 = vmatmul.mubr.f32.gmra.mrb[0].mxu0 %v645
        %v812 = vpop.f32.mrb[0].mxu0
        %v813 = vadd.f32 0.0, %v812
        %v814 = vpop.f32.mrb[0].mxu0
        %815 = vmatprep.mubr.f32.mxu0 0.0
        %816 = vmatmul.mubr.f32.gmra.mrb[0].mxu0 %v646
        %v817 = vpop.f32.mrb[0].mxu0
        %v818 = vadd.f32 0.0, %v817
        %v819 = vpop.f32.mrb[0].mxu0
        %820 = vmatprep.mubr.f32.mxu0 0.0
        %821 = vmatmul.mubr.f32.gmra.mrb[0].mxu0 %v648
        %v822 = vpop.f32.mrb[0].mxu0
        %v823 = vadd.f32 0.0, %v822
        %v824 = vpop.f32.mrb[0].mxu0
        %825 = vmatprep.mubr.f32.mxu0 0.0
        %826 = vmatmul.mubr.f32.gmra.mrb[0].mxu0 %v649
        %v827 = vpop.f32.mrb[0].mxu0
        %v828 = vadd.f32 0.0, %v827
        %v829 = vpop.f32.mrb[0].mxu0
        %830 = vmatprep.mubr.f32.mxu0 0.0
        %831 = vmatmul.mubr.f32.gmra.mrb[0].mxu0 %v651
        %v832 = vpop.f32.mrb[0].mxu0
        %v833 = vadd.f32 0.0, %v832
        %v834 = vpop.f32.mrb[0].mxu0
        %835 = vmatprep.mubr.f32.mxu0 0.0
        %836 = vmatmul.mubr.f32.gmra.mrb[0].mxu0 %v652
        %v837 = vpop.f32.mrb[0].mxu0
        %v838 = vadd.f32 0.0, %v837
        %v839 = vpop.f32.mrb[0].mxu0
        %840 = vmatprep.mubr.f32.mxu0 0.0
        %841 = vmatmul.mubr.f32.gmra.mrb[0].mxu0 %v654
        %v842 = vpop.f32.mrb[0].mxu0
        %v843 = vadd.f32 0.0, %v842
        %v844 = vpop.f32.mrb[0].mxu0
        %845 = vmatprep.mubr.f32.mxu0 0.0
        %846 = vmatmul.mubr.f32.gmra.mrb[0].mxu0 %v655
        %v847 = vpop.f32.mrb[0].mxu0
        %v848 = vadd.f32 0.0, %v847
        %v849 = vpop.f32.mrb[0].mxu0
        %850 = vmatprep.mubr.f32.mxu0 0.0
        %851 = vmatmul.mubr.f32.gmra.mrb[0].mxu0 %v657
        %v852 = vpop.f32.mrb[0].mxu0
        %v853 = vadd.f32 0.0, %v852
        %v854 = vpop.f32.mrb[0].mxu0
        %855 = vmatprep.mubr.f32.mxu0 0.0
        %856 = vmatmul.mubr.f32.gmra.mrb[0].mxu0 %v658
        %v857 = vpop.f32.mrb[0].mxu0
        %v858 = vadd.f32 0.0, %v857
        %v859 = vpop.f32.mrb[0].mxu0
        %860 = vdwg.mxu0
        %861 = vmatprep.subr.mxu0 0.0
        %862 = vmatpush1.msra.mxu0 %v663
        %863 = vmatprep.subr.mxu0 0.0
        %864 = vmatpush1.msra.mxu0 %v664
        %865 = vmatprep.subr.mxu0 0.0
        %866 = vmatpush1.msra.mxu0 %v665
        %867 = vmatprep.subr.mxu0 0.0
        %868 = vmatpush1.msra.mxu0 %v666
        %869 = vmatprep.subr.mxu0 0.0
        %870 = vmatpush1.msra.mxu0 %v667
        %871 = vmatprep.subr.mxu0 0.0
        %872 = vmatpush1.msra.mxu0 %v668
        %873 = vmatprep.subr.mxu0 0.0
        %874 = vmatpush1.msra.mxu0 %v669
        %875 = vmatprep.subr.mxu0 0.0
        %876 = vmatpush1.msra.mxu0 %v670
        %877 = vmatprep.subr.mxu0 0.0
        %878 = vmatpush1.msra.mxu0 %v671
        %879 = vmatprep.subr.mxu0 0.0
        %880 = vmatpush1.msra.mxu0 %v672
        %881 = vmatprep.subr.mxu0 0.0
        %882 = vmatpush1.msra.mxu0 %v673
        %883 = vmatprep.subr.mxu0 0.0
        %884 = vmatpush1.msra.mxu0 %v674
        %885 = vmatprep.subr.mxu0 0.0
        %886 = vmatpush1.msra.mxu0 %v675
        %887 = vmatprep.subr.mxu0 0.0
        %888 = vmatpush1.msra.mxu0 %v676
        %889 = vmatprep.subr.mxu0 0.0
        %890 = vmatpush1.msra.mxu0 %v677
        %891 = vmatprep.subr.mxu0 0.0
        %892 = vmatpush1.msra.mxu0 %v678
        %893 = vmatprep.subr.mxu0 0.0
        %894 = vmatpush1.msra.mxu0 0.0
        %895 = vmatprep.subr.mxu0 0.0
        %896 = vmatpush1.msra.mxu0 0.0
        %897 = vmatprep.subr.mxu0 0.0
        %898 = vmatpush1.msra.mxu0 0.0
        %899 = vmatprep.subr.mxu0 0.0
        %900 = vmatpush1.msra.mxu0 0.0
        %901 = vmatprep.subr.mxu0 0.0
        %902 = vmatpush1.msra.mxu0 0.0
        %903 = vmatprep.subr.mxu0 0.0
        %904 = vmatpush1.msra.mxu0 0.0
        %905 = vmatprep.subr.mxu0 0.0
        %906 = vmatpush1.msra.mxu0 0.0
        %907 = vmatprep.subr.mxu0 0.0
        %908 = vmatpush1.msra.mxu0 0.0
        %909 = vmatprep.subr.mxu0 0.0
        %910 = vmatpush1.msra.mxu0 0.0
        %911 = vmatprep.subr.mxu0 0.0
        %912 = vmatpush1.msra.mxu0 0.0
        %913 = vmatprep.subr.mxu0 0.0
        %914 = vmatpush1.msra.mxu0 0.0
        %915 = vmatprep.subr.mxu0 0.0
        %916 = vmatpush1.msra.mxu0 0.0
        %917 = vmatprep.subr.mxu0 0.0
        %918 = vmatpush1.msra.mxu0 0.0
        %919 = vmatprep.subr.mxu0 0.0
        %920 = vmatpush1.msra.mxu0 0.0
        %921 = vmatprep.subr.mxu0 0.0
        %922 = vmatpush1.msra.mxu0 0.0
        %923 = vmatprep.subr.mxu0 0.0
        %924 = vmatpush1.msra.mxu0 0.0
        %925 = vmatprep.mubr.f32.mxu0 0.0
        %926 = vmatmul.mubr.f32.gmra.mrb[0].mxu0 %v627
        %v927 = vpop.f32.mrb[0].mxu0
        %v928 = vadd.f32 %v763, %v927
        %v929 = vpop.f32.mrb[0].mxu0
        %930 = vmatprep.mubr.f32.mxu0 0.0
        %931 = vmatmul.mubr.f32.gmra.mrb[0].mxu0 %v628
        %v932 = vpop.f32.mrb[0].mxu0
        %v933 = vadd.f32 %v768, %v932
        %v934 = vpop.f32.mrb[0].mxu0
        %935 = vmatprep.mubr.f32.mxu0 0.0
        %936 = vmatmul.mubr.f32.gmra.mrb[0].mxu0 %v630
        %v937 = vpop.f32.mrb[0].mxu0
        %v938 = vadd.f32 %v773, %v937
        %v939 = vpop.f32.mrb[0].mxu0
        %940 = vmatprep.mubr.f32.mxu0 0.0
        %941 = vmatmul.mubr.f32.gmra.mrb[0].mxu0 %v631
        %v942 = vpop.f32.mrb[0].mxu0
        %v943 = vadd.f32 %v778, %v942
        %v944 = vpop.f32.mrb[0].mxu0
        %945 = vmatprep.mubr.f32.mxu0 0.0
        %946 = vmatmul.mubr.f32.gmra.mrb[0].mxu0 %v633
        %v947 = vpop.f32.mrb[0].mxu0
        %v948 = vadd.f32 %v783, %v947
        %v949 = vpop.f32.mrb[0].mxu0
        %950 = vmatprep.mubr.f32.mxu0 0.0
        %951 = vmatmul.mubr.f32.gmra.mrb[0].mxu0 %v634
        %v952 = vpop.f32.mrb[0].mxu0
        %v953 = vadd.f32 %v788, %v952
        %v954 = vpop.f32.mrb[0].mxu0
        %955 = vmatprep.mubr.f32.mxu0 0.0
        %956 = vmatmul.mubr.f32.gmra.mrb[0].mxu0 %v636
        %v957 = vpop.f32.mrb[0].mxu0
        %v958 = vadd.f32 %v793, %v957
        %v959 = vpop.f32.mrb[0].mxu0
        %960 = vmatprep.mubr.f32.mxu0 0.0
        %961 = vmatmul.mubr.f32.gmra.mrb[0].mxu0 %v637
        %v962 = vpop.f32.mrb[0].mxu0
        %v963 = vadd.f32 %v798, %v962
        %v964 = vpop.f32.mrb[0].mxu0
        %965 = vmatprep.mubr.f32.mxu0 0.0
        %966 = vmatmul.mubr.f32.gmra.mrb[0].mxu0 %v639
        %v967 = vpop.f32.mrb[0].mxu0
        %v968 = vadd.f32 %v803, %v967
        %v969 = vpop.f32.mrb[0].mxu0
        %970 = vmatprep.mubr.f32.mxu0 0.0
        %971 = vmatmul.mubr.f32.gmra.mrb[0].mxu0 %v640
        %v972 = vpop.f32.mrb[0].mxu0
        %v973 = vadd.f32 %v808, %v972
        %v974 = vpop.f32.mrb[0].mxu0
        %975 = vmatprep.mubr.f32.mxu0 0.0
        %976 = vmatmul.mubr.f32.gmra.mrb[0].mxu0 %v642
        %v977 = vpop.f32.mrb[0].mxu0
        %v978 = vadd.f32 %v813, %v977
        %v979 = vpop.f32.mrb[0].mxu0
        %980 = vmatprep.mubr.f32.mxu0 0.0
        %981 = vmatmul.mubr.f32.gmra.mrb[0].mxu0 %v643
        %v982 = vpop.f32.mrb[0].mxu0
        %v983 = vadd.f32 %v818, %v982
        %v984 = vpop.f32.mrb[0].mxu0
        %985 = vmatprep.mubr.f32.mxu0 0.0
        %986 = vmatmul.mubr.f32.gmra.mrb[0].mxu0 %v645
        %v987 = vpop.f32.mrb[0].mxu0
        %v988 = vadd.f32 %v823, %v987
        %v989 = vpop.f32.mrb[0].mxu0
        %990 = vmatprep.mubr.f32.mxu0 0.0
        %991 = vmatmul.mubr.f32.gmra.mrb[0].mxu0 %v646
        %v992 = vpop.f32.mrb[0].mxu0
        %v993 = vadd.f32 %v828, %v992
        %v994 = vpop.f32.mrb[0].mxu0
        %995 = vmatprep.mubr.f32.mxu0 0.0
        %996 = vmatmul.mubr.f32.gmra.mrb[0].mxu0 %v648
        %v997 = vpop.f32.mrb[0].mxu0
        %v998 = vadd.f32 %v833, %v997
        %v999 = vpop.f32.mrb[0].mxu0
        %1000 = vmatprep.mubr.f32.mxu0 0.0
        %1001 = vmatmul.mubr.f32.gmra.mrb[0].mxu0 %v649
        %v1002 = vpop.f32.mrb[0].mxu0
        %v1003 = vadd.f32 %v838, %v1002
        %v1004 = vpop.f32.mrb[0].mxu0
        %1005 = vmatprep.mubr.f32.mxu0 0.0
        %1006 = vmatmul.mubr.f32.gmra.mrb[0].mxu0 %v651
        %v1007 = vpop.f32.mrb[0].mxu0
        %v1008 = vadd.f32 %v843, %v1007
        %v1009 = vpop.f32.mrb[0].mxu0
        %1010 = vmatprep.mubr.f32.mxu0 0.0
        %1011 = vmatmul.mubr.f32.gmra.mrb[0].mxu0 %v652
        %v1012 = vpop.f32.mrb[0].mxu0
        %v1013 = vadd.f32 %v848, %v1012
        %v1014 = vpop.f32.mrb[0].mxu0
        %1015 = vmatprep.mubr.f32.mxu0 0.0
        %1016 = vmatmul.mubr.f32.gmra.mrb[0].mxu0 %v654
        %v1017 = vpop.f32.mrb[0].mxu0
        %v1018 = vadd.f32 %v853, %v1017
        %v1019 = vpop.f32.mrb[0].mxu0
        %1020 = vmatprep.mubr.f32.mxu0 0.0
        %1021 = vmatmul.mubr.f32.gmra.mrb[0].mxu0 %v655
        %v1022 = vpop.f32.mrb[0].mxu0
        %v1023 = vadd.f32 %v858, %v1022
        %v1024 = vpop.f32.mrb[0].mxu0
        %1025 = vdwg.mxu0
        %s1026 = scalar_lea.vmem [#allocation5], 768
        %v1027 = vld [vmem:[%s1026] sm:$0xff]
        %v1028 = vld [vmem:[%s1026 + $0x8] sm:$0xff]
        %v1029 = vld [vmem:[%s1026 + $0x10] sm:$0xff]
        %v1030 = vld [vmem:[%s1026 + $0x18] sm:$0xff]
        %v1031 = vld [vmem:[%s1026 + $0x20] sm:$0xff]
        %v1032 = vld [vmem:[%s1026 + $0x28] sm:$0xff]
        %v1033 = vld [vmem:[%s1026 + $0x30] sm:$0xff]
        %v1034 = vld [vmem:[%s1026 + $0x38] sm:$0xff]
        %v1035 = vld [vmem:[%s1026 + $0x40] sm:$0xff]
        %v1036 = vld [vmem:[%s1026 + $0x48] sm:$0xff]
        %v1037 = vld [vmem:[%s1026 + $0x50] sm:$0xff]
        %v1038 = vld [vmem:[%s1026 + $0x58] sm:$0xff]
        %v1039 = vld [vmem:[%s1026 + $0x60] sm:$0xff]
        %v1040 = vld [vmem:[%s1026 + $0x68] sm:$0xff]
        %v1041 = vld [vmem:[%s1026 + $0x70] sm:$0xff]
        %v1042 = vld [vmem:[%s1026 + $0x78] sm:$0xff]
        %1043 = vmatprep.subr.mxu0 0.0
        %1044 = vmatpush1.msra.mxu0 %v1027
        %1045 = vmatprep.subr.mxu0 0.0
        %1046 = vmatpush1.msra.mxu0 %v1028
        %1047 = vmatprep.subr.mxu0 0.0
        %1048 = vmatpush1.msra.mxu0 %v1029
        %1049 = vmatprep.subr.mxu0 0.0
        %1050 = vmatpush1.msra.mxu0 %v1030
        %1051 = vmatprep.subr.mxu0 0.0
        %1052 = vmatpush1.msra.mxu0 %v1031
        %1053 = vmatprep.subr.mxu0 0.0
        %1054 = vmatpush1.msra.mxu0 %v1032
        %1055 = vmatprep.subr.mxu0 0.0
        %1056 = vmatpush1.msra.mxu0 %v1033
        %1057 = vmatprep.subr.mxu0 0.0
        %1058 = vmatpush1.msra.mxu0 %v1034
        %1059 = vmatprep.subr.mxu0 0.0
        %1060 = vmatpush1.msra.mxu0 %v1035
        %1061 = vmatprep.subr.mxu0 0.0
        %1062 = vmatpush1.msra.mxu0 %v1036
        %1063 = vmatprep.subr.mxu0 0.0
        %1064 = vmatpush1.msra.mxu0 %v1037
        %1065 = vmatprep.subr.mxu0 0.0
        %1066 = vmatpush1.msra.mxu0 %v1038
        %1067 = vmatprep.subr.mxu0 0.0
        %1068 = vmatpush1.msra.mxu0 %v1039
        %1069 = vmatprep.subr.mxu0 0.0
        %1070 = vmatpush1.msra.mxu0 %v1040
        %1071 = vmatprep.subr.mxu0 0.0
        %1072 = vmatpush1.msra.mxu0 %v1041
        %1073 = vmatprep.subr.mxu0 0.0
        %1074 = vmatpush1.msra.mxu0 %v1042
        %1075 = vmatprep.subr.mxu0 0.0
        %1076 = vmatpush1.msra.mxu0 0.0
        %1077 = vmatprep.subr.mxu0 0.0
        %1078 = vmatpush1.msra.mxu0 0.0
        %1079 = vmatprep.subr.mxu0 0.0
        %1080 = vmatpush1.msra.mxu0 0.0
        %1081 = vmatprep.subr.mxu0 0.0
        %1082 = vmatpush1.msra.mxu0 0.0
        %1083 = vmatprep.subr.mxu0 0.0
        %1084 = vmatpush1.msra.mxu0 0.0
        %1085 = vmatprep.subr.mxu0 0.0
        %1086 = vmatpush1.msra.mxu0 0.0
        %1087 = vmatprep.subr.mxu0 0.0
        %1088 = vmatpush1.msra.mxu0 0.0
        %1089 = vmatprep.subr.mxu0 0.0
        %1090 = vmatpush1.msra.mxu0 0.0
        %1091 = vmatprep.subr.mxu0 0.0
        %1092 = vmatpush1.msra.mxu0 0.0
        %1093 = vmatprep.subr.mxu0 0.0
        %1094 = vmatpush1.msra.mxu0 0.0
        %1095 = vmatprep.subr.mxu0 0.0
        %1096 = vmatpush1.msra.mxu0 0.0
        %1097 = vmatprep.subr.mxu0 0.0
        %1098 = vmatpush1.msra.mxu0 0.0
        %1099 = vmatprep.subr.mxu0 0.0
        %1100 = vmatpush1.msra.mxu0 0.0
        %1101 = vmatprep.subr.mxu0 0.0
        %1102 = vmatpush1.msra.mxu0 0.0
        %1103 = vmatprep.subr.mxu0 0.0
        %1104 = vmatpush1.msra.mxu0 0.0
        %1105 = vmatprep.subr.mxu0 0.0
        %1106 = vmatpush1.msra.mxu0 0.0
        %1107 = vmatprep.mubr.f32.mxu0 0.0
        %1108 = vmatmul.mubr.f32.gmra.mrb[0].mxu0 %v633
        %v1109 = vpop.f32.mrb[0].mxu0
        %v1110 = vadd.f32 0.0, %v1109
        %v1111 = vpop.f32.mrb[0].mxu0
        %1112 = vmatprep.mubr.f32.mxu0 0.0
        %1113 = vmatmul.mubr.f32.gmra.mrb[0].mxu0 %v634
        %v1114 = vpop.f32.mrb[0].mxu0
        %v1115 = vadd.f32 0.0, %v1114
        %v1116 = vpop.f32.mrb[0].mxu0
        %1117 = vmatprep.mubr.f32.mxu0 0.0
        %1118 = vmatmul.mubr.f32.gmra.mrb[0].mxu0 %v636
        %v1119 = vpop.f32.mrb[0].mxu0
        %v1120 = vadd.f32 0.0, %v1119
        %v1121 = vpop.f32.mrb[0].mxu0
        %1122 = vmatprep.mubr.f32.mxu0 0.0
        %1123 = vmatmul.mubr.f32.gmra.mrb[0].mxu0 %v637
        %v1124 = vpop.f32.mrb[0].mxu0
        %v1125 = vadd.f32 0.0, %v1124
        %v1126 = vpop.f32.mrb[0].mxu0
        %1127 = vmatprep.mubr.f32.mxu0 0.0
        %1128 = vmatmul.mubr.f32.gmra.mrb[0].mxu0 %v639
        %v1129 = vpop.f32.mrb[0].mxu0
        %v1130 = vadd.f32 0.0, %v1129
        %v1131 = vpop.f32.mrb[0].mxu0
        %1132 = vmatprep.mubr.f32.mxu0 0.0
        %1133 = vmatmul.mubr.f32.gmra.mrb[0].mxu0 %v640
        %v1134 = vpop.f32.mrb[0].mxu0
        %v1135 = vadd.f32 0.0, %v1134
        %v1136 = vpop.f32.mrb[0].mxu0
        %1137 = vmatprep.mubr.f32.mxu0 0.0
        %1138 = vmatmul.mubr.f32.gmra.mrb[0].mxu0 %v642
        %v1139 = vpop.f32.mrb[0].mxu0
        %v1140 = vadd.f32 0.0, %v1139
        %v1141 = vpop.f32.mrb[0].mxu0
        %1142 = vmatprep.mubr.f32.mxu0 0.0
        %1143 = vmatmul.mubr.f32.gmra.mrb[0].mxu0 %v643
        %v1144 = vpop.f32.mrb[0].mxu0
        %v1145 = vadd.f32 0.0, %v1144
        %v1146 = vpop.f32.mrb[0].mxu0
        %1147 = vmatprep.mubr.f32.mxu0 0.0
        %1148 = vmatmul.mubr.f32.gmra.mrb[0].mxu0 %v645
        %v1149 = vpop.f32.mrb[0].mxu0
        %v1150 = vadd.f32 0.0, %v1149
        %v1151 = vpop.f32.mrb[0].mxu0
        %1152 = vmatprep.mubr.f32.mxu0 0.0
        %1153 = vmatmul.mubr.f32.gmra.mrb[0].mxu0 %v646
        %v1154 = vpop.f32.mrb[0].mxu0
        %v1155 = vadd.f32 0.0, %v1154
        %v1156 = vpop.f32.mrb[0].mxu0
        %1157 = vmatprep.mubr.f32.mxu0 0.0
        %1158 = vmatmul.mubr.f32.gmra.mrb[0].mxu0 %v648
        %v1159 = vpop.f32.mrb[0].mxu0
        %v1160 = vadd.f32 0.0, %v1159
        %v1161 = vpop.f32.mrb[0].mxu0
        %1162 = vmatprep.mubr.f32.mxu0 0.0
        %1163 = vmatmul.mubr.f32.gmra.mrb[0].mxu0 %v649
        %v1164 = vpop.f32.mrb[0].mxu0
        %v1165 = vadd.f32 0.0, %v1164
        %v1166 = vpop.f32.mrb[0].mxu0
        %1167 = vmatprep.mubr.f32.mxu0 0.0
        %1168 = vmatmul.mubr.f32.gmra.mrb[0].mxu0 %v651
        %v1169 = vpop.f32.mrb[0].mxu0
        %v1170 = vadd.f32 0.0, %v1169
        %v1171 = vpop.f32.mrb[0].mxu0
        %1172 = vmatprep.mubr.f32.mxu0 0.0
        %1173 = vmatmul.mubr.f32.gmra.mrb[0].mxu0 %v652
        %v1174 = vpop.f32.mrb[0].mxu0
        %v1175 = vadd.f32 0.0, %v1174
        %v1176 = vpop.f32.mrb[0].mxu0
        %1177 = vmatprep.mubr.f32.mxu0 0.0
        %1178 = vmatmul.mubr.f32.gmra.mrb[0].mxu0 %v654
        %v1179 = vpop.f32.mrb[0].mxu0
        %v1180 = vadd.f32 0.0, %v1179
        %v1181 = vpop.f32.mrb[0].mxu0
        %1182 = vmatprep.mubr.f32.mxu0 0.0
        %1183 = vmatmul.mubr.f32.gmra.mrb[0].mxu0 %v655
        %v1184 = vpop.f32.mrb[0].mxu0
        %v1185 = vadd.f32 0.0, %v1184
        %v1186 = vpop.f32.mrb[0].mxu0
        %1187 = vmatprep.mubr.f32.mxu0 0.0
        %1188 = vmatmul.mubr.f32.gmra.mrb[0].mxu0 %v657
        %v1189 = vpop.f32.mrb[0].mxu0
        %v1190 = vadd.f32 0.0, %v1189
        %v1191 = vpop.f32.mrb[0].mxu0
        %1192 = vmatprep.mubr.f32.mxu0 0.0
        %1193 = vmatmul.mubr.f32.gmra.mrb[0].mxu0 %v658
        %v1194 = vpop.f32.mrb[0].mxu0
        %v1195 = vadd.f32 0.0, %v1194
        %v1196 = vpop.f32.mrb[0].mxu0
        %1197 = vmatprep.mubr.f32.mxu0 0.0
        %1198 = vmatmul.mubr.f32.gmra.mrb[0].mxu0 %v660
        %v1199 = vpop.f32.mrb[0].mxu0
        %v1200 = vadd.f32 0.0, %v1199
        %v1201 = vpop.f32.mrb[0].mxu0
        %1202 = vmatprep.mubr.f32.mxu0 0.0
        %1203 = vmatmul.mubr.f32.gmra.mrb[0].mxu0 %v661
        %v1204 = vpop.f32.mrb[0].mxu0
        %v1205 = vadd.f32 0.0, %v1204
        %v1206 = vpop.f32.mrb[0].mxu0
        %1207 = vdwg.mxu0
        %v1208 = vadd.f32 %v928, %v1110
        %v1209 = vadd.f32 %v933, %v1115
        %v1210 = vadd.f32 %v938, %v1120
        %v1211 = vadd.f32 %v943, %v1125
        %v1212 = vadd.f32 %v948, %v1130
        %v1213 = vadd.f32 %v953, %v1135
        %v1214 = vadd.f32 %v958, %v1140
        %v1215 = vadd.f32 %v963, %v1145
        %v1216 = vadd.f32 %v968, %v1150
        %v1217 = vadd.f32 %v973, %v1155
        %v1218 = vadd.f32 %v978, %v1160
        %v1219 = vadd.f32 %v983, %v1165
        %v1220 = vadd.f32 %v988, %v1170
        %v1221 = vadd.f32 %v993, %v1175
        %v1222 = vadd.f32 %v998, %v1180
        %v1223 = vadd.f32 %v1003, %v1185
        %v1224 = vadd.f32 %v1008, %v1190
        %v1225 = vadd.f32 %v1013, %v1195
        %v1226 = vadd.f32 %v1018, %v1200
        %v1227 = vadd.f32 %v1023, %v1205
        %vm1264 = vcmask 1046528
        %v1265 = vrot.slane %v627, 1
        %v1266 = vrot.slane %v628, 1
        %v1267 = vsel %vm1264, %v1265, %v1266
        %v1268 = vrot.slane %v629, 1
        %v1269 = vsel %vm1264, %v1266, %v1268
        %v1270 = vrot.slane %v630, 1
        %v1271 = vrot.slane %v631, 1
        %v1272 = vsel %vm1264, %v1270, %v1271
        %v1273 = vrot.slane %v632, 1
        %v1274 = vsel %vm1264, %v1271, %v1273
        %v1275 = vrot.slane %v633, 1
        %v1276 = vrot.slane %v634, 1
        %v1277 = vsel %vm1264, %v1275, %v1276
        %v1278 = vrot.slane %v635, 1
        %v1279 = vsel %vm1264, %v1276, %v1278
        %v1280 = vrot.slane %v636, 1
        %v1281 = vrot.slane %v637, 1
        %v1282 = vsel %vm1264, %v1280, %v1281
        %v1283 = vrot.slane %v638, 1
        %v1284 = vsel %vm1264, %v1281, %v1283
        %v1285 = vrot.slane %v639, 1
        %v1286 = vrot.slane %v640, 1
        %v1287 = vsel %vm1264, %v1285, %v1286
        %v1288 = vrot.slane %v641, 1
        %v1289 = vsel %vm1264, %v1286, %v1288
        %v1290 = vrot.slane %v642, 1
        %v1291 = vrot.slane %v643, 1
        %v1292 = vsel %vm1264, %v1290, %v1291
        %v1293 = vrot.slane %v644, 1
        %v1294 = vsel %vm1264, %v1291, %v1293
        %v1295 = vrot.slane %v645, 1
        %v1296 = vrot.slane %v646, 1
        %v1297 = vsel %vm1264, %v1295, %v1296
        %v1298 = vrot.slane %v647, 1
        %v1299 = vsel %vm1264, %v1296, %v1298
        %v1300 = vrot.slane %v648, 1
        %v1301 = vrot.slane %v649, 1
        %v1302 = vsel %vm1264, %v1300, %v1301
        %v1303 = vrot.slane %v650, 1
        %v1304 = vsel %vm1264, %v1301, %v1303
        %v1305 = vrot.slane %v651, 1
        %v1306 = vrot.slane %v652, 1
        %v1307 = vsel %vm1264, %v1305, %v1306
        %v1308 = vrot.slane %v653, 1
        %v1309 = vsel %vm1264, %v1306, %v1308
        %v1310 = vrot.slane %v654, 1
        %v1311 = vrot.slane %v655, 1
        %v1312 = vsel %vm1264, %v1310, %v1311
        %v1313 = vrot.slane %v656, 1
        %v1314 = vsel %vm1264, %v1311, %v1313
        %v1315 = vrot.slane %v657, 1
        %v1316 = vrot.slane %v658, 1
        %v1317 = vsel %vm1264, %v1315, %v1316
        %v1318 = vrot.slane %v659, 1
        %v1319 = vsel %vm1264, %v1316, %v1318
        %v1320 = vrot.slane %v660, 1
        %v1321 = vrot.slane %v661, 1
        %v1322 = vsel %vm1264, %v1320, %v1321
        %v1323 = vrot.slane %v662, 1
        %v1324 = vsel %vm1264, %v1321, %v1323
        %s1349 = scalar_lea.vmem [#allocation5], 128
        %v1350 = vld [vmem:[%s1349] sm:$0xff]
        %v1351 = vld [vmem:[%s1349 + $0x8] sm:$0xff]
        %v1352 = vld [vmem:[%s1349 + $0x10] sm:$0xff]
        %v1353 = vld [vmem:[%s1349 + $0x18] sm:$0xff]
        %v1354 = vld [vmem:[%s1349 + $0x20] sm:$0xff]
        %v1355 = vld [vmem:[%s1349 + $0x28] sm:$0xff]
        %v1356 = vld [vmem:[%s1349 + $0x30] sm:$0xff]
        %v1357 = vld [vmem:[%s1349 + $0x38] sm:$0xff]
        %v1358 = vld [vmem:[%s1349 + $0x40] sm:$0xff]
        %v1359 = vld [vmem:[%s1349 + $0x48] sm:$0xff]
        %v1360 = vld [vmem:[%s1349 + $0x50] sm:$0xff]
        %v1361 = vld [vmem:[%s1349 + $0x58] sm:$0xff]
        %v1362 = vld [vmem:[%s1349 + $0x60] sm:$0xff]
        %v1363 = vld [vmem:[%s1349 + $0x68] sm:$0xff]
        %v1364 = vld [vmem:[%s1349 + $0x70] sm:$0xff]
        %v1365 = vld [vmem:[%s1349 + $0x78] sm:$0xff]
        %1366 = vmatprep.subr.mxu0 0.0
        %1367 = vmatpush1.msra.mxu0 %v1350
        %1368 = vmatprep.subr.mxu0 0.0
        %1369 = vmatpush1.msra.mxu0 %v1351
        %1370 = vmatprep.subr.mxu0 0.0
        %1371 = vmatpush1.msra.mxu0 %v1352
        %1372 = vmatprep.subr.mxu0 0.0
        %1373 = vmatpush1.msra.mxu0 %v1353
        %1374 = vmatprep.subr.mxu0 0.0
        %1375 = vmatpush1.msra.mxu0 %v1354
        %1376 = vmatprep.subr.mxu0 0.0
        %1377 = vmatpush1.msra.mxu0 %v1355
        %1378 = vmatprep.subr.mxu0 0.0
        %1379 = vmatpush1.msra.mxu0 %v1356
        %1380 = vmatprep.subr.mxu0 0.0
        %1381 = vmatpush1.msra.mxu0 %v1357
        %1382 = vmatprep.subr.mxu0 0.0
        %1383 = vmatpush1.msra.mxu0 %v1358
        %1384 = vmatprep.subr.mxu0 0.0
        %1385 = vmatpush1.msra.mxu0 %v1359
        %1386 = vmatprep.subr.mxu0 0.0
        %1387 = vmatpush1.msra.mxu0 %v1360
        %1388 = vmatprep.subr.mxu0 0.0
        %1389 = vmatpush1.msra.mxu0 %v1361
        %1390 = vmatprep.subr.mxu0 0.0
        %1391 = vmatpush1.msra.mxu0 %v1362
        %1392 = vmatprep.subr.mxu0 0.0
        %1393 = vmatpush1.msra.mxu0 %v1363
        %1394 = vmatprep.subr.mxu0 0.0
        %1395 = vmatpush1.msra.mxu0 %v1364
        %1396 = vmatprep.subr.mxu0 0.0
        %1397 = vmatpush1.msra.mxu0 %v1365
        %1398 = vmatprep.subr.mxu0 0.0
        %1399 = vmatpush1.msra.mxu0 0.0
        %1400 = vmatprep.subr.mxu0 0.0
        %1401 = vmatpush1.msra.mxu0 0.0
        %1402 = vmatprep.subr.mxu0 0.0
        %1403 = vmatpush1.msra.mxu0 0.0
        %1404 = vmatprep.subr.mxu0 0.0
        %1405 = vmatpush1.msra.mxu0 0.0
        %1406 = vmatprep.subr.mxu0 0.0
        %1407 = vmatpush1.msra.mxu0 0.0
        %1408 = vmatprep.subr.mxu0 0.0
        %1409 = vmatpush1.msra.mxu0 0.0
        %1410 = vmatprep.subr.mxu0 0.0
        %1411 = vmatpush1.msra.mxu0 0.0
        %1412 = vmatprep.subr.mxu0 0.0
        %1413 = vmatpush1.msra.mxu0 0.0
        %1414 = vmatprep.subr.mxu0 0.0
        %1415 = vmatpush1.msra.mxu0 0.0
        %1416 = vmatprep.subr.mxu0 0.0
        %1417 = vmatpush1.msra.mxu0 0.0
        %1418 = vmatprep.subr.mxu0 0.0
        %1419 = vmatpush1.msra.mxu0 0.0
        %1420 = vmatprep.subr.mxu0 0.0
        %1421 = vmatpush1.msra.mxu0 0.0
        %1422 = vmatprep.subr.mxu0 0.0
        %1423 = vmatpush1.msra.mxu0 0.0
        %1424 = vmatprep.subr.mxu0 0.0
        %1425 = vmatpush1.msra.mxu0 0.0
        %1426 = vmatprep.subr.mxu0 0.0
        %1427 = vmatpush1.msra.mxu0 0.0
        %1428 = vmatprep.subr.mxu0 0.0
        %1429 = vmatpush1.msra.mxu0 0.0
        %1430 = vmatprep.mubr.f32.mxu0 0.0
        %1431 = vmatmul.mubr.f32.gmra.mrb[0].mxu0 %v1267
        %v1432 = vpop.f32.mrb[0].mxu0
        %v1433 = vadd.f32 0.0, %v1432
        %v1434 = vpop.f32.mrb[0].mxu0
        %1435 = vmatprep.mubr.f32.mxu0 0.0
        %1436 = vmatmul.mubr.f32.gmra.mrb[0].mxu0 %v1269
        %v1437 = vpop.f32.mrb[0].mxu0
        %v1438 = vadd.f32 0.0, %v1437
        %v1439 = vpop.f32.mrb[0].mxu0
        %1440 = vmatprep.mubr.f32.mxu0 0.0
        %1441 = vmatmul.mubr.f32.gmra.mrb[0].mxu0 %v1272
        %v1442 = vpop.f32.mrb[0].mxu0
        %v1443 = vadd.f32 0.0, %v1442
        %v1444 = vpop.f32.mrb[0].mxu0
        %1445 = vmatprep.mubr.f32.mxu0 0.0
        %1446 = vmatmul.mubr.f32.gmra.mrb[0].mxu0 %v1274
        %v1447 = vpop.f32.mrb[0].mxu0
        %v1448 = vadd.f32 0.0, %v1447
        %v1449 = vpop.f32.mrb[0].mxu0
        %1450 = vmatprep.mubr.f32.mxu0 0.0
        %1451 = vmatmul.mubr.f32.gmra.mrb[0].mxu0 %v1277
        %v1452 = vpop.f32.mrb[0].mxu0
        %v1453 = vadd.f32 0.0, %v1452
        %v1454 = vpop.f32.mrb[0].mxu0
        %1455 = vmatprep.mubr.f32.mxu0 0.0
        %1456 = vmatmul.mubr.f32.gmra.mrb[0].mxu0 %v1279
        %v1457 = vpop.f32.mrb[0].mxu0
        %v1458 = vadd.f32 0.0, %v1457
        %v1459 = vpop.f32.mrb[0].mxu0
        %1460 = vmatprep.mubr.f32.mxu0 0.0
        %1461 = vmatmul.mubr.f32.gmra.mrb[0].mxu0 %v1282
        %v1462 = vpop.f32.mrb[0].mxu0
        %v1463 = vadd.f32 0.0, %v1462
        %v1464 = vpop.f32.mrb[0].mxu0
        %1465 = vmatprep.mubr.f32.mxu0 0.0
        %1466 = vmatmul.mubr.f32.gmra.mrb[0].mxu0 %v1284
        %v1467 = vpop.f32.mrb[0].mxu0
        %v1468 = vadd.f32 0.0, %v1467
        %v1469 = vpop.f32.mrb[0].mxu0
        %1470 = vmatprep.mubr.f32.mxu0 0.0
        %1471 = vmatmul.mubr.f32.gmra.mrb[0].mxu0 %v1287
        %v1472 = vpop.f32.mrb[0].mxu0
        %v1473 = vadd.f32 0.0, %v1472
        %v1474 = vpop.f32.mrb[0].mxu0
        %1475 = vmatprep.mubr.f32.mxu0 0.0
        %1476 = vmatmul.mubr.f32.gmra.mrb[0].mxu0 %v1289
        %v1477 = vpop.f32.mrb[0].mxu0
        %v1478 = vadd.f32 0.0, %v1477
        %v1479 = vpop.f32.mrb[0].mxu0
        %1480 = vmatprep.mubr.f32.mxu0 0.0
        %1481 = vmatmul.mubr.f32.gmra.mrb[0].mxu0 %v1292
        %v1482 = vpop.f32.mrb[0].mxu0
        %v1483 = vadd.f32 0.0, %v1482
        %v1484 = vpop.f32.mrb[0].mxu0
        %1485 = vmatprep.mubr.f32.mxu0 0.0
        %1486 = vmatmul.mubr.f32.gmra.mrb[0].mxu0 %v1294
        %v1487 = vpop.f32.mrb[0].mxu0
        %v1488 = vadd.f32 0.0, %v1487
        %v1489 = vpop.f32.mrb[0].mxu0
        %1490 = vmatprep.mubr.f32.mxu0 0.0
        %1491 = vmatmul.mubr.f32.gmra.mrb[0].mxu0 %v1297
        %v1492 = vpop.f32.mrb[0].mxu0
        %v1493 = vadd.f32 0.0, %v1492
        %v1494 = vpop.f32.mrb[0].mxu0
        %1495 = vmatprep.mubr.f32.mxu0 0.0
        %1496 = vmatmul.mubr.f32.gmra.mrb[0].mxu0 %v1299
        %v1497 = vpop.f32.mrb[0].mxu0
        %v1498 = vadd.f32 0.0, %v1497
        %v1499 = vpop.f32.mrb[0].mxu0
        %1500 = vmatprep.mubr.f32.mxu0 0.0
        %1501 = vmatmul.mubr.f32.gmra.mrb[0].mxu0 %v1302
        %v1502 = vpop.f32.mrb[0].mxu0
        %v1503 = vadd.f32 0.0, %v1502
        %v1504 = vpop.f32.mrb[0].mxu0
        %1505 = vmatprep.mubr.f32.mxu0 0.0
        %1506 = vmatmul.mubr.f32.gmra.mrb[0].mxu0 %v1304
        %v1507 = vpop.f32.mrb[0].mxu0
        %v1508 = vadd.f32 0.0, %v1507
        %v1509 = vpop.f32.mrb[0].mxu0
        %1510 = vmatprep.mubr.f32.mxu0 0.0
        %1511 = vmatmul.mubr.f32.gmra.mrb[0].mxu0 %v1307
        %v1512 = vpop.f32.mrb[0].mxu0
        %v1513 = vadd.f32 0.0, %v1512
        %v1514 = vpop.f32.mrb[0].mxu0
        %1515 = vmatprep.mubr.f32.mxu0 0.0
        %1516 = vmatmul.mubr.f32.gmra.mrb[0].mxu0 %v1309
        %v1517 = vpop.f32.mrb[0].mxu0
        %v1518 = vadd.f32 0.0, %v1517
        %v1519 = vpop.f32.mrb[0].mxu0
        %1520 = vmatprep.mubr.f32.mxu0 0.0
        %1521 = vmatmul.mubr.f32.gmra.mrb[0].mxu0 %v1312
        %v1522 = vpop.f32.mrb[0].mxu0
        %v1523 = vadd.f32 0.0, %v1522
        %v1524 = vpop.f32.mrb[0].mxu0
        %1525 = vmatprep.mubr.f32.mxu0 0.0
        %1526 = vmatmul.mubr.f32.gmra.mrb[0].mxu0 %v1314
        %v1527 = vpop.f32.mrb[0].mxu0
        %v1528 = vadd.f32 0.0, %v1527
        %v1529 = vpop.f32.mrb[0].mxu0
        %1530 = vdwg.mxu0
        %v1531 = vadd.f32 %v1208, %v1433
        %v1532 = vadd.f32 %v1209, %v1438
        %v1533 = vadd.f32 %v1210, %v1443
        %v1534 = vadd.f32 %v1211, %v1448
        %v1535 = vadd.f32 %v1212, %v1453
        %v1536 = vadd.f32 %v1213, %v1458
        %v1537 = vadd.f32 %v1214, %v1463
        %v1538 = vadd.f32 %v1215, %v1468
        %v1539 = vadd.f32 %v1216, %v1473
        %v1540 = vadd.f32 %v1217, %v1478
        %v1541 = vadd.f32 %v1218, %v1483
        %v1542 = vadd.f32 %v1219, %v1488
        %v1543 = vadd.f32 %v1220, %v1493
        %v1544 = vadd.f32 %v1221, %v1498
        %v1545 = vadd.f32 %v1222, %v1503
        %v1546 = vadd.f32 %v1223, %v1508
        %v1547 = vadd.f32 %v1224, %v1513
        %v1548 = vadd.f32 %v1225, %v1518
        %v1549 = vadd.f32 %v1226, %v1523
        %v1550 = vadd.f32 %v1227, %v1528
        %s1551 = scalar_lea.vmem [#allocation5], 512
        %v1552 = vld [vmem:[%s1551] sm:$0xff]
        %v1553 = vld [vmem:[%s1551 + $0x8] sm:$0xff]
        %v1554 = vld [vmem:[%s1551 + $0x10] sm:$0xff]
        %v1555 = vld [vmem:[%s1551 + $0x18] sm:$0xff]
        %v1556 = vld [vmem:[%s1551 + $0x20] sm:$0xff]
        %v1557 = vld [vmem:[%s1551 + $0x28] sm:$0xff]
        %v1558 = vld [vmem:[%s1551 + $0x30] sm:$0xff]
        %v1559 = vld [vmem:[%s1551 + $0x38] sm:$0xff]
        %v1560 = vld [vmem:[%s1551 + $0x40] sm:$0xff]
        %v1561 = vld [vmem:[%s1551 + $0x48] sm:$0xff]
        %v1562 = vld [vmem:[%s1551 + $0x50] sm:$0xff]
        %v1563 = vld [vmem:[%s1551 + $0x58] sm:$0xff]
        %v1564 = vld [vmem:[%s1551 + $0x60] sm:$0xff]
        %v1565 = vld [vmem:[%s1551 + $0x68] sm:$0xff]
        %v1566 = vld [vmem:[%s1551 + $0x70] sm:$0xff]
        %v1567 = vld [vmem:[%s1551 + $0x78] sm:$0xff]
        %1568 = vmatprep.subr.mxu0 0.0
        %1569 = vmatpush1.msra.mxu0 %v1552
        %1570 = vmatprep.subr.mxu0 0.0
        %1571 = vmatpush1.msra.mxu0 %v1553
        %1572 = vmatprep.subr.mxu0 0.0
        %1573 = vmatpush1.msra.mxu0 %v1554
        %1574 = vmatprep.subr.mxu0 0.0
        %1575 = vmatpush1.msra.mxu0 %v1555
        %1576 = vmatprep.subr.mxu0 0.0
        %1577 = vmatpush1.msra.mxu0 %v1556
        %1578 = vmatprep.subr.mxu0 0.0
        %1579 = vmatpush1.msra.mxu0 %v1557
        %1580 = vmatprep.subr.mxu0 0.0
        %1581 = vmatpush1.msra.mxu0 %v1558
        %1582 = vmatprep.subr.mxu0 0.0
        %1583 = vmatpush1.msra.mxu0 %v1559
        %1584 = vmatprep.subr.mxu0 0.0
        %1585 = vmatpush1.msra.mxu0 %v1560
        %1586 = vmatprep.subr.mxu0 0.0
        %1587 = vmatpush1.msra.mxu0 %v1561
        %1588 = vmatprep.subr.mxu0 0.0
        %1589 = vmatpush1.msra.mxu0 %v1562
        %1590 = vmatprep.subr.mxu0 0.0
        %1591 = vmatpush1.msra.mxu0 %v1563
        %1592 = vmatprep.subr.mxu0 0.0
        %1593 = vmatpush1.msra.mxu0 %v1564
        %1594 = vmatprep.subr.mxu0 0.0
        %1595 = vmatpush1.msra.mxu0 %v1565
        %1596 = vmatprep.subr.mxu0 0.0
        %1597 = vmatpush1.msra.mxu0 %v1566
        %1598 = vmatprep.subr.mxu0 0.0
        %1599 = vmatpush1.msra.mxu0 %v1567
        %1600 = vmatprep.subr.mxu0 0.0
        %1601 = vmatpush1.msra.mxu0 0.0
        %1602 = vmatprep.subr.mxu0 0.0
        %1603 = vmatpush1.msra.mxu0 0.0
        %1604 = vmatprep.subr.mxu0 0.0
        %1605 = vmatpush1.msra.mxu0 0.0
        %1606 = vmatprep.subr.mxu0 0.0
        %1607 = vmatpush1.msra.mxu0 0.0
        %1608 = vmatprep.subr.mxu0 0.0
        %1609 = vmatpush1.msra.mxu0 0.0
        %1610 = vmatprep.subr.mxu0 0.0
        %1611 = vmatpush1.msra.mxu0 0.0
        %1612 = vmatprep.subr.mxu0 0.0
        %1613 = vmatpush1.msra.mxu0 0.0
        %1614 = vmatprep.subr.mxu0 0.0
        %1615 = vmatpush1.msra.mxu0 0.0
        %1616 = vmatprep.subr.mxu0 0.0
        %1617 = vmatpush1.msra.mxu0 0.0
        %1618 = vmatprep.subr.mxu0 0.0
        %1619 = vmatpush1.msra.mxu0 0.0
        %1620 = vmatprep.subr.mxu0 0.0
        %1621 = vmatpush1.msra.mxu0 0.0
        %1622 = vmatprep.subr.mxu0 0.0
        %1623 = vmatpush1.msra.mxu0 0.0
        %1624 = vmatprep.subr.mxu0 0.0
        %1625 = vmatpush1.msra.mxu0 0.0
        %1626 = vmatprep.subr.mxu0 0.0
        %1627 = vmatpush1.msra.mxu0 0.0
        %1628 = vmatprep.subr.mxu0 0.0
        %1629 = vmatpush1.msra.mxu0 0.0
        %1630 = vmatprep.subr.mxu0 0.0
        %1631 = vmatpush1.msra.mxu0 0.0
        %1632 = vmatprep.mubr.f32.mxu0 0.0
        %1633 = vmatmul.mubr.f32.gmra.mrb[0].mxu0 %v1272
        %v1634 = vpop.f32.mrb[0].mxu0
        %v1635 = vadd.f32 0.0, %v1634
        %v1636 = vpop.f32.mrb[0].mxu0
        %1637 = vmatprep.mubr.f32.mxu0 0.0
        %1638 = vmatmul.mubr.f32.gmra.mrb[0].mxu0 %v1274
        %v1639 = vpop.f32.mrb[0].mxu0
        %v1640 = vadd.f32 0.0, %v1639
        %v1641 = vpop.f32.mrb[0].mxu0
        %1642 = vmatprep.mubr.f32.mxu0 0.0
        %1643 = vmatmul.mubr.f32.gmra.mrb[0].mxu0 %v1277
        %v1644 = vpop.f32.mrb[0].mxu0
        %v1645 = vadd.f32 0.0, %v1644
        %v1646 = vpop.f32.mrb[0].mxu0
        %1647 = vmatprep.mubr.f32.mxu0 0.0
        %1648 = vmatmul.mubr.f32.gmra.mrb[0].mxu0 %v1279
        %v1649 = vpop.f32.mrb[0].mxu0
        %v1650 = vadd.f32 0.0, %v1649
        %v1651 = vpop.f32.mrb[0].mxu0
        %1652 = vmatprep.mubr.f32.mxu0 0.0
        %1653 = vmatmul.mubr.f32.gmra.mrb[0].mxu0 %v1282
        %v1654 = vpop.f32.mrb[0].mxu0
        %v1655 = vadd.f32 0.0, %v1654
        %v1656 = vpop.f32.mrb[0].mxu0
        %1657 = vmatprep.mubr.f32.mxu0 0.0
        %1658 = vmatmul.mubr.f32.gmra.mrb[0].mxu0 %v1284
        %v1659 = vpop.f32.mrb[0].mxu0
        %v1660 = vadd.f32 0.0, %v1659
        %v1661 = vpop.f32.mrb[0].mxu0
        %1662 = vmatprep.mubr.f32.mxu0 0.0
        %1663 = vmatmul.mubr.f32.gmra.mrb[0].mxu0 %v1287
        %v1664 = vpop.f32.mrb[0].mxu0
        %v1665 = vadd.f32 0.0, %v1664
        %v1666 = vpop.f32.mrb[0].mxu0
        %1667 = vmatprep.mubr.f32.mxu0 0.0
        %1668 = vmatmul.mubr.f32.gmra.mrb[0].mxu0 %v1289
        %v1669 = vpop.f32.mrb[0].mxu0
        %v1670 = vadd.f32 0.0, %v1669
        %v1671 = vpop.f32.mrb[0].mxu0
        %1672 = vmatprep.mubr.f32.mxu0 0.0
        %1673 = vmatmul.mubr.f32.gmra.mrb[0].mxu0 %v1292
        %v1674 = vpop.f32.mrb[0].mxu0
        %v1675 = vadd.f32 0.0, %v1674
        %v1676 = vpop.f32.mrb[0].mxu0
        %1677 = vmatprep.mubr.f32.mxu0 0.0
        %1678 = vmatmul.mubr.f32.gmra.mrb[0].mxu0 %v1294
        %v1679 = vpop.f32.mrb[0].mxu0
        %v1680 = vadd.f32 0.0, %v1679
        %v1681 = vpop.f32.mrb[0].mxu0
        %1682 = vmatprep.mubr.f32.mxu0 0.0
        %1683 = vmatmul.mubr.f32.gmra.mrb[0].mxu0 %v1297
        %v1684 = vpop.f32.mrb[0].mxu0
        %v1685 = vadd.f32 0.0, %v1684
        %v1686 = vpop.f32.mrb[0].mxu0
        %1687 = vmatprep.mubr.f32.mxu0 0.0
        %1688 = vmatmul.mubr.f32.gmra.mrb[0].mxu0 %v1299
        %v1689 = vpop.f32.mrb[0].mxu0
        %v1690 = vadd.f32 0.0, %v1689
        %v1691 = vpop.f32.mrb[0].mxu0
        %1692 = vmatprep.mubr.f32.mxu0 0.0
        %1693 = vmatmul.mubr.f32.gmra.mrb[0].mxu0 %v1302
        %v1694 = vpop.f32.mrb[0].mxu0
        %v1695 = vadd.f32 0.0, %v1694
        %v1696 = vpop.f32.mrb[0].mxu0
        %1697 = vmatprep.mubr.f32.mxu0 0.0
        %1698 = vmatmul.mubr.f32.gmra.mrb[0].mxu0 %v1304
        %v1699 = vpop.f32.mrb[0].mxu0
        %v1700 = vadd.f32 0.0, %v1699
        %v1701 = vpop.f32.mrb[0].mxu0
        %1702 = vmatprep.mubr.f32.mxu0 0.0
        %1703 = vmatmul.mubr.f32.gmra.mrb[0].mxu0 %v1307
        %v1704 = vpop.f32.mrb[0].mxu0
        %v1705 = vadd.f32 0.0, %v1704
        %v1706 = vpop.f32.mrb[0].mxu0
        %1707 = vmatprep.mubr.f32.mxu0 0.0
        %1708 = vmatmul.mubr.f32.gmra.mrb[0].mxu0 %v1309
        %v1709 = vpop.f32.mrb[0].mxu0
        %v1710 = vadd.f32 0.0, %v1709
        %v1711 = vpop.f32.mrb[0].mxu0
        %1712 = vmatprep.mubr.f32.mxu0 0.0
        %1713 = vmatmul.mubr.f32.gmra.mrb[0].mxu0 %v1312
        %v1714 = vpop.f32.mrb[0].mxu0
        %v1715 = vadd.f32 0.0, %v1714
        %v1716 = vpop.f32.mrb[0].mxu0
        %1717 = vmatprep.mubr.f32.mxu0 0.0
        %1718 = vmatmul.mubr.f32.gmra.mrb[0].mxu0 %v1314
        %v1719 = vpop.f32.mrb[0].mxu0
        %v1720 = vadd.f32 0.0, %v1719
        %v1721 = vpop.f32.mrb[0].mxu0
        %1722 = vmatprep.mubr.f32.mxu0 0.0
        %1723 = vmatmul.mubr.f32.gmra.mrb[0].mxu0 %v1317
        %v1724 = vpop.f32.mrb[0].mxu0
        %v1725 = vadd.f32 0.0, %v1724
        %v1726 = vpop.f32.mrb[0].mxu0
        %1727 = vmatprep.mubr.f32.mxu0 0.0
        %1728 = vmatmul.mubr.f32.gmra.mrb[0].mxu0 %v1319
        %v1729 = vpop.f32.mrb[0].mxu0
        %v1730 = vadd.f32 0.0, %v1729
        %v1731 = vpop.f32.mrb[0].mxu0
        %1732 = vdwg.mxu0
        %v1733 = vadd.f32 %v1531, %v1635
        %v1734 = vadd.f32 %v1532, %v1640
        %v1735 = vadd.f32 %v1533, %v1645
        %v1736 = vadd.f32 %v1534, %v1650
        %v1737 = vadd.f32 %v1535, %v1655
        %v1738 = vadd.f32 %v1536, %v1660
        %v1739 = vadd.f32 %v1537, %v1665
        %v1740 = vadd.f32 %v1538, %v1670
        %v1741 = vadd.f32 %v1539, %v1675
        %v1742 = vadd.f32 %v1540, %v1680
        %v1743 = vadd.f32 %v1541, %v1685
        %v1744 = vadd.f32 %v1542, %v1690
        %v1745 = vadd.f32 %v1543, %v1695
        %v1746 = vadd.f32 %v1544, %v1700
        %v1747 = vadd.f32 %v1545, %v1705
        %v1748 = vadd.f32 %v1546, %v1710
        %v1749 = vadd.f32 %v1547, %v1715
        %v1750 = vadd.f32 %v1548, %v1720
        %v1751 = vadd.f32 %v1549, %v1725
        %v1752 = vadd.f32 %v1550, %v1730
        %s1753 = scalar_lea.vmem [#allocation5], 896
        %v1754 = vld [vmem:[%s1753] sm:$0xff]
        %v1755 = vld [vmem:[%s1753 + $0x8] sm:$0xff]
        %v1756 = vld [vmem:[%s1753 + $0x10] sm:$0xff]
        %v1757 = vld [vmem:[%s1753 + $0x18] sm:$0xff]
        %v1758 = vld [vmem:[%s1753 + $0x20] sm:$0xff]
        %v1759 = vld [vmem:[%s1753 + $0x28] sm:$0xff]
        %v1760 = vld [vmem:[%s1753 + $0x30] sm:$0xff]
        %v1761 = vld [vmem:[%s1753 + $0x38] sm:$0xff]
        %v1762 = vld [vmem:[%s1753 + $0x40] sm:$0xff]
        %v1763 = vld [vmem:[%s1753 + $0x48] sm:$0xff]
        %v1764 = vld [vmem:[%s1753 + $0x50] sm:$0xff]
        %v1765 = vld [vmem:[%s1753 + $0x58] sm:$0xff]
        %v1766 = vld [vmem:[%s1753 + $0x60] sm:$0xff]
        %v1767 = vld [vmem:[%s1753 + $0x68] sm:$0xff]
        %v1768 = vld [vmem:[%s1753 + $0x70] sm:$0xff]
        %v1769 = vld [vmem:[%s1753 + $0x78] sm:$0xff]
        %1770 = vmatprep.subr.mxu0 0.0
        %1771 = vmatpush1.msra.mxu0 %v1754
        %1772 = vmatprep.subr.mxu0 0.0
        %1773 = vmatpush1.msra.mxu0 %v1755
        %1774 = vmatprep.subr.mxu0 0.0
        %1775 = vmatpush1.msra.mxu0 %v1756
        %1776 = vmatprep.subr.mxu0 0.0
        %1777 = vmatpush1.msra.mxu0 %v1757
        %1778 = vmatprep.subr.mxu0 0.0
        %1779 = vmatpush1.msra.mxu0 %v1758
        %1780 = vmatprep.subr.mxu0 0.0
        %1781 = vmatpush1.msra.mxu0 %v1759
        %1782 = vmatprep.subr.mxu0 0.0
        %1783 = vmatpush1.msra.mxu0 %v1760
        %1784 = vmatprep.subr.mxu0 0.0
        %1785 = vmatpush1.msra.mxu0 %v1761
        %1786 = vmatprep.subr.mxu0 0.0
        %1787 = vmatpush1.msra.mxu0 %v1762
        %1788 = vmatprep.subr.mxu0 0.0
        %1789 = vmatpush1.msra.mxu0 %v1763
        %1790 = vmatprep.subr.mxu0 0.0
        %1791 = vmatpush1.msra.mxu0 %v1764
        %1792 = vmatprep.subr.mxu0 0.0
        %1793 = vmatpush1.msra.mxu0 %v1765
        %1794 = vmatprep.subr.mxu0 0.0
        %1795 = vmatpush1.msra.mxu0 %v1766
        %1796 = vmatprep.subr.mxu0 0.0
        %1797 = vmatpush1.msra.mxu0 %v1767
        %1798 = vmatprep.subr.mxu0 0.0
        %1799 = vmatpush1.msra.mxu0 %v1768
        %1800 = vmatprep.subr.mxu0 0.0
        %1801 = vmatpush1.msra.mxu0 %v1769
        %1802 = vmatprep.subr.mxu0 0.0
        %1803 = vmatpush1.msra.mxu0 0.0
        %1804 = vmatprep.subr.mxu0 0.0
        %1805 = vmatpush1.msra.mxu0 0.0
        %1806 = vmatprep.subr.mxu0 0.0
        %1807 = vmatpush1.msra.mxu0 0.0
        %1808 = vmatprep.subr.mxu0 0.0
        %1809 = vmatpush1.msra.mxu0 0.0
        %1810 = vmatprep.subr.mxu0 0.0
        %1811 = vmatpush1.msra.mxu0 0.0
        %1812 = vmatprep.subr.mxu0 0.0
        %1813 = vmatpush1.msra.mxu0 0.0
        %1814 = vmatprep.subr.mxu0 0.0
        %1815 = vmatpush1.msra.mxu0 0.0
        %1816 = vmatprep.subr.mxu0 0.0
        %1817 = vmatpush1.msra.mxu0 0.0
        %1818 = vmatprep.subr.mxu0 0.0
        %1819 = vmatpush1.msra.mxu0 0.0
        %1820 = vmatprep.subr.mxu0 0.0
        %1821 = vmatpush1.msra.mxu0 0.0
        %1822 = vmatprep.subr.mxu0 0.0
        %1823 = vmatpush1.msra.mxu0 0.0
        %1824 = vmatprep.subr.mxu0 0.0
        %1825 = vmatpush1.msra.mxu0 0.0
        %1826 = vmatprep.subr.mxu0 0.0
        %1827 = vmatpush1.msra.mxu0 0.0
        %1828 = vmatprep.subr.mxu0 0.0
        %1829 = vmatpush1.msra.mxu0 0.0
        %1830 = vmatprep.subr.mxu0 0.0
        %1831 = vmatpush1.msra.mxu0 0.0
        %1832 = vmatprep.subr.mxu0 0.0
        %1833 = vmatpush1.msra.mxu0 0.0
        %1834 = vmatprep.mubr.f32.mxu0 0.0
        %1835 = vmatmul.mubr.f32.gmra.mrb[0].mxu0 %v1277
        %v1836 = vpop.f32.mrb[0].mxu0
        %v1837 = vadd.f32 0.0, %v1836
        %v1838 = vpop.f32.mrb[0].mxu0
        %1839 = vmatprep.mubr.f32.mxu0 0.0
        %1840 = vmatmul.mubr.f32.gmra.mrb[0].mxu0 %v1279
        %v1841 = vpop.f32.mrb[0].mxu0
        %v1842 = vadd.f32 0.0, %v1841
        %v1843 = vpop.f32.mrb[0].mxu0
        %1844 = vmatprep.mubr.f32.mxu0 0.0
        %1845 = vmatmul.mubr.f32.gmra.mrb[0].mxu0 %v1282
        %v1846 = vpop.f32.mrb[0].mxu0
        %v1847 = vadd.f32 0.0, %v1846
        %v1848 = vpop.f32.mrb[0].mxu0
        %1849 = vmatprep.mubr.f32.mxu0 0.0
        %1850 = vmatmul.mubr.f32.gmra.mrb[0].mxu0 %v1284
        %v1851 = vpop.f32.mrb[0].mxu0
        %v1852 = vadd.f32 0.0, %v1851
        %v1853 = vpop.f32.mrb[0].mxu0
        %1854 = vmatprep.mubr.f32.mxu0 0.0
        %1855 = vmatmul.mubr.f32.gmra.mrb[0].mxu0 %v1287
        %v1856 = vpop.f32.mrb[0].mxu0
        %v1857 = vadd.f32 0.0, %v1856
        %v1858 = vpop.f32.mrb[0].mxu0
        %1859 = vmatprep.mubr.f32.mxu0 0.0
        %1860 = vmatmul.mubr.f32.gmra.mrb[0].mxu0 %v1289
        %v1861 = vpop.f32.mrb[0].mxu0
        %v1862 = vadd.f32 0.0, %v1861
        %v1863 = vpop.f32.mrb[0].mxu0
        %1864 = vmatprep.mubr.f32.mxu0 0.0
        %1865 = vmatmul.mubr.f32.gmra.mrb[0].mxu0 %v1292
        %v1866 = vpop.f32.mrb[0].mxu0
        %v1867 = vadd.f32 0.0, %v1866
        %v1868 = vpop.f32.mrb[0].mxu0
        %1869 = vmatprep.mubr.f32.mxu0 0.0
        %1870 = vmatmul.mubr.f32.gmra.mrb[0].mxu0 %v1294
        %v1871 = vpop.f32.mrb[0].mxu0
        %v1872 = vadd.f32 0.0, %v1871
        %v1873 = vpop.f32.mrb[0].mxu0
        %1874 = vmatprep.mubr.f32.mxu0 0.0
        %1875 = vmatmul.mubr.f32.gmra.mrb[0].mxu0 %v1297
        %v1876 = vpop.f32.mrb[0].mxu0
        %v1877 = vadd.f32 0.0, %v1876
        %v1878 = vpop.f32.mrb[0].mxu0
        %1879 = vmatprep.mubr.f32.mxu0 0.0
        %1880 = vmatmul.mubr.f32.gmra.mrb[0].mxu0 %v1299
        %v1881 = vpop.f32.mrb[0].mxu0
        %v1882 = vadd.f32 0.0, %v1881
        %v1883 = vpop.f32.mrb[0].mxu0
        %1884 = vmatprep.mubr.f32.mxu0 0.0
        %1885 = vmatmul.mubr.f32.gmra.mrb[0].mxu0 %v1302
        %v1886 = vpop.f32.mrb[0].mxu0
        %v1887 = vadd.f32 0.0, %v1886
        %v1888 = vpop.f32.mrb[0].mxu0
        %1889 = vmatprep.mubr.f32.mxu0 0.0
        %1890 = vmatmul.mubr.f32.gmra.mrb[0].mxu0 %v1304
        %v1891 = vpop.f32.mrb[0].mxu0
        %v1892 = vadd.f32 0.0, %v1891
        %v1893 = vpop.f32.mrb[0].mxu0
        %1894 = vmatprep.mubr.f32.mxu0 0.0
        %1895 = vmatmul.mubr.f32.gmra.mrb[0].mxu0 %v1307
        %v1896 = vpop.f32.mrb[0].mxu0
        %v1897 = vadd.f32 0.0, %v1896
        %v1898 = vpop.f32.mrb[0].mxu0
        %1899 = vmatprep.mubr.f32.mxu0 0.0
        %1900 = vmatmul.mubr.f32.gmra.mrb[0].mxu0 %v1309
        %v1901 = vpop.f32.mrb[0].mxu0
        %v1902 = vadd.f32 0.0, %v1901
        %v1903 = vpop.f32.mrb[0].mxu0
        %1904 = vmatprep.mubr.f32.mxu0 0.0
        %1905 = vmatmul.mubr.f32.gmra.mrb[0].mxu0 %v1312
        %v1906 = vpop.f32.mrb[0].mxu0
        %v1907 = vadd.f32 0.0, %v1906
        %v1908 = vpop.f32.mrb[0].mxu0
        %1909 = vmatprep.mubr.f32.mxu0 0.0
        %1910 = vmatmul.mubr.f32.gmra.mrb[0].mxu0 %v1314
        %v1911 = vpop.f32.mrb[0].mxu0
        %v1912 = vadd.f32 0.0, %v1911
        %v1913 = vpop.f32.mrb[0].mxu0
        %1914 = vmatprep.mubr.f32.mxu0 0.0
        %1915 = vmatmul.mubr.f32.gmra.mrb[0].mxu0 %v1317
        %v1916 = vpop.f32.mrb[0].mxu0
        %v1917 = vadd.f32 0.0, %v1916
        %v1918 = vpop.f32.mrb[0].mxu0
        %1919 = vmatprep.mubr.f32.mxu0 0.0
        %1920 = vmatmul.mubr.f32.gmra.mrb[0].mxu0 %v1319
        %v1921 = vpop.f32.mrb[0].mxu0
        %v1922 = vadd.f32 0.0, %v1921
        %v1923 = vpop.f32.mrb[0].mxu0
        %1924 = vmatprep.mubr.f32.mxu0 0.0
        %1925 = vmatmul.mubr.f32.gmra.mrb[0].mxu0 %v1322
        %v1926 = vpop.f32.mrb[0].mxu0
        %v1927 = vadd.f32 0.0, %v1926
        %v1928 = vpop.f32.mrb[0].mxu0
        %1929 = vmatprep.mubr.f32.mxu0 0.0
        %1930 = vmatmul.mubr.f32.gmra.mrb[0].mxu0 %v1324
        %v1931 = vpop.f32.mrb[0].mxu0
        %v1932 = vadd.f32 0.0, %v1931
        %v1933 = vpop.f32.mrb[0].mxu0
        %1934 = vdwg.mxu0
        %v1935 = vadd.f32 %v1733, %v1837
        %v1936 = vadd.f32 %v1734, %v1842
        %v1937 = vadd.f32 %v1735, %v1847
        %v1938 = vadd.f32 %v1736, %v1852
        %v1939 = vadd.f32 %v1737, %v1857
        %v1940 = vadd.f32 %v1738, %v1862
        %v1941 = vadd.f32 %v1739, %v1867
        %v1942 = vadd.f32 %v1740, %v1872
        %v1943 = vadd.f32 %v1741, %v1877
        %v1944 = vadd.f32 %v1742, %v1882
        %v1945 = vadd.f32 %v1743, %v1887
        %v1946 = vadd.f32 %v1744, %v1892
        %v1947 = vadd.f32 %v1745, %v1897
        %v1948 = vadd.f32 %v1746, %v1902
        %v1949 = vadd.f32 %v1747, %v1907
        %v1950 = vadd.f32 %v1748, %v1912
        %v1951 = vadd.f32 %v1749, %v1917
        %v1952 = vadd.f32 %v1750, %v1922
        %v1953 = vadd.f32 %v1751, %v1927
        %v1954 = vadd.f32 %v1752, %v1932
        %vm1955 = vcmask 1045504
        %v1956 = vrot.slane %v627, 2
        %v1957 = vrot.slane %v628, 2
        %v1958 = vsel %vm1955, %v1956, %v1957
        %v1959 = vrot.slane %v629, 2
        %v1960 = vsel %vm1955, %v1957, %v1959
        %v1961 = vrot.slane %v630, 2
        %v1962 = vrot.slane %v631, 2
        %v1963 = vsel %vm1955, %v1961, %v1962
        %v1964 = vrot.slane %v632, 2
        %v1965 = vsel %vm1955, %v1962, %v1964
        %v1966 = vrot.slane %v633, 2
        %v1967 = vrot.slane %v634, 2
        %v1968 = vsel %vm1955, %v1966, %v1967
        %v1969 = vrot.slane %v635, 2
        %v1970 = vsel %vm1955, %v1967, %v1969
        %v1971 = vrot.slane %v636, 2
        %v1972 = vrot.slane %v637, 2
        %v1973 = vsel %vm1955, %v1971, %v1972
        %v1974 = vrot.slane %v638, 2
        %v1975 = vsel %vm1955, %v1972, %v1974
        %v1976 = vrot.slane %v639, 2
        %v1977 = vrot.slane %v640, 2
        %v1978 = vsel %vm1955, %v1976, %v1977
        %v1979 = vrot.slane %v641, 2
        %v1980 = vsel %vm1955, %v1977, %v1979
        %v1981 = vrot.slane %v642, 2
        %v1982 = vrot.slane %v643, 2
        %v1983 = vsel %vm1955, %v1981, %v1982
        %v1984 = vrot.slane %v644, 2
        %v1985 = vsel %vm1955, %v1982, %v1984
        %v1986 = vrot.slane %v645, 2
        %v1987 = vrot.slane %v646, 2
        %v1988 = vsel %vm1955, %v1986, %v1987
        %v1989 = vrot.slane %v647, 2
        %v1990 = vsel %vm1955, %v1987, %v1989
        %v1991 = vrot.slane %v648, 2
        %v1992 = vrot.slane %v649, 2
        %v1993 = vsel %vm1955, %v1991, %v1992
        %v1994 = vrot.slane %v650, 2
        %v1995 = vsel %vm1955, %v1992, %v1994
        %v1996 = vrot.slane %v651, 2
        %v1997 = vrot.slane %v652, 2
        %v1998 = vsel %vm1955, %v1996, %v1997
        %v1999 = vrot.slane %v653, 2
        %v2000 = vsel %vm1955, %v1997, %v1999
        %v2001 = vrot.slane %v654, 2
        %v2002 = vrot.slane %v655, 2
        %v2003 = vsel %vm1955, %v2001, %v2002
        %v2004 = vrot.slane %v656, 2
        %v2005 = vsel %vm1955, %v2002, %v2004
        %v2006 = vrot.slane %v657, 2
        %v2007 = vrot.slane %v658, 2
        %v2008 = vsel %vm1955, %v2006, %v2007
        %v2009 = vrot.slane %v659, 2
        %v2010 = vsel %vm1955, %v2007, %v2009
        %v2011 = vrot.slane %v660, 2
        %v2012 = vrot.slane %v661, 2
        %v2013 = vsel %vm1955, %v2011, %v2012
        %v2014 = vrot.slane %v662, 2
        %v2015 = vsel %vm1955, %v2012, %v2014
        %s2040 = scalar_lea.vmem [#allocation5], 256
        %v2041 = vld [vmem:[%s2040] sm:$0xff]
        %v2042 = vld [vmem:[%s2040 + $0x8] sm:$0xff]
        %v2043 = vld [vmem:[%s2040 + $0x10] sm:$0xff]
        %v2044 = vld [vmem:[%s2040 + $0x18] sm:$0xff]
        %v2045 = vld [vmem:[%s2040 + $0x20] sm:$0xff]
        %v2046 = vld [vmem:[%s2040 + $0x28] sm:$0xff]
        %v2047 = vld [vmem:[%s2040 + $0x30] sm:$0xff]
        %v2048 = vld [vmem:[%s2040 + $0x38] sm:$0xff]
        %v2049 = vld [vmem:[%s2040 + $0x40] sm:$0xff]
        %v2050 = vld [vmem:[%s2040 + $0x48] sm:$0xff]
        %v2051 = vld [vmem:[%s2040 + $0x50] sm:$0xff]
        %v2052 = vld [vmem:[%s2040 + $0x58] sm:$0xff]
        %v2053 = vld [vmem:[%s2040 + $0x60] sm:$0xff]
        %v2054 = vld [vmem:[%s2040 + $0x68] sm:$0xff]
        %v2055 = vld [vmem:[%s2040 + $0x70] sm:$0xff]
        %v2056 = vld [vmem:[%s2040 + $0x78] sm:$0xff]
        %2057 = vmatprep.subr.mxu0 0.0
        %2058 = vmatpush1.msra.mxu0 %v2041
        %2059 = vmatprep.subr.mxu0 0.0
        %2060 = vmatpush1.msra.mxu0 %v2042
        %2061 = vmatprep.subr.mxu0 0.0
        %2062 = vmatpush1.msra.mxu0 %v2043
        %2063 = vmatprep.subr.mxu0 0.0
        %2064 = vmatpush1.msra.mxu0 %v2044
        %2065 = vmatprep.subr.mxu0 0.0
        %2066 = vmatpush1.msra.mxu0 %v2045
        %2067 = vmatprep.subr.mxu0 0.0
        %2068 = vmatpush1.msra.mxu0 %v2046
        %2069 = vmatprep.subr.mxu0 0.0
        %2070 = vmatpush1.msra.mxu0 %v2047
        %2071 = vmatprep.subr.mxu0 0.0
        %2072 = vmatpush1.msra.mxu0 %v2048
        %2073 = vmatprep.subr.mxu0 0.0
        %2074 = vmatpush1.msra.mxu0 %v2049
        %2075 = vmatprep.subr.mxu0 0.0
        %2076 = vmatpush1.msra.mxu0 %v2050
        %2077 = vmatprep.subr.mxu0 0.0
        %2078 = vmatpush1.msra.mxu0 %v2051
        %2079 = vmatprep.subr.mxu0 0.0
        %2080 = vmatpush1.msra.mxu0 %v2052
        %2081 = vmatprep.subr.mxu0 0.0
        %2082 = vmatpush1.msra.mxu0 %v2053
        %2083 = vmatprep.subr.mxu0 0.0
        %2084 = vmatpush1.msra.mxu0 %v2054
        %2085 = vmatprep.subr.mxu0 0.0
        %2086 = vmatpush1.msra.mxu0 %v2055
        %2087 = vmatprep.subr.mxu0 0.0
        %2088 = vmatpush1.msra.mxu0 %v2056
        %2089 = vmatprep.subr.mxu0 0.0
        %2090 = vmatpush1.msra.mxu0 0.0
        %2091 = vmatprep.subr.mxu0 0.0
        %2092 = vmatpush1.msra.mxu0 0.0
        %2093 = vmatprep.subr.mxu0 0.0
        %2094 = vmatpush1.msra.mxu0 0.0
        %2095 = vmatprep.subr.mxu0 0.0
        %2096 = vmatpush1.msra.mxu0 0.0
        %2097 = vmatprep.subr.mxu0 0.0
        %2098 = vmatpush1.msra.mxu0 0.0
        %2099 = vmatprep.subr.mxu0 0.0
        %2100 = vmatpush1.msra.mxu0 0.0
        %2101 = vmatprep.subr.mxu0 0.0
        %2102 = vmatpush1.msra.mxu0 0.0
        %2103 = vmatprep.subr.mxu0 0.0
        %2104 = vmatpush1.msra.mxu0 0.0
        %2105 = vmatprep.subr.mxu0 0.0
        %2106 = vmatpush1.msra.mxu0 0.0
        %2107 = vmatprep.subr.mxu0 0.0
        %2108 = vmatpush1.msra.mxu0 0.0
        %2109 = vmatprep.subr.mxu0 0.0
        %2110 = vmatpush1.msra.mxu0 0.0
        %2111 = vmatprep.subr.mxu0 0.0
        %2112 = vmatpush1.msra.mxu0 0.0
        %2113 = vmatprep.subr.mxu0 0.0
        %2114 = vmatpush1.msra.mxu0 0.0
        %2115 = vmatprep.subr.mxu0 0.0
        %2116 = vmatpush1.msra.mxu0 0.0
        %2117 = vmatprep.subr.mxu0 0.0
        %2118 = vmatpush1.msra.mxu0 0.0
        %2119 = vmatprep.subr.mxu0 0.0
        %2120 = vmatpush1.msra.mxu0 0.0
        %2121 = vmatprep.mubr.f32.mxu0 0.0
        %2122 = vmatmul.mubr.f32.gmra.mrb[0].mxu0 %v1958
        %v2123 = vpop.f32.mrb[0].mxu0
        %v2124 = vadd.f32 0.0, %v2123
        %v2125 = vpop.f32.mrb[0].mxu0
        %2126 = vmatprep.mubr.f32.mxu0 0.0
        %2127 = vmatmul.mubr.f32.gmra.mrb[0].mxu0 %v1960
        %v2128 = vpop.f32.mrb[0].mxu0
        %v2129 = vadd.f32 0.0, %v2128
        %v2130 = vpop.f32.mrb[0].mxu0
        %2131 = vmatprep.mubr.f32.mxu0 0.0
        %2132 = vmatmul.mubr.f32.gmra.mrb[0].mxu0 %v1963
        %v2133 = vpop.f32.mrb[0].mxu0
        %v2134 = vadd.f32 0.0, %v2133
        %v2135 = vpop.f32.mrb[0].mxu0
        %2136 = vmatprep.mubr.f32.mxu0 0.0
        %2137 = vmatmul.mubr.f32.gmra.mrb[0].mxu0 %v1965
        %v2138 = vpop.f32.mrb[0].mxu0
        %v2139 = vadd.f32 0.0, %v2138
        %v2140 = vpop.f32.mrb[0].mxu0
        %2141 = vmatprep.mubr.f32.mxu0 0.0
        %2142 = vmatmul.mubr.f32.gmra.mrb[0].mxu0 %v1968
        %v2143 = vpop.f32.mrb[0].mxu0
        %v2144 = vadd.f32 0.0, %v2143
        %v2145 = vpop.f32.mrb[0].mxu0
        %2146 = vmatprep.mubr.f32.mxu0 0.0
        %2147 = vmatmul.mubr.f32.gmra.mrb[0].mxu0 %v1970
        %v2148 = vpop.f32.mrb[0].mxu0
        %v2149 = vadd.f32 0.0, %v2148
        %v2150 = vpop.f32.mrb[0].mxu0
        %2151 = vmatprep.mubr.f32.mxu0 0.0
        %2152 = vmatmul.mubr.f32.gmra.mrb[0].mxu0 %v1973
        %v2153 = vpop.f32.mrb[0].mxu0
        %v2154 = vadd.f32 0.0, %v2153
        %v2155 = vpop.f32.mrb[0].mxu0
        %2156 = vmatprep.mubr.f32.mxu0 0.0
        %2157 = vmatmul.mubr.f32.gmra.mrb[0].mxu0 %v1975
        %v2158 = vpop.f32.mrb[0].mxu0
        %v2159 = vadd.f32 0.0, %v2158
        %v2160 = vpop.f32.mrb[0].mxu0
        %2161 = vmatprep.mubr.f32.mxu0 0.0
        %2162 = vmatmul.mubr.f32.gmra.mrb[0].mxu0 %v1978
        %v2163 = vpop.f32.mrb[0].mxu0
        %v2164 = vadd.f32 0.0, %v2163
        %v2165 = vpop.f32.mrb[0].mxu0
        %2166 = vmatprep.mubr.f32.mxu0 0.0
        %2167 = vmatmul.mubr.f32.gmra.mrb[0].mxu0 %v1980
        %v2168 = vpop.f32.mrb[0].mxu0
        %v2169 = vadd.f32 0.0, %v2168
        %v2170 = vpop.f32.mrb[0].mxu0
        %2171 = vmatprep.mubr.f32.mxu0 0.0
        %2172 = vmatmul.mubr.f32.gmra.mrb[0].mxu0 %v1983
        %v2173 = vpop.f32.mrb[0].mxu0
        %v2174 = vadd.f32 0.0, %v2173
        %v2175 = vpop.f32.mrb[0].mxu0
        %2176 = vmatprep.mubr.f32.mxu0 0.0
        %2177 = vmatmul.mubr.f32.gmra.mrb[0].mxu0 %v1985
        %v2178 = vpop.f32.mrb[0].mxu0
        %v2179 = vadd.f32 0.0, %v2178
        %v2180 = vpop.f32.mrb[0].mxu0
        %2181 = vmatprep.mubr.f32.mxu0 0.0
        %2182 = vmatmul.mubr.f32.gmra.mrb[0].mxu0 %v1988
        %v2183 = vpop.f32.mrb[0].mxu0
        %v2184 = vadd.f32 0.0, %v2183
        %v2185 = vpop.f32.mrb[0].mxu0
        %2186 = vmatprep.mubr.f32.mxu0 0.0
        %2187 = vmatmul.mubr.f32.gmra.mrb[0].mxu0 %v1990
        %v2188 = vpop.f32.mrb[0].mxu0
        %v2189 = vadd.f32 0.0, %v2188
        %v2190 = vpop.f32.mrb[0].mxu0
        %2191 = vmatprep.mubr.f32.mxu0 0.0
        %2192 = vmatmul.mubr.f32.gmra.mrb[0].mxu0 %v1993
        %v2193 = vpop.f32.mrb[0].mxu0
        %v2194 = vadd.f32 0.0, %v2193
        %v2195 = vpop.f32.mrb[0].mxu0
        %2196 = vmatprep.mubr.f32.mxu0 0.0
        %2197 = vmatmul.mubr.f32.gmra.mrb[0].mxu0 %v1995
        %v2198 = vpop.f32.mrb[0].mxu0
        %v2199 = vadd.f32 0.0, %v2198
        %v2200 = vpop.f32.mrb[0].mxu0
        %2201 = vmatprep.mubr.f32.mxu0 0.0
        %2202 = vmatmul.mubr.f32.gmra.mrb[0].mxu0 %v1998
        %v2203 = vpop.f32.mrb[0].mxu0
        %v2204 = vadd.f32 0.0, %v2203
        %v2205 = vpop.f32.mrb[0].mxu0
        %2206 = vmatprep.mubr.f32.mxu0 0.0
        %2207 = vmatmul.mubr.f32.gmra.mrb[0].mxu0 %v2000
        %v2208 = vpop.f32.mrb[0].mxu0
        %v2209 = vadd.f32 0.0, %v2208
        %v2210 = vpop.f32.mrb[0].mxu0
        %2211 = vmatprep.mubr.f32.mxu0 0.0
        %2212 = vmatmul.mubr.f32.gmra.mrb[0].mxu0 %v2003
        %v2213 = vpop.f32.mrb[0].mxu0
        %v2214 = vadd.f32 0.0, %v2213
        %v2215 = vpop.f32.mrb[0].mxu0
        %2216 = vmatprep.mubr.f32.mxu0 0.0
        %2217 = vmatmul.mubr.f32.gmra.mrb[0].mxu0 %v2005
        %v2218 = vpop.f32.mrb[0].mxu0
        %v2219 = vadd.f32 0.0, %v2218
        %v2220 = vpop.f32.mrb[0].mxu0
        %2221 = vdwg.mxu0
        %v2222 = vadd.f32 %v1935, %v2124
        %v2223 = vadd.f32 %v1936, %v2129
        %v2224 = vadd.f32 %v1937, %v2134
        %v2225 = vadd.f32 %v1938, %v2139
        %v2226 = vadd.f32 %v1939, %v2144
        %v2227 = vadd.f32 %v1940, %v2149
        %v2228 = vadd.f32 %v1941, %v2154
        %v2229 = vadd.f32 %v1942, %v2159
        %v2230 = vadd.f32 %v1943, %v2164
        %v2231 = vadd.f32 %v1944, %v2169
        %v2232 = vadd.f32 %v1945, %v2174
        %v2233 = vadd.f32 %v1946, %v2179
        %v2234 = vadd.f32 %v1947, %v2184
        %v2235 = vadd.f32 %v1948, %v2189
        %v2236 = vadd.f32 %v1949, %v2194
        %v2237 = vadd.f32 %v1950, %v2199
        %v2238 = vadd.f32 %v1951, %v2204
        %v2239 = vadd.f32 %v1952, %v2209
        %v2240 = vadd.f32 %v1953, %v2214
        %v2241 = vadd.f32 %v1954, %v2219
        %s2242 = scalar_lea.vmem [#allocation5], 640
        %v2243 = vld [vmem:[%s2242] sm:$0xff]
        %v2244 = vld [vmem:[%s2242 + $0x8] sm:$0xff]
        %v2245 = vld [vmem:[%s2242 + $0x10] sm:$0xff]
        %v2246 = vld [vmem:[%s2242 + $0x18] sm:$0xff]
        %v2247 = vld [vmem:[%s2242 + $0x20] sm:$0xff]
        %v2248 = vld [vmem:[%s2242 + $0x28] sm:$0xff]
        %v2249 = vld [vmem:[%s2242 + $0x30] sm:$0xff]
        %v2250 = vld [vmem:[%s2242 + $0x38] sm:$0xff]
        %v2251 = vld [vmem:[%s2242 + $0x40] sm:$0xff]
        %v2252 = vld [vmem:[%s2242 + $0x48] sm:$0xff]
        %v2253 = vld [vmem:[%s2242 + $0x50] sm:$0xff]
        %v2254 = vld [vmem:[%s2242 + $0x58] sm:$0xff]
        %v2255 = vld [vmem:[%s2242 + $0x60] sm:$0xff]
        %v2256 = vld [vmem:[%s2242 + $0x68] sm:$0xff]
        %v2257 = vld [vmem:[%s2242 + $0x70] sm:$0xff]
        %v2258 = vld [vmem:[%s2242 + $0x78] sm:$0xff]
        %2259 = vmatprep.subr.mxu0 0.0
        %2260 = vmatpush1.msra.mxu0 %v2243
        %2261 = vmatprep.subr.mxu0 0.0
        %2262 = vmatpush1.msra.mxu0 %v2244
        %2263 = vmatprep.subr.mxu0 0.0
        %2264 = vmatpush1.msra.mxu0 %v2245
        %2265 = vmatprep.subr.mxu0 0.0
        %2266 = vmatpush1.msra.mxu0 %v2246
        %2267 = vmatprep.subr.mxu0 0.0
        %2268 = vmatpush1.msra.mxu0 %v2247
        %2269 = vmatprep.subr.mxu0 0.0
        %2270 = vmatpush1.msra.mxu0 %v2248
        %2271 = vmatprep.subr.mxu0 0.0
        %2272 = vmatpush1.msra.mxu0 %v2249
        %2273 = vmatprep.subr.mxu0 0.0
        %2274 = vmatpush1.msra.mxu0 %v2250
        %2275 = vmatprep.subr.mxu0 0.0
        %2276 = vmatpush1.msra.mxu0 %v2251
        %2277 = vmatprep.subr.mxu0 0.0
        %2278 = vmatpush1.msra.mxu0 %v2252
        %2279 = vmatprep.subr.mxu0 0.0
        %2280 = vmatpush1.msra.mxu0 %v2253
        %2281 = vmatprep.subr.mxu0 0.0
        %2282 = vmatpush1.msra.mxu0 %v2254
        %2283 = vmatprep.subr.mxu0 0.0
        %2284 = vmatpush1.msra.mxu0 %v2255
        %2285 = vmatprep.subr.mxu0 0.0
        %2286 = vmatpush1.msra.mxu0 %v2256
        %2287 = vmatprep.subr.mxu0 0.0
        %2288 = vmatpush1.msra.mxu0 %v2257
        %2289 = vmatprep.subr.mxu0 0.0
        %2290 = vmatpush1.msra.mxu0 %v2258
        %2291 = vmatprep.subr.mxu0 0.0
        %2292 = vmatpush1.msra.mxu0 0.0
        %2293 = vmatprep.subr.mxu0 0.0
        %2294 = vmatpush1.msra.mxu0 0.0
        %2295 = vmatprep.subr.mxu0 0.0
        %2296 = vmatpush1.msra.mxu0 0.0
        %2297 = vmatprep.subr.mxu0 0.0
        %2298 = vmatpush1.msra.mxu0 0.0
        %2299 = vmatprep.subr.mxu0 0.0
        %2300 = vmatpush1.msra.mxu0 0.0
        %2301 = vmatprep.subr.mxu0 0.0
        %2302 = vmatpush1.msra.mxu0 0.0
        %2303 = vmatprep.subr.mxu0 0.0
        %2304 = vmatpush1.msra.mxu0 0.0
        %2305 = vmatprep.subr.mxu0 0.0
        %2306 = vmatpush1.msra.mxu0 0.0
        %2307 = vmatprep.subr.mxu0 0.0
        %2308 = vmatpush1.msra.mxu0 0.0
        %2309 = vmatprep.subr.mxu0 0.0
        %2310 = vmatpush1.msra.mxu0 0.0
        %2311 = vmatprep.subr.mxu0 0.0
        %2312 = vmatpush1.msra.mxu0 0.0
        %2313 = vmatprep.subr.mxu0 0.0
        %2314 = vmatpush1.msra.mxu0 0.0
        %2315 = vmatprep.subr.mxu0 0.0
        %2316 = vmatpush1.msra.mxu0 0.0
        %2317 = vmatprep.subr.mxu0 0.0
        %2318 = vmatpush1.msra.mxu0 0.0
        %2319 = vmatprep.subr.mxu0 0.0
        %2320 = vmatpush1.msra.mxu0 0.0
        %2321 = vmatprep.subr.mxu0 0.0
        %2322 = vmatpush1.msra.mxu0 0.0
        %2323 = vmatprep.mubr.f32.mxu0 0.0
        %2324 = vmatmul.mubr.f32.gmra.mrb[0].mxu0 %v1963
        %v2325 = vpop.f32.mrb[0].mxu0
        %v2326 = vadd.f32 0.0, %v2325
        %v2327 = vpop.f32.mrb[0].mxu0
        %2328 = vmatprep.mubr.f32.mxu0 0.0
        %2329 = vmatmul.mubr.f32.gmra.mrb[0].mxu0 %v1965
        %v2330 = vpop.f32.mrb[0].mxu0
        %v2331 = vadd.f32 0.0, %v2330
        %v2332 = vpop.f32.mrb[0].mxu0
        %2333 = vmatprep.mubr.f32.mxu0 0.0
        %2334 = vmatmul.mubr.f32.gmra.mrb[0].mxu0 %v1968
        %v2335 = vpop.f32.mrb[0].mxu0
        %v2336 = vadd.f32 0.0, %v2335
        %v2337 = vpop.f32.mrb[0].mxu0
        %2338 = vmatprep.mubr.f32.mxu0 0.0
        %2339 = vmatmul.mubr.f32.gmra.mrb[0].mxu0 %v1970
        %v2340 = vpop.f32.mrb[0].mxu0
        %v2341 = vadd.f32 0.0, %v2340
        %v2342 = vpop.f32.mrb[0].mxu0
        %2343 = vmatprep.mubr.f32.mxu0 0.0
        %2344 = vmatmul.mubr.f32.gmra.mrb[0].mxu0 %v1973
        %v2345 = vpop.f32.mrb[0].mxu0
        %v2346 = vadd.f32 0.0, %v2345
        %v2347 = vpop.f32.mrb[0].mxu0
        %2348 = vmatprep.mubr.f32.mxu0 0.0
        %2349 = vmatmul.mubr.f32.gmra.mrb[0].mxu0 %v1975
        %v2350 = vpop.f32.mrb[0].mxu0
        %v2351 = vadd.f32 0.0, %v2350
        %v2352 = vpop.f32.mrb[0].mxu0
        %2353 = vmatprep.mubr.f32.mxu0 0.0
        %2354 = vmatmul.mubr.f32.gmra.mrb[0].mxu0 %v1978
        %v2355 = vpop.f32.mrb[0].mxu0
        %v2356 = vadd.f32 0.0, %v2355
        %v2357 = vpop.f32.mrb[0].mxu0
        %2358 = vmatprep.mubr.f32.mxu0 0.0
        %2359 = vmatmul.mubr.f32.gmra.mrb[0].mxu0 %v1980
        %v2360 = vpop.f32.mrb[0].mxu0
        %v2361 = vadd.f32 0.0, %v2360
        %v2362 = vpop.f32.mrb[0].mxu0
        %2363 = vmatprep.mubr.f32.mxu0 0.0
        %2364 = vmatmul.mubr.f32.gmra.mrb[0].mxu0 %v1983
        %v2365 = vpop.f32.mrb[0].mxu0
        %v2366 = vadd.f32 0.0, %v2365
        %v2367 = vpop.f32.mrb[0].mxu0
        %2368 = vmatprep.mubr.f32.mxu0 0.0
        %2369 = vmatmul.mubr.f32.gmra.mrb[0].mxu0 %v1985
        %v2370 = vpop.f32.mrb[0].mxu0
        %v2371 = vadd.f32 0.0, %v2370
        %v2372 = vpop.f32.mrb[0].mxu0
        %2373 = vmatprep.mubr.f32.mxu0 0.0
        %2374 = vmatmul.mubr.f32.gmra.mrb[0].mxu0 %v1988
        %v2375 = vpop.f32.mrb[0].mxu0
        %v2376 = vadd.f32 0.0, %v2375
        %v2377 = vpop.f32.mrb[0].mxu0
        %2378 = vmatprep.mubr.f32.mxu0 0.0
        %2379 = vmatmul.mubr.f32.gmra.mrb[0].mxu0 %v1990
        %v2380 = vpop.f32.mrb[0].mxu0
        %v2381 = vadd.f32 0.0, %v2380
        %v2382 = vpop.f32.mrb[0].mxu0
        %2383 = vmatprep.mubr.f32.mxu0 0.0
        %2384 = vmatmul.mubr.f32.gmra.mrb[0].mxu0 %v1993
        %v2385 = vpop.f32.mrb[0].mxu0
        %v2386 = vadd.f32 0.0, %v2385
        %v2387 = vpop.f32.mrb[0].mxu0
        %2388 = vmatprep.mubr.f32.mxu0 0.0
        %2389 = vmatmul.mubr.f32.gmra.mrb[0].mxu0 %v1995
        %v2390 = vpop.f32.mrb[0].mxu0
        %v2391 = vadd.f32 0.0, %v2390
        %v2392 = vpop.f32.mrb[0].mxu0
        %2393 = vmatprep.mubr.f32.mxu0 0.0
        %2394 = vmatmul.mubr.f32.gmra.mrb[0].mxu0 %v1998
        %v2395 = vpop.f32.mrb[0].mxu0
        %v2396 = vadd.f32 0.0, %v2395
        %v2397 = vpop.f32.mrb[0].mxu0
        %2398 = vmatprep.mubr.f32.mxu0 0.0
        %2399 = vmatmul.mubr.f32.gmra.mrb[0].mxu0 %v2000
        %v2400 = vpop.f32.mrb[0].mxu0
        %v2401 = vadd.f32 0.0, %v2400
        %v2402 = vpop.f32.mrb[0].mxu0
        %2403 = vmatprep.mubr.f32.mxu0 0.0
        %2404 = vmatmul.mubr.f32.gmra.mrb[0].mxu0 %v2003
        %v2405 = vpop.f32.mrb[0].mxu0
        %v2406 = vadd.f32 0.0, %v2405
        %v2407 = vpop.f32.mrb[0].mxu0
        %2408 = vmatprep.mubr.f32.mxu0 0.0
        %2409 = vmatmul.mubr.f32.gmra.mrb[0].mxu0 %v2005
        %v2410 = vpop.f32.mrb[0].mxu0
        %v2411 = vadd.f32 0.0, %v2410
        %v2412 = vpop.f32.mrb[0].mxu0
        %2413 = vmatprep.mubr.f32.mxu0 0.0
        %2414 = vmatmul.mubr.f32.gmra.mrb[0].mxu0 %v2008
        %v2415 = vpop.f32.mrb[0].mxu0
        %v2416 = vadd.f32 0.0, %v2415
        %v2417 = vpop.f32.mrb[0].mxu0
        %2418 = vmatprep.mubr.f32.mxu0 0.0
        %2419 = vmatmul.mubr.f32.gmra.mrb[0].mxu0 %v2010
        %v2420 = vpop.f32.mrb[0].mxu0
        %v2421 = vadd.f32 0.0, %v2420
        %v2422 = vpop.f32.mrb[0].mxu0
        %2423 = vdwg.mxu0
        %v2424 = vadd.f32 %v2222, %v2326
        %v2425 = vadd.f32 %v2223, %v2331
        %v2426 = vadd.f32 %v2224, %v2336
        %v2427 = vadd.f32 %v2225, %v2341
        %v2428 = vadd.f32 %v2226, %v2346
        %v2429 = vadd.f32 %v2227, %v2351
        %v2430 = vadd.f32 %v2228, %v2356
        %v2431 = vadd.f32 %v2229, %v2361
        %v2432 = vadd.f32 %v2230, %v2366
        %v2433 = vadd.f32 %v2231, %v2371
        %v2434 = vadd.f32 %v2232, %v2376
        %v2435 = vadd.f32 %v2233, %v2381
        %v2436 = vadd.f32 %v2234, %v2386
        %v2437 = vadd.f32 %v2235, %v2391
        %v2438 = vadd.f32 %v2236, %v2396
        %v2439 = vadd.f32 %v2237, %v2401
        %v2440 = vadd.f32 %v2238, %v2406
        %v2441 = vadd.f32 %v2239, %v2411
        %v2442 = vadd.f32 %v2240, %v2416
        %v2443 = vadd.f32 %v2241, %v2421
        %s2444 = scalar_lea.vmem [#allocation5], 1024
        %v2445 = vld [vmem:[%s2444] sm:$0xff]
        %v2446 = vld [vmem:[%s2444 + $0x8] sm:$0xff]
        %v2447 = vld [vmem:[%s2444 + $0x10] sm:$0xff]
        %v2448 = vld [vmem:[%s2444 + $0x18] sm:$0xff]
        %v2449 = vld [vmem:[%s2444 + $0x20] sm:$0xff]
        %v2450 = vld [vmem:[%s2444 + $0x28] sm:$0xff]
        %v2451 = vld [vmem:[%s2444 + $0x30] sm:$0xff]
        %v2452 = vld [vmem:[%s2444 + $0x38] sm:$0xff]
        %v2453 = vld [vmem:[%s2444 + $0x40] sm:$0xff]
        %v2454 = vld [vmem:[%s2444 + $0x48] sm:$0xff]
        %v2455 = vld [vmem:[%s2444 + $0x50] sm:$0xff]
        %v2456 = vld [vmem:[%s2444 + $0x58] sm:$0xff]
        %v2457 = vld [vmem:[%s2444 + $0x60] sm:$0xff]
        %v2458 = vld [vmem:[%s2444 + $0x68] sm:$0xff]
        %v2459 = vld [vmem:[%s2444 + $0x70] sm:$0xff]
        %v2460 = vld [vmem:[%s2444 + $0x78] sm:$0xff]
        %2461 = vmatprep.subr.mxu0 0.0
        %2462 = vmatpush1.msra.mxu0 %v2445
        %2463 = vmatprep.subr.mxu0 0.0
        %2464 = vmatpush1.msra.mxu0 %v2446
        %2465 = vmatprep.subr.mxu0 0.0
        %2466 = vmatpush1.msra.mxu0 %v2447
        %2467 = vmatprep.subr.mxu0 0.0
        %2468 = vmatpush1.msra.mxu0 %v2448
        %2469 = vmatprep.subr.mxu0 0.0
        %2470 = vmatpush1.msra.mxu0 %v2449
        %2471 = vmatprep.subr.mxu0 0.0
        %2472 = vmatpush1.msra.mxu0 %v2450
        %2473 = vmatprep.subr.mxu0 0.0
        %2474 = vmatpush1.msra.mxu0 %v2451
        %2475 = vmatprep.subr.mxu0 0.0
        %2476 = vmatpush1.msra.mxu0 %v2452
        %2477 = vmatprep.subr.mxu0 0.0
        %2478 = vmatpush1.msra.mxu0 %v2453
        %2479 = vmatprep.subr.mxu0 0.0
        %2480 = vmatpush1.msra.mxu0 %v2454
        %2481 = vmatprep.subr.mxu0 0.0
        %2482 = vmatpush1.msra.mxu0 %v2455
        %2483 = vmatprep.subr.mxu0 0.0
        %2484 = vmatpush1.msra.mxu0 %v2456
        %2485 = vmatprep.subr.mxu0 0.0
        %2486 = vmatpush1.msra.mxu0 %v2457
        %2487 = vmatprep.subr.mxu0 0.0
        %2488 = vmatpush1.msra.mxu0 %v2458
        %2489 = vmatprep.subr.mxu0 0.0
        %2490 = vmatpush1.msra.mxu0 %v2459
        %2491 = vmatprep.subr.mxu0 0.0
        %2492 = vmatpush1.msra.mxu0 %v2460
        %2493 = vmatprep.subr.mxu0 0.0
        %2494 = vmatpush1.msra.mxu0 0.0
        %2495 = vmatprep.subr.mxu0 0.0
        %2496 = vmatpush1.msra.mxu0 0.0
        %2497 = vmatprep.subr.mxu0 0.0
        %2498 = vmatpush1.msra.mxu0 0.0
        %2499 = vmatprep.subr.mxu0 0.0
        %2500 = vmatpush1.msra.mxu0 0.0
        %2501 = vmatprep.subr.mxu0 0.0
        %2502 = vmatpush1.msra.mxu0 0.0
        %2503 = vmatprep.subr.mxu0 0.0
        %2504 = vmatpush1.msra.mxu0 0.0
        %2505 = vmatprep.subr.mxu0 0.0
        %2506 = vmatpush1.msra.mxu0 0.0
        %2507 = vmatprep.subr.mxu0 0.0
        %2508 = vmatpush1.msra.mxu0 0.0
        %2509 = vmatprep.subr.mxu0 0.0
        %2510 = vmatpush1.msra.mxu0 0.0
        %2511 = vmatprep.subr.mxu0 0.0
        %2512 = vmatpush1.msra.mxu0 0.0
        %2513 = vmatprep.subr.mxu0 0.0
        %2514 = vmatpush1.msra.mxu0 0.0
        %2515 = vmatprep.subr.mxu0 0.0
        %2516 = vmatpush1.msra.mxu0 0.0
        %2517 = vmatprep.subr.mxu0 0.0
        %2518 = vmatpush1.msra.mxu0 0.0
        %2519 = vmatprep.subr.mxu0 0.0
        %2520 = vmatpush1.msra.mxu0 0.0
        %2521 = vmatprep.subr.mxu0 0.0
        %2522 = vmatpush1.msra.mxu0 0.0
        %2523 = vmatprep.subr.mxu0 0.0
        %2524 = vmatpush1.msra.mxu0 0.0
        %2525 = vmatprep.mubr.f32.mxu0 0.0
        %2526 = vmatmul.mubr.f32.gmra.mrb[0].mxu0 %v1968
        %v2527 = vpop.f32.mrb[0].mxu0
        %v2528 = vadd.f32 0.0, %v2527
        %v2529 = vpop.f32.mrb[0].mxu0
        %2530 = vmatprep.mubr.f32.mxu0 0.0
        %2531 = vmatmul.mubr.f32.gmra.mrb[0].mxu0 %v1970
        %v2532 = vpop.f32.mrb[0].mxu0
        %v2533 = vadd.f32 0.0, %v2532
        %v2534 = vpop.f32.mrb[0].mxu0
        %2535 = vmatprep.mubr.f32.mxu0 0.0
        %2536 = vmatmul.mubr.f32.gmra.mrb[0].mxu0 %v1973
        %v2537 = vpop.f32.mrb[0].mxu0
        %v2538 = vadd.f32 0.0, %v2537
        %v2539 = vpop.f32.mrb[0].mxu0
        %2540 = vmatprep.mubr.f32.mxu0 0.0
        %2541 = vmatmul.mubr.f32.gmra.mrb[0].mxu0 %v1975
        %v2542 = vpop.f32.mrb[0].mxu0
        %v2543 = vadd.f32 0.0, %v2542
        %v2544 = vpop.f32.mrb[0].mxu0
        %2545 = vmatprep.mubr.f32.mxu0 0.0
        %2546 = vmatmul.mubr.f32.gmra.mrb[0].mxu0 %v1978
        %v2547 = vpop.f32.mrb[0].mxu0
        %v2548 = vadd.f32 0.0, %v2547
        %v2549 = vpop.f32.mrb[0].mxu0
        %2550 = vmatprep.mubr.f32.mxu0 0.0
        %2551 = vmatmul.mubr.f32.gmra.mrb[0].mxu0 %v1980
        %v2552 = vpop.f32.mrb[0].mxu0
        %v2553 = vadd.f32 0.0, %v2552
        %v2554 = vpop.f32.mrb[0].mxu0
        %2555 = vmatprep.mubr.f32.mxu0 0.0
        %2556 = vmatmul.mubr.f32.gmra.mrb[0].mxu0 %v1983
        %v2557 = vpop.f32.mrb[0].mxu0
        %v2558 = vadd.f32 0.0, %v2557
        %v2559 = vpop.f32.mrb[0].mxu0
        %2560 = vmatprep.mubr.f32.mxu0 0.0
        %2561 = vmatmul.mubr.f32.gmra.mrb[0].mxu0 %v1985
        %v2562 = vpop.f32.mrb[0].mxu0
        %v2563 = vadd.f32 0.0, %v2562
        %v2564 = vpop.f32.mrb[0].mxu0
        %2565 = vmatprep.mubr.f32.mxu0 0.0
        %2566 = vmatmul.mubr.f32.gmra.mrb[0].mxu0 %v1988
        %v2567 = vpop.f32.mrb[0].mxu0
        %v2568 = vadd.f32 0.0, %v2567
        %v2569 = vpop.f32.mrb[0].mxu0
        %2570 = vmatprep.mubr.f32.mxu0 0.0
        %2571 = vmatmul.mubr.f32.gmra.mrb[0].mxu0 %v1990
        %v2572 = vpop.f32.mrb[0].mxu0
        %v2573 = vadd.f32 0.0, %v2572
        %v2574 = vpop.f32.mrb[0].mxu0
        %2575 = vmatprep.mubr.f32.mxu0 0.0
        %2576 = vmatmul.mubr.f32.gmra.mrb[0].mxu0 %v1993
        %v2577 = vpop.f32.mrb[0].mxu0
        %v2578 = vadd.f32 0.0, %v2577
        %v2579 = vpop.f32.mrb[0].mxu0
        %2580 = vmatprep.mubr.f32.mxu0 0.0
        %2581 = vmatmul.mubr.f32.gmra.mrb[0].mxu0 %v1995
        %v2582 = vpop.f32.mrb[0].mxu0
        %v2583 = vadd.f32 0.0, %v2582
        %v2584 = vpop.f32.mrb[0].mxu0
        %2585 = vmatprep.mubr.f32.mxu0 0.0
        %2586 = vmatmul.mubr.f32.gmra.mrb[0].mxu0 %v1998
        %v2587 = vpop.f32.mrb[0].mxu0
        %v2588 = vadd.f32 0.0, %v2587
        %v2589 = vpop.f32.mrb[0].mxu0
        %2590 = vmatprep.mubr.f32.mxu0 0.0
        %2591 = vmatmul.mubr.f32.gmra.mrb[0].mxu0 %v2000
        %v2592 = vpop.f32.mrb[0].mxu0
        %v2593 = vadd.f32 0.0, %v2592
        %v2594 = vpop.f32.mrb[0].mxu0
        %2595 = vmatprep.mubr.f32.mxu0 0.0
        %2596 = vmatmul.mubr.f32.gmra.mrb[0].mxu0 %v2003
        %v2597 = vpop.f32.mrb[0].mxu0
        %v2598 = vadd.f32 0.0, %v2597
        %v2599 = vpop.f32.mrb[0].mxu0
        %2600 = vmatprep.mubr.f32.mxu0 0.0
        %2601 = vmatmul.mubr.f32.gmra.mrb[0].mxu0 %v2005
        %v2602 = vpop.f32.mrb[0].mxu0
        %v2603 = vadd.f32 0.0, %v2602
        %v2604 = vpop.f32.mrb[0].mxu0
        %2605 = vmatprep.mubr.f32.mxu0 0.0
        %2606 = vmatmul.mubr.f32.gmra.mrb[0].mxu0 %v2008
        %v2607 = vpop.f32.mrb[0].mxu0
        %v2608 = vadd.f32 0.0, %v2607
        %v2609 = vpop.f32.mrb[0].mxu0
        %2610 = vmatprep.mubr.f32.mxu0 0.0
        %2611 = vmatmul.mubr.f32.gmra.mrb[0].mxu0 %v2010
        %v2612 = vpop.f32.mrb[0].mxu0
        %v2613 = vadd.f32 0.0, %v2612
        %v2614 = vpop.f32.mrb[0].mxu0
        %2615 = vmatprep.mubr.f32.mxu0 0.0
        %2616 = vmatmul.mubr.f32.gmra.mrb[0].mxu0 %v2013
        %v2617 = vpop.f32.mrb[0].mxu0
        %v2618 = vadd.f32 0.0, %v2617
        %v2619 = vpop.f32.mrb[0].mxu0
        %2620 = vmatprep.mubr.f32.mxu0 0.0
        %2621 = vmatmul.mubr.f32.gmra.mrb[0].mxu0 %v2015
        %v2622 = vpop.f32.mrb[0].mxu0
        %v2623 = vadd.f32 0.0, %v2622
        %v2624 = vpop.f32.mrb[0].mxu0
        %2625 = vdwg.mxu0
        %v2626 = vadd.f32 %v2424, %v2528
        %v2627 = vadd.f32 %v2425, %v2533
        %v2628 = vadd.f32 %v2426, %v2538
        %v2629 = vadd.f32 %v2427, %v2543
        %v2630 = vadd.f32 %v2428, %v2548
        %v2631 = vadd.f32 %v2429, %v2553
        %v2632 = vadd.f32 %v2430, %v2558
        %v2633 = vadd.f32 %v2431, %v2563
        %v2634 = vadd.f32 %v2432, %v2568
        %v2635 = vadd.f32 %v2433, %v2573
        %v2636 = vadd.f32 %v2434, %v2578
        %v2637 = vadd.f32 %v2435, %v2583
        %v2638 = vadd.f32 %v2436, %v2588
        %v2639 = vadd.f32 %v2437, %v2593
        %v2640 = vadd.f32 %v2438, %v2598
        %v2641 = vadd.f32 %v2439, %v2603
        %v2642 = vadd.f32 %v2440, %v2608
        %v2643 = vadd.f32 %v2441, %v2613
        %v2644 = vadd.f32 %v2442, %v2618
        %v2645 = vadd.f32 %v2443, %v2623
        %v2646 = vld [vmem:[#allocation8] sm:$0x1]
        %v2648 = vlaneseq
        %v2649 = vshrl.u32 %v2648, 7
        %v2650 = vsub.s32 0, %v2649
        %v2651 = vrot.slane %v2646, %v2650
        %v2653 = vadd.f32 %v2626, %v2651
        %v2654 = vadd.f32 %v2627, %v2651
        %v2655 = vadd.f32 %v2628, %v2651
        %v2656 = vadd.f32 %v2629, %v2651
        %v2657 = vadd.f32 %v2630, %v2651
        %v2658 = vadd.f32 %v2631, %v2651
        %v2659 = vadd.f32 %v2632, %v2651
        %v2660 = vadd.f32 %v2633, %v2651
        %v2661 = vadd.f32 %v2634, %v2651
        %v2662 = vadd.f32 %v2635, %v2651
        %v2663 = vadd.f32 %v2636, %v2651
        %v2664 = vadd.f32 %v2637, %v2651
        %v2665 = vadd.f32 %v2638, %v2651
        %v2666 = vadd.f32 %v2639, %v2651
        %v2667 = vadd.f32 %v2640, %v2651
        %v2668 = vadd.f32 %v2641, %v2651
        %v2669 = vadd.f32 %v2642, %v2651
        %v2670 = vadd.f32 %v2643, %v2651
        %v2671 = vadd.f32 %v2644, %v2651
        %v2672 = vadd.f32 %v2645, %v2651
        %s2673 = smul.u32 %s30, 8
        %s2674 = ssub.s32 %s2673, 1
        %v2675 = vstv %s2674
        %v2676 = vadd.s32 %v2675, 1
        %v2677 = vadd.s32 %v2675, 2
        %v2678 = vadd.s32 %v2675, 3
        %v2679 = vadd.s32 %v2675, 4
        %v2680 = vadd.s32 %v2675, 5
        %v2681 = vadd.s32 %v2675, 6
        %v2682 = vadd.s32 %v2675, 7
        %v2683 = vadd.s32 %v2675, 8
        %v2684 = vadd.s32 %v2675, 9
        %vm2685 = vcmp.ge.s32.totalorder %v2675, 0
        %vm2686 = vcmp.ge.s32.totalorder %v2676, 0
        %vm2687 = vcmp.ge.s32.totalorder %v2677, 0
        %vm2688 = vcmp.ge.s32.totalorder %v2678, 0
        %vm2689 = vcmp.ge.s32.totalorder %v2679, 0
        %vm2690 = vcmp.ge.s32.totalorder %v2680, 0
        %vm2691 = vcmp.ge.s32.totalorder %v2681, 0
        %vm2692 = vcmp.ge.s32.totalorder %v2682, 0
        %vm2693 = vcmp.ge.s32.totalorder %v2683, 0
        %vm2694 = vcmp.ge.s32.totalorder %v2684, 0
        %vm2695 = vcmp.lt.s32.totalorder %v2675, 16
        %vm2696 = vcmp.lt.s32.totalorder %v2676, 16
        %vm2697 = vcmp.lt.s32.totalorder %v2677, 16
        %vm2698 = vcmp.lt.s32.totalorder %v2678, 16
        %vm2699 = vcmp.lt.s32.totalorder %v2679, 16
        %vm2700 = vcmp.lt.s32.totalorder %v2680, 16
        %vm2701 = vcmp.lt.s32.totalorder %v2681, 16
        %vm2702 = vcmp.lt.s32.totalorder %v2682, 16
        %vm2703 = vcmp.lt.s32.totalorder %v2683, 16
        %vm2704 = vcmp.lt.s32.totalorder %v2684, 16
        %vm2705 = vmand %vm2685, %vm2695
        %vm2706 = vmand %vm2686, %vm2696
        %vm2707 = vmand %vm2687, %vm2697
        %vm2708 = vmand %vm2688, %vm2698
        %vm2709 = vmand %vm2689, %vm2699
        %vm2710 = vmand %vm2690, %vm2700
        %vm2711 = vmand %vm2691, %vm2701
        %vm2712 = vmand %vm2692, %vm2702
        %vm2713 = vmand %vm2693, %vm2703
        %vm2714 = vmand %vm2694, %vm2704
        %v2715 = vsel %vm2705, %v2653, 0.0
        %v2716 = vsel %vm2705, %v2654, 0.0
        %v2717 = vsel %vm2706, %v2655, 0.0
        %v2718 = vsel %vm2706, %v2656, 0.0
        %v2719 = vsel %vm2707, %v2657, 0.0
        %v2720 = vsel %vm2707, %v2658, 0.0
        %v2721 = vsel %vm2708, %v2659, 0.0
        %v2722 = vsel %vm2708, %v2660, 0.0
        %v2723 = vsel %vm2709, %v2661, 0.0
        %v2724 = vsel %vm2709, %v2662, 0.0
        %v2725 = vsel %vm2710, %v2663, 0.0
        %v2726 = vsel %vm2710, %v2664, 0.0
        %v2727 = vsel %vm2711, %v2665, 0.0
        %v2728 = vsel %vm2711, %v2666, 0.0
        %v2729 = vsel %vm2712, %v2667, 0.0
        %v2730 = vsel %vm2712, %v2668, 0.0
        %v2731 = vsel %vm2713, %v2669, 0.0
        %v2732 = vsel %vm2713, %v2670, 0.0
        %v2733 = vsel %vm2714, %v2671, 0.0
        %v2734 = vsel %vm2714, %v2672, 0.0
        %v2735 = vxor.u32 %v2715, 2147483648
        %v2736 = vxor.u32 %v2716, 2147483648
        %v2737 = vxor.u32 %v2717, 2147483648
        %v2738 = vxor.u32 %v2718, 2147483648
        %v2739 = vxor.u32 %v2719, 2147483648
        %v2740 = vxor.u32 %v2720, 2147483648
        %v2741 = vxor.u32 %v2721, 2147483648
        %v2742 = vxor.u32 %v2722, 2147483648
        %v2743 = vxor.u32 %v2723, 2147483648
        %v2744 = vxor.u32 %v2724, 2147483648
        %v2745 = vxor.u32 %v2725, 2147483648
        %v2746 = vxor.u32 %v2726, 2147483648
        %v2747 = vxor.u32 %v2727, 2147483648
        %v2748 = vxor.u32 %v2728, 2147483648
        %v2749 = vxor.u32 %v2729, 2147483648
        %v2750 = vxor.u32 %v2730, 2147483648
        %v2751 = vxor.u32 %v2731, 2147483648
        %v2752 = vxor.u32 %v2732, 2147483648
        %v2753 = vxor.u32 %v2733, 2147483648
        %v2754 = vxor.u32 %v2734, 2147483648
        %v2755 = vmul.f32 %v2735, 1.442695
        %v2756 = vpow.pop %v2755
        %v2757 = vmul.f32 %v2736, 1.442695
        %v2758 = vpow.pop %v2757
        %v2759 = vmul.f32 %v2737, 1.442695
        %v2760 = vpow.pop %v2759
        %v2761 = vmul.f32 %v2738, 1.442695
        %v2762 = vpow.pop %v2761
        %v2763 = vmul.f32 %v2739, 1.442695
        %v2764 = vpow.pop %v2763
        %v2765 = vmul.f32 %v2740, 1.442695
        %v2766 = vpow.pop %v2765
        %v2767 = vmul.f32 %v2741, 1.442695
        %v2768 = vpow.pop %v2767
        %v2769 = vmul.f32 %v2742, 1.442695
        %v2770 = vpow.pop %v2769
        %v2771 = vmul.f32 %v2743, 1.442695
        %v2772 = vpow.pop %v2771
        %v2773 = vmul.f32 %v2744, 1.442695
        %v2774 = vpow.pop %v2773
        %v2775 = vmul.f32 %v2745, 1.442695
        %v2776 = vpow.pop %v2775
        %v2777 = vmul.f32 %v2746, 1.442695
        %v2778 = vpow.pop %v2777
        %v2779 = vmul.f32 %v2747, 1.442695
        %v2780 = vpow.pop %v2779
        %v2781 = vmul.f32 %v2748, 1.442695
        %v2782 = vpow.pop %v2781
        %v2783 = vmul.f32 %v2749, 1.442695
        %v2784 = vpow.pop %v2783
        %v2785 = vmul.f32 %v2750, 1.442695
        %v2786 = vpow.pop %v2785
        %v2787 = vmul.f32 %v2751, 1.442695
        %v2788 = vpow.pop %v2787
        %v2789 = vmul.f32 %v2752, 1.442695
        %v2790 = vpow.pop %v2789
        %v2791 = vmul.f32 %v2753, 1.442695
        %v2792 = vpow.pop %v2791
        %v2793 = vmul.f32 %v2754, 1.442695
        %v2794 = vpow.pop %v2793
        %v2795 = vadd.f32 %v2756, 1.0
        %v2796 = vadd.f32 %v2758, 1.0
        %v2797 = vadd.f32 %v2760, 1.0
        %v2798 = vadd.f32 %v2762, 1.0
        %v2799 = vadd.f32 %v2764, 1.0
        %v2800 = vadd.f32 %v2766, 1.0
        %v2801 = vadd.f32 %v2768, 1.0
        %v2802 = vadd.f32 %v2770, 1.0
        %v2803 = vadd.f32 %v2772, 1.0
        %v2804 = vadd.f32 %v2774, 1.0
        %v2805 = vadd.f32 %v2776, 1.0
        %v2806 = vadd.f32 %v2778, 1.0
        %v2807 = vadd.f32 %v2780, 1.0
        %v2808 = vadd.f32 %v2782, 1.0
        %v2809 = vadd.f32 %v2784, 1.0
        %v2810 = vadd.f32 %v2786, 1.0
        %v2811 = vadd.f32 %v2788, 1.0
        %v2812 = vadd.f32 %v2790, 1.0
        %v2813 = vadd.f32 %v2792, 1.0
        %v2814 = vadd.f32 %v2794, 1.0
        %v2815 = vrcp.pop %v2795
        %v2816 = vmul.f32 1.0, %v2815
        %v2817 = vrcp.pop %v2796
        %v2818 = vmul.f32 1.0, %v2817
        %v2819 = vrcp.pop %v2797
        %v2820 = vmul.f32 1.0, %v2819
        %v2821 = vrcp.pop %v2798
        %v2822 = vmul.f32 1.0, %v2821
        %v2823 = vrcp.pop %v2799
        %v2824 = vmul.f32 1.0, %v2823
        %v2825 = vrcp.pop %v2800
        %v2826 = vmul.f32 1.0, %v2825
        %v2827 = vrcp.pop %v2801
        %v2828 = vmul.f32 1.0, %v2827
        %v2829 = vrcp.pop %v2802
        %v2830 = vmul.f32 1.0, %v2829
        %v2831 = vrcp.pop %v2803
        %v2832 = vmul.f32 1.0, %v2831
        %v2833 = vrcp.pop %v2804
        %v2834 = vmul.f32 1.0, %v2833
        %v2835 = vrcp.pop %v2805
        %v2836 = vmul.f32 1.0, %v2835
        %v2837 = vrcp.pop %v2806
        %v2838 = vmul.f32 1.0, %v2837
        %v2839 = vrcp.pop %v2807
        %v2840 = vmul.f32 1.0, %v2839
        %v2841 = vrcp.pop %v2808
        %v2842 = vmul.f32 1.0, %v2841
        %v2843 = vrcp.pop %v2809
        %v2844 = vmul.f32 1.0, %v2843
        %v2845 = vrcp.pop %v2810
        %v2846 = vmul.f32 1.0, %v2845
        %v2847 = vrcp.pop %v2811
        %v2848 = vmul.f32 1.0, %v2847
        %v2849 = vrcp.pop %v2812
        %v2850 = vmul.f32 1.0, %v2849
        %v2851 = vrcp.pop %v2813
        %v2852 = vmul.f32 1.0, %v2851
        %v2853 = vrcp.pop %v2814
        %v2854 = vmul.f32 1.0, %v2853
        %v2855 = vmul.f32 %v2715, %v2816
        %v2856 = vmul.f32 %v2716, %v2818
        %v2857 = vmul.f32 %v2717, %v2820
        %v2858 = vmul.f32 %v2718, %v2822
        %v2859 = vmul.f32 %v2719, %v2824
        %v2860 = vmul.f32 %v2720, %v2826
        %v2861 = vmul.f32 %v2721, %v2828
        %v2862 = vmul.f32 %v2722, %v2830
        %v2863 = vmul.f32 %v2723, %v2832
        %v2864 = vmul.f32 %v2724, %v2834
        %v2865 = vmul.f32 %v2725, %v2836
        %v2866 = vmul.f32 %v2726, %v2838
        %v2867 = vmul.f32 %v2727, %v2840
        %v2868 = vmul.f32 %v2728, %v2842
        %v2869 = vmul.f32 %v2729, %v2844
        %v2870 = vmul.f32 %v2730, %v2846
        %v2871 = vmul.f32 %v2731, %v2848
        %v2872 = vmul.f32 %v2732, %v2850
        %v2873 = vmul.f32 %v2733, %v2852
        %v2874 = vmul.f32 %v2734, %v2854
        %2875 = vst [vmem:[#allocation4] sm:$0x1] 0.0
        %2876 = vst [vmem:[#allocation4 + $0x18] sm:$0x1] 0.0
        %2877 = vst [vmem:[#allocation4 + $0x30] sm:$0x1] 0.0
        %2878 = vst [vmem:[#allocation4 + $0x48] sm:$0x1] 0.0
        %2879 = vst [vmem:[#allocation4 + $0x60] sm:$0x1] 0.0
        %2880 = vst [vmem:[#allocation4 + $0x78] sm:$0x1] 0.0
        %2881 = vst [vmem:[#allocation4 + $0x90] sm:$0x1] 0.0
        %2882 = vst [vmem:[#allocation4 + $0xa8] sm:$0x1] 0.0
        %2883 = vst [vmem:[#allocation4 + $0xc0] sm:$0x1] 0.0
        %2884 = vst [vmem:[#allocation4 + $0xd8] sm:$0x1] 0.0
        %2885 = vst [vmem:[#allocation4 + $0x11] sm:$0x1] 0.0
        %2886 = vst [vmem:[#allocation4 + $0x29] sm:$0x1] 0.0
        %2887 = vst [vmem:[#allocation4 + $0x41] sm:$0x1] 0.0
        %2888 = vst [vmem:[#allocation4 + $0x59] sm:$0x1] 0.0
        %2889 = vst [vmem:[#allocation4 + $0x71] sm:$0x1] 0.0
        %2890 = vst [vmem:[#allocation4 + $0x89] sm:$0x1] 0.0
        %2891 = vst [vmem:[#allocation4 + $0xa1] sm:$0x1] 0.0
        %2892 = vst [vmem:[#allocation4 + $0xb9] sm:$0x1] 0.0
        %2893 = vst [vmem:[#allocation4 + $0xd1] sm:$0x1] 0.0
        %2894 = vst [vmem:[#allocation4 + $0xe9] sm:$0x1] 0.0
        %2895 = vst [vmem:[#allocation4 + $0x1] sm:$0xff] %v2855
        %2896 = vst [vmem:[#allocation4 + $0x9] sm:$0xff] %v2856
        %2897 = vst [vmem:[#allocation4 + $0x19] sm:$0xff] %v2857
        %2898 = vst [vmem:[#allocation4 + $0x21] sm:$0xff] %v2858
        %2899 = vst [vmem:[#allocation4 + $0x31] sm:$0xff] %v2859
        %2900 = vst [vmem:[#allocation4 + $0x39] sm:$0xff] %v2860
        %2901 = vst [vmem:[#allocation4 + $0x49] sm:$0xff] %v2861
        %2902 = vst [vmem:[#allocation4 + $0x51] sm:$0xff] %v2862
        %2903 = vst [vmem:[#allocation4 + $0x61] sm:$0xff] %v2863
        %2904 = vst [vmem:[#allocation4 + $0x69] sm:$0xff] %v2864
        %2905 = vst [vmem:[#allocation4 + $0x79] sm:$0xff] %v2865
        %2906 = vst [vmem:[#allocation4 + $0x81] sm:$0xff] %v2866
        %2907 = vst [vmem:[#allocation4 + $0x91] sm:$0xff] %v2867
        %2908 = vst [vmem:[#allocation4 + $0x99] sm:$0xff] %v2868
        %2909 = vst [vmem:[#allocation4 + $0xa9] sm:$0xff] %v2869
        %2910 = vst [vmem:[#allocation4 + $0xb1] sm:$0xff] %v2870
        %2911 = vst [vmem:[#allocation4 + $0xc1] sm:$0xff] %v2871
        %2912 = vst [vmem:[#allocation4 + $0xc9] sm:$0xff] %v2872
        %2913 = vst [vmem:[#allocation4 + $0xd9] sm:$0xff] %v2873
        %2914 = vst [vmem:[#allocation4 + $0xe1] sm:$0xff] %v2874
        %v2915 = vld [vmem:[#allocation4] sm:$0xff]
        %v2916 = vld [vmem:[#allocation4 + $0x8] sm:$0xff]
        %v2917 = vld [vmem:[#allocation4 + $0x10] sm:$0x3]
        %v2918 = vld [vmem:[#allocation4 + $0x18] sm:$0xff]
        %v2919 = vld [vmem:[#allocation4 + $0x20] sm:$0xff]
        %v2920 = vld [vmem:[#allocation4 + $0x28] sm:$0x3]
        %v2921 = vld [vmem:[#allocation4 + $0x30] sm:$0xff]
        %v2922 = vld [vmem:[#allocation4 + $0x38] sm:$0xff]
        %v2923 = vld [vmem:[#allocation4 + $0x40] sm:$0x3]
        %v2924 = vld [vmem:[#allocation4 + $0x48] sm:$0xff]
        %v2925 = vld [vmem:[#allocation4 + $0x50] sm:$0xff]
        %v2926 = vld [vmem:[#allocation4 + $0x58] sm:$0x3]
        %v2927 = vld [vmem:[#allocation4 + $0x60] sm:$0xff]
        %v2928 = vld [vmem:[#allocation4 + $0x68] sm:$0xff]
        %v2929 = vld [vmem:[#allocation4 + $0x70] sm:$0x3]
        %v2930 = vld [vmem:[#allocation4 + $0x78] sm:$0xff]
        %v2931 = vld [vmem:[#allocation4 + $0x80] sm:$0xff]
        %v2932 = vld [vmem:[#allocation4 + $0x88] sm:$0x3]
        %v2933 = vld [vmem:[#allocation4 + $0x90] sm:$0xff]
        %v2934 = vld [vmem:[#allocation4 + $0x98] sm:$0xff]
        %v2935 = vld [vmem:[#allocation4 + $0xa0] sm:$0x3]
        %v2936 = vld [vmem:[#allocation4 + $0xa8] sm:$0xff]
        %v2937 = vld [vmem:[#allocation4 + $0xb0] sm:$0xff]
        %v2938 = vld [vmem:[#allocation4 + $0xb8] sm:$0x3]
        %v2939 = vld [vmem:[#allocation4 + $0xc0] sm:$0xff]
        %v2940 = vld [vmem:[#allocation4 + $0xc8] sm:$0xff]
        %v2941 = vld [vmem:[#allocation4 + $0xd0] sm:$0x3]
        %v2942 = vld [vmem:[#allocation4 + $0xd8] sm:$0xff]
        %v2943 = vld [vmem:[#allocation4 + $0xe0] sm:$0xff]
        %v2944 = vld [vmem:[#allocation4 + $0xe8] sm:$0x3]
        %v2945 = vld [vmem:[#allocation10] sm:$0xff]
        %v2946 = vld [vmem:[#allocation10 + $0x8] sm:$0xff]
        %v2947 = vld [vmem:[#allocation10 + $0x10] sm:$0xff]
        %v2948 = vld [vmem:[#allocation10 + $0x18] sm:$0xff]
        %v2949 = vld [vmem:[#allocation10 + $0x20] sm:$0xff]
        %v2950 = vld [vmem:[#allocation10 + $0x28] sm:$0xff]
        %v2951 = vld [vmem:[#allocation10 + $0x30] sm:$0xff]
        %v2952 = vld [vmem:[#allocation10 + $0x38] sm:$0xff]
        %v2953 = vld [vmem:[#allocation10 + $0x40] sm:$0xff]
        %v2954 = vld [vmem:[#allocation10 + $0x48] sm:$0xff]
        %v2955 = vld [vmem:[#allocation10 + $0x50] sm:$0xff]
        %v2956 = vld [vmem:[#allocation10 + $0x58] sm:$0xff]
        %v2957 = vld [vmem:[#allocation10 + $0x60] sm:$0xff]
        %v2958 = vld [vmem:[#allocation10 + $0x68] sm:$0xff]
        %v2959 = vld [vmem:[#allocation10 + $0x70] sm:$0xff]
        %v2960 = vld [vmem:[#allocation10 + $0x78] sm:$0xff]
        %s2961 = scalar_lea.vmem [#allocation10], 384
        %v2962 = vld [vmem:[%s2961] sm:$0xff]
        %v2963 = vld [vmem:[%s2961 + $0x8] sm:$0xff]
        %v2964 = vld [vmem:[%s2961 + $0x10] sm:$0xff]
        %v2965 = vld [vmem:[%s2961 + $0x18] sm:$0xff]
        %v2966 = vld [vmem:[%s2961 + $0x20] sm:$0xff]
        %v2967 = vld [vmem:[%s2961 + $0x28] sm:$0xff]
        %v2968 = vld [vmem:[%s2961 + $0x30] sm:$0xff]
        %v2969 = vld [vmem:[%s2961 + $0x38] sm:$0xff]
        %v2970 = vld [vmem:[%s2961 + $0x40] sm:$0xff]
        %v2971 = vld [vmem:[%s2961 + $0x48] sm:$0xff]
        %v2972 = vld [vmem:[%s2961 + $0x50] sm:$0xff]
        %v2973 = vld [vmem:[%s2961 + $0x58] sm:$0xff]
        %v2974 = vld [vmem:[%s2961 + $0x60] sm:$0xff]
        %v2975 = vld [vmem:[%s2961 + $0x68] sm:$0xff]
        %v2976 = vld [vmem:[%s2961 + $0x70] sm:$0xff]
        %v2977 = vld [vmem:[%s2961 + $0x78] sm:$0xff]
        %2978 = vmatprep.subr.mxu0 0.0
        %2979 = vmatpush1.msra.mxu0 %v2962
        %2980 = vmatprep.subr.mxu0 0.0
        %2981 = vmatpush1.msra.mxu0 %v2963
        %2982 = vmatprep.subr.mxu0 0.0
        %2983 = vmatpush1.msra.mxu0 %v2964
        %2984 = vmatprep.subr.mxu0 0.0
        %2985 = vmatpush1.msra.mxu0 %v2965
        %2986 = vmatprep.subr.mxu0 0.0
        %2987 = vmatpush1.msra.mxu0 %v2966
        %2988 = vmatprep.subr.mxu0 0.0
        %2989 = vmatpush1.msra.mxu0 %v2967
        %2990 = vmatprep.subr.mxu0 0.0
        %2991 = vmatpush1.msra.mxu0 %v2968
        %2992 = vmatprep.subr.mxu0 0.0
        %2993 = vmatpush1.msra.mxu0 %v2969
        %2994 = vmatprep.subr.mxu0 0.0
        %2995 = vmatpush1.msra.mxu0 %v2970
        %2996 = vmatprep.subr.mxu0 0.0
        %2997 = vmatpush1.msra.mxu0 %v2971
        %2998 = vmatprep.subr.mxu0 0.0
        %2999 = vmatpush1.msra.mxu0 %v2972
        %3000 = vmatprep.subr.mxu0 0.0
        %3001 = vmatpush1.msra.mxu0 %v2973
        %3002 = vmatprep.subr.mxu0 0.0
        %3003 = vmatpush1.msra.mxu0 %v2974
        %3004 = vmatprep.subr.mxu0 0.0
        %3005 = vmatpush1.msra.mxu0 %v2975
        %3006 = vmatprep.subr.mxu0 0.0
        %3007 = vmatpush1.msra.mxu0 %v2976
        %3008 = vmatprep.subr.mxu0 0.0
        %3009 = vmatpush1.msra.mxu0 %v2977
        %3010 = vmatprep.subr.mxu0 0.0
        %3011 = vmatpush1.msra.mxu0 0.0
        %3012 = vmatprep.subr.mxu0 0.0
        %3013 = vmatpush1.msra.mxu0 0.0
        %3014 = vmatprep.subr.mxu0 0.0
        %3015 = vmatpush1.msra.mxu0 0.0
        %3016 = vmatprep.subr.mxu0 0.0
        %3017 = vmatpush1.msra.mxu0 0.0
        %3018 = vmatprep.subr.mxu0 0.0
        %3019 = vmatpush1.msra.mxu0 0.0
        %3020 = vmatprep.subr.mxu0 0.0
        %3021 = vmatpush1.msra.mxu0 0.0
        %3022 = vmatprep.subr.mxu0 0.0
        %3023 = vmatpush1.msra.mxu0 0.0
        %3024 = vmatprep.subr.mxu0 0.0
        %3025 = vmatpush1.msra.mxu0 0.0
        %3026 = vmatprep.subr.mxu0 0.0
        %3027 = vmatpush1.msra.mxu0 0.0
        %3028 = vmatprep.subr.mxu0 0.0
        %3029 = vmatpush1.msra.mxu0 0.0
        %3030 = vmatprep.subr.mxu0 0.0
        %3031 = vmatpush1.msra.mxu0 0.0
        %3032 = vmatprep.subr.mxu0 0.0
        %3033 = vmatpush1.msra.mxu0 0.0
        %3034 = vmatprep.subr.mxu0 0.0
        %3035 = vmatpush1.msra.mxu0 0.0
        %3036 = vmatprep.subr.mxu0 0.0
        %3037 = vmatpush1.msra.mxu0 0.0
        %3038 = vmatprep.subr.mxu0 0.0
        %3039 = vmatpush1.msra.mxu0 0.0
        %3040 = vmatprep.subr.mxu0 0.0
        %3041 = vmatpush1.msra.mxu0 0.0
        %3042 = vmatprep.mubr.f32.mxu0 0.0
        %3043 = vmatmul.mubr.f32.gmra.mrb[0].mxu0 %v2918
        %v3044 = vpop.f32.mrb[0].mxu0
        %v3045 = vadd.f32 0.0, %v3044
        %v3046 = vpop.f32.mrb[0].mxu0
        %3047 = vmatprep.mubr.f32.mxu0 0.0
        %3048 = vmatmul.mubr.f32.gmra.mrb[0].mxu0 %v2919
        %v3049 = vpop.f32.mrb[0].mxu0
        %v3050 = vadd.f32 0.0, %v3049
        %v3051 = vpop.f32.mrb[0].mxu0
        %3052 = vmatprep.mubr.f32.mxu0 0.0
        %3053 = vmatmul.mubr.f32.gmra.mrb[0].mxu0 %v2921
        %v3054 = vpop.f32.mrb[0].mxu0
        %v3055 = vadd.f32 0.0, %v3054
        %v3056 = vpop.f32.mrb[0].mxu0
        %3057 = vmatprep.mubr.f32.mxu0 0.0
        %3058 = vmatmul.mubr.f32.gmra.mrb[0].mxu0 %v2922
        %v3059 = vpop.f32.mrb[0].mxu0
        %v3060 = vadd.f32 0.0, %v3059
        %v3061 = vpop.f32.mrb[0].mxu0
        %3062 = vmatprep.mubr.f32.mxu0 0.0
        %3063 = vmatmul.mubr.f32.gmra.mrb[0].mxu0 %v2924
        %v3064 = vpop.f32.mrb[0].mxu0
        %v3065 = vadd.f32 0.0, %v3064
        %v3066 = vpop.f32.mrb[0].mxu0
        %3067 = vmatprep.mubr.f32.mxu0 0.0
        %3068 = vmatmul.mubr.f32.gmra.mrb[0].mxu0 %v2925
        %v3069 = vpop.f32.mrb[0].mxu0
        %v3070 = vadd.f32 0.0, %v3069
        %v3071 = vpop.f32.mrb[0].mxu0
        %3072 = vmatprep.mubr.f32.mxu0 0.0
        %3073 = vmatmul.mubr.f32.gmra.mrb[0].mxu0 %v2927
        %v3074 = vpop.f32.mrb[0].mxu0
        %v3075 = vadd.f32 0.0, %v3074
        %v3076 = vpop.f32.mrb[0].mxu0
        %3077 = vmatprep.mubr.f32.mxu0 0.0
        %3078 = vmatmul.mubr.f32.gmra.mrb[0].mxu0 %v2928
        %v3079 = vpop.f32.mrb[0].mxu0
        %v3080 = vadd.f32 0.0, %v3079
        %v3081 = vpop.f32.mrb[0].mxu0
        %3082 = vmatprep.mubr.f32.mxu0 0.0
        %3083 = vmatmul.mubr.f32.gmra.mrb[0].mxu0 %v2930
        %v3084 = vpop.f32.mrb[0].mxu0
        %v3085 = vadd.f32 0.0, %v3084
        %v3086 = vpop.f32.mrb[0].mxu0
        %3087 = vmatprep.mubr.f32.mxu0 0.0
        %3088 = vmatmul.mubr.f32.gmra.mrb[0].mxu0 %v2931
        %v3089 = vpop.f32.mrb[0].mxu0
        %v3090 = vadd.f32 0.0, %v3089
        %v3091 = vpop.f32.mrb[0].mxu0
        %3092 = vmatprep.mubr.f32.mxu0 0.0
        %3093 = vmatmul.mubr.f32.gmra.mrb[0].mxu0 %v2933
        %v3094 = vpop.f32.mrb[0].mxu0
        %v3095 = vadd.f32 0.0, %v3094
        %v3096 = vpop.f32.mrb[0].mxu0
        %3097 = vmatprep.mubr.f32.mxu0 0.0
        %3098 = vmatmul.mubr.f32.gmra.mrb[0].mxu0 %v2934
        %v3099 = vpop.f32.mrb[0].mxu0
        %v3100 = vadd.f32 0.0, %v3099
        %v3101 = vpop.f32.mrb[0].mxu0
        %3102 = vmatprep.mubr.f32.mxu0 0.0
        %3103 = vmatmul.mubr.f32.gmra.mrb[0].mxu0 %v2936
        %v3104 = vpop.f32.mrb[0].mxu0
        %v3105 = vadd.f32 0.0, %v3104
        %v3106 = vpop.f32.mrb[0].mxu0
        %3107 = vmatprep.mubr.f32.mxu0 0.0
        %3108 = vmatmul.mubr.f32.gmra.mrb[0].mxu0 %v2937
        %v3109 = vpop.f32.mrb[0].mxu0
        %v3110 = vadd.f32 0.0, %v3109
        %v3111 = vpop.f32.mrb[0].mxu0
        %3112 = vmatprep.mubr.f32.mxu0 0.0
        %3113 = vmatmul.mubr.f32.gmra.mrb[0].mxu0 %v2939
        %v3114 = vpop.f32.mrb[0].mxu0
        %v3115 = vadd.f32 0.0, %v3114
        %v3116 = vpop.f32.mrb[0].mxu0
        %3117 = vmatprep.mubr.f32.mxu0 0.0
        %3118 = vmatmul.mubr.f32.gmra.mrb[0].mxu0 %v2940
        %v3119 = vpop.f32.mrb[0].mxu0
        %v3120 = vadd.f32 0.0, %v3119
        %v3121 = vpop.f32.mrb[0].mxu0
        %3122 = vdwg.mxu0
        %3123 = vmatprep.subr.mxu0 0.0
        %3124 = vmatpush1.msra.mxu0 %v2945
        %3125 = vmatprep.subr.mxu0 0.0
        %3126 = vmatpush1.msra.mxu0 %v2946
        %3127 = vmatprep.subr.mxu0 0.0
        %3128 = vmatpush1.msra.mxu0 %v2947
        %3129 = vmatprep.subr.mxu0 0.0
        %3130 = vmatpush1.msra.mxu0 %v2948
        %3131 = vmatprep.subr.mxu0 0.0
        %3132 = vmatpush1.msra.mxu0 %v2949
        %3133 = vmatprep.subr.mxu0 0.0
        %3134 = vmatpush1.msra.mxu0 %v2950
        %3135 = vmatprep.subr.mxu0 0.0
        %3136 = vmatpush1.msra.mxu0 %v2951
        %3137 = vmatprep.subr.mxu0 0.0
        %3138 = vmatpush1.msra.mxu0 %v2952
        %3139 = vmatprep.subr.mxu0 0.0
        %3140 = vmatpush1.msra.mxu0 %v2953
        %3141 = vmatprep.subr.mxu0 0.0
        %3142 = vmatpush1.msra.mxu0 %v2954
        %3143 = vmatprep.subr.mxu0 0.0
        %3144 = vmatpush1.msra.mxu0 %v2955
        %3145 = vmatprep.subr.mxu0 0.0
        %3146 = vmatpush1.msra.mxu0 %v2956
        %3147 = vmatprep.subr.mxu0 0.0
        %3148 = vmatpush1.msra.mxu0 %v2957
        %3149 = vmatprep.subr.mxu0 0.0
        %3150 = vmatpush1.msra.mxu0 %v2958
        %3151 = vmatprep.subr.mxu0 0.0
        %3152 = vmatpush1.msra.mxu0 %v2959
        %3153 = vmatprep.subr.mxu0 0.0
        %3154 = vmatpush1.msra.mxu0 %v2960
        %3155 = vmatprep.subr.mxu0 0.0
        %3156 = vmatpush1.msra.mxu0 0.0
        %3157 = vmatprep.subr.mxu0 0.0
        %3158 = vmatpush1.msra.mxu0 0.0
        %3159 = vmatprep.subr.mxu0 0.0
        %3160 = vmatpush1.msra.mxu0 0.0
        %3161 = vmatprep.subr.mxu0 0.0
        %3162 = vmatpush1.msra.mxu0 0.0
        %3163 = vmatprep.subr.mxu0 0.0
        %3164 = vmatpush1.msra.mxu0 0.0
        %3165 = vmatprep.subr.mxu0 0.0
        %3166 = vmatpush1.msra.mxu0 0.0
        %3167 = vmatprep.subr.mxu0 0.0
        %3168 = vmatpush1.msra.mxu0 0.0
        %3169 = vmatprep.subr.mxu0 0.0
        %3170 = vmatpush1.msra.mxu0 0.0
        %3171 = vmatprep.subr.mxu0 0.0
        %3172 = vmatpush1.msra.mxu0 0.0
        %3173 = vmatprep.subr.mxu0 0.0
        %3174 = vmatpush1.msra.mxu0 0.0
        %3175 = vmatprep.subr.mxu0 0.0
        %3176 = vmatpush1.msra.mxu0 0.0
        %3177 = vmatprep.subr.mxu0 0.0
        %3178 = vmatpush1.msra.mxu0 0.0
        %3179 = vmatprep.subr.mxu0 0.0
        %3180 = vmatpush1.msra.mxu0 0.0
        %3181 = vmatprep.subr.mxu0 0.0
        %3182 = vmatpush1.msra.mxu0 0.0
        %3183 = vmatprep.subr.mxu0 0.0
        %3184 = vmatpush1.msra.mxu0 0.0
        %3185 = vmatprep.subr.mxu0 0.0
        %3186 = vmatpush1.msra.mxu0 0.0
        %3187 = vmatprep.mubr.f32.mxu0 0.0
        %3188 = vmatmul.mubr.f32.gmra.mrb[0].mxu0 %v2915
        %v3189 = vpop.f32.mrb[0].mxu0
        %v3190 = vadd.f32 %v3045, %v3189
        %v3191 = vpop.f32.mrb[0].mxu0
        %3192 = vmatprep.mubr.f32.mxu0 0.0
        %3193 = vmatmul.mubr.f32.gmra.mrb[0].mxu0 %v2916
        %v3194 = vpop.f32.mrb[0].mxu0
        %v3195 = vadd.f32 %v3050, %v3194
        %v3196 = vpop.f32.mrb[0].mxu0
        %3197 = vmatprep.mubr.f32.mxu0 0.0
        %3198 = vmatmul.mubr.f32.gmra.mrb[0].mxu0 %v2918
        %v3199 = vpop.f32.mrb[0].mxu0
        %v3200 = vadd.f32 %v3055, %v3199
        %v3201 = vpop.f32.mrb[0].mxu0
        %3202 = vmatprep.mubr.f32.mxu0 0.0
        %3203 = vmatmul.mubr.f32.gmra.mrb[0].mxu0 %v2919
        %v3204 = vpop.f32.mrb[0].mxu0
        %v3205 = vadd.f32 %v3060, %v3204
        %v3206 = vpop.f32.mrb[0].mxu0
        %3207 = vmatprep.mubr.f32.mxu0 0.0
        %3208 = vmatmul.mubr.f32.gmra.mrb[0].mxu0 %v2921
        %v3209 = vpop.f32.mrb[0].mxu0
        %v3210 = vadd.f32 %v3065, %v3209
        %v3211 = vpop.f32.mrb[0].mxu0
        %3212 = vmatprep.mubr.f32.mxu0 0.0
        %3213 = vmatmul.mubr.f32.gmra.mrb[0].mxu0 %v2922
        %v3214 = vpop.f32.mrb[0].mxu0
        %v3215 = vadd.f32 %v3070, %v3214
        %v3216 = vpop.f32.mrb[0].mxu0
        %3217 = vmatprep.mubr.f32.mxu0 0.0
        %3218 = vmatmul.mubr.f32.gmra.mrb[0].mxu0 %v2924
        %v3219 = vpop.f32.mrb[0].mxu0
        %v3220 = vadd.f32 %v3075, %v3219
        %v3221 = vpop.f32.mrb[0].mxu0
        %3222 = vmatprep.mubr.f32.mxu0 0.0
        %3223 = vmatmul.mubr.f32.gmra.mrb[0].mxu0 %v2925
        %v3224 = vpop.f32.mrb[0].mxu0
        %v3225 = vadd.f32 %v3080, %v3224
        %v3226 = vpop.f32.mrb[0].mxu0
        %3227 = vmatprep.mubr.f32.mxu0 0.0
        %3228 = vmatmul.mubr.f32.gmra.mrb[0].mxu0 %v2927
        %v3229 = vpop.f32.mrb[0].mxu0
        %v3230 = vadd.f32 %v3085, %v3229
        %v3231 = vpop.f32.mrb[0].mxu0
        %3232 = vmatprep.mubr.f32.mxu0 0.0
        %3233 = vmatmul.mubr.f32.gmra.mrb[0].mxu0 %v2928
        %v3234 = vpop.f32.mrb[0].mxu0
        %v3235 = vadd.f32 %v3090, %v3234
        %v3236 = vpop.f32.mrb[0].mxu0
        %3237 = vmatprep.mubr.f32.mxu0 0.0
        %3238 = vmatmul.mubr.f32.gmra.mrb[0].mxu0 %v2930
        %v3239 = vpop.f32.mrb[0].mxu0
        %v3240 = vadd.f32 %v3095, %v3239
        %v3241 = vpop.f32.mrb[0].mxu0
        %3242 = vmatprep.mubr.f32.mxu0 0.0
        %3243 = vmatmul.mubr.f32.gmra.mrb[0].mxu0 %v2931
        %v3244 = vpop.f32.mrb[0].mxu0
        %v3245 = vadd.f32 %v3100, %v3244
        %v3246 = vpop.f32.mrb[0].mxu0
        %3247 = vmatprep.mubr.f32.mxu0 0.0
        %3248 = vmatmul.mubr.f32.gmra.mrb[0].mxu0 %v2933
        %v3249 = vpop.f32.mrb[0].mxu0
        %v3250 = vadd.f32 %v3105, %v3249
        %v3251 = vpop.f32.mrb[0].mxu0
        %3252 = vmatprep.mubr.f32.mxu0 0.0
        %3253 = vmatmul.mubr.f32.gmra.mrb[0].mxu0 %v2934
        %v3254 = vpop.f32.mrb[0].mxu0
        %v3255 = vadd.f32 %v3110, %v3254
        %v3256 = vpop.f32.mrb[0].mxu0
        %3257 = vmatprep.mubr.f32.mxu0 0.0
        %3258 = vmatmul.mubr.f32.gmra.mrb[0].mxu0 %v2936
        %v3259 = vpop.f32.mrb[0].mxu0
        %v3260 = vadd.f32 %v3115, %v3259
        %v3261 = vpop.f32.mrb[0].mxu0
        %3262 = vmatprep.mubr.f32.mxu0 0.0
        %3263 = vmatmul.mubr.f32.gmra.mrb[0].mxu0 %v2937
        %v3264 = vpop.f32.mrb[0].mxu0
        %v3265 = vadd.f32 %v3120, %v3264
        %v3266 = vpop.f32.mrb[0].mxu0
        %3267 = vdwg.mxu0
        %s3268 = scalar_lea.vmem [#allocation10], 768
        %v3269 = vld [vmem:[%s3268] sm:$0xff]
        %v3270 = vld [vmem:[%s3268 + $0x8] sm:$0xff]
        %v3271 = vld [vmem:[%s3268 + $0x10] sm:$0xff]
        %v3272 = vld [vmem:[%s3268 + $0x18] sm:$0xff]
        %v3273 = vld [vmem:[%s3268 + $0x20] sm:$0xff]
        %v3274 = vld [vmem:[%s3268 + $0x28] sm:$0xff]
        %v3275 = vld [vmem:[%s3268 + $0x30] sm:$0xff]
        %v3276 = vld [vmem:[%s3268 + $0x38] sm:$0xff]
        %v3277 = vld [vmem:[%s3268 + $0x40] sm:$0xff]
        %v3278 = vld [vmem:[%s3268 + $0x48] sm:$0xff]
        %v3279 = vld [vmem:[%s3268 + $0x50] sm:$0xff]
        %v3280 = vld [vmem:[%s3268 + $0x58] sm:$0xff]
        %v3281 = vld [vmem:[%s3268 + $0x60] sm:$0xff]
        %v3282 = vld [vmem:[%s3268 + $0x68] sm:$0xff]
        %v3283 = vld [vmem:[%s3268 + $0x70] sm:$0xff]
        %v3284 = vld [vmem:[%s3268 + $0x78] sm:$0xff]
        %3285 = vmatprep.subr.mxu0 0.0
        %3286 = vmatpush1.msra.mxu0 %v3269
        %3287 = vmatprep.subr.mxu0 0.0
        %3288 = vmatpush1.msra.mxu0 %v3270
        %3289 = vmatprep.subr.mxu0 0.0
        %3290 = vmatpush1.msra.mxu0 %v3271
        %3291 = vmatprep.subr.mxu0 0.0
        %3292 = vmatpush1.msra.mxu0 %v3272
        %3293 = vmatprep.subr.mxu0 0.0
        %3294 = vmatpush1.msra.mxu0 %v3273
        %3295 = vmatprep.subr.mxu0 0.0
        %3296 = vmatpush1.msra.mxu0 %v3274
        %3297 = vmatprep.subr.mxu0 0.0
        %3298 = vmatpush1.msra.mxu0 %v3275
        %3299 = vmatprep.subr.mxu0 0.0
        %3300 = vmatpush1.msra.mxu0 %v3276
        %3301 = vmatprep.subr.mxu0 0.0
        %3302 = vmatpush1.msra.mxu0 %v3277
        %3303 = vmatprep.subr.mxu0 0.0
        %3304 = vmatpush1.msra.mxu0 %v3278
        %3305 = vmatprep.subr.mxu0 0.0
        %3306 = vmatpush1.msra.mxu0 %v3279
        %3307 = vmatprep.subr.mxu0 0.0
        %3308 = vmatpush1.msra.mxu0 %v3280
        %3309 = vmatprep.subr.mxu0 0.0
        %3310 = vmatpush1.msra.mxu0 %v3281
        %3311 = vmatprep.subr.mxu0 0.0
        %3312 = vmatpush1.msra.mxu0 %v3282
        %3313 = vmatprep.subr.mxu0 0.0
        %3314 = vmatpush1.msra.mxu0 %v3283
        %3315 = vmatprep.subr.mxu0 0.0
        %3316 = vmatpush1.msra.mxu0 %v3284
        %3317 = vmatprep.subr.mxu0 0.0
        %3318 = vmatpush1.msra.mxu0 0.0
        %3319 = vmatprep.subr.mxu0 0.0
        %3320 = vmatpush1.msra.mxu0 0.0
        %3321 = vmatprep.subr.mxu0 0.0
        %3322 = vmatpush1.msra.mxu0 0.0
        %3323 = vmatprep.subr.mxu0 0.0
        %3324 = vmatpush1.msra.mxu0 0.0
        %3325 = vmatprep.subr.mxu0 0.0
        %3326 = vmatpush1.msra.mxu0 0.0
        %3327 = vmatprep.subr.mxu0 0.0
        %3328 = vmatpush1.msra.mxu0 0.0
        %3329 = vmatprep.subr.mxu0 0.0
        %3330 = vmatpush1.msra.mxu0 0.0
        %3331 = vmatprep.subr.mxu0 0.0
        %3332 = vmatpush1.msra.mxu0 0.0
        %3333 = vmatprep.subr.mxu0 0.0
        %3334 = vmatpush1.msra.mxu0 0.0
        %3335 = vmatprep.subr.mxu0 0.0
        %3336 = vmatpush1.msra.mxu0 0.0
        %3337 = vmatprep.subr.mxu0 0.0
        %3338 = vmatpush1.msra.mxu0 0.0
        %3339 = vmatprep.subr.mxu0 0.0
        %3340 = vmatpush1.msra.mxu0 0.0
        %3341 = vmatprep.subr.mxu0 0.0
        %3342 = vmatpush1.msra.mxu0 0.0
        %3343 = vmatprep.subr.mxu0 0.0
        %3344 = vmatpush1.msra.mxu0 0.0
        %3345 = vmatprep.subr.mxu0 0.0
        %3346 = vmatpush1.msra.mxu0 0.0
        %3347 = vmatprep.subr.mxu0 0.0
        %3348 = vmatpush1.msra.mxu0 0.0
        %3349 = vmatprep.mubr.f32.mxu0 0.0
        %3350 = vmatmul.mubr.f32.gmra.mrb[0].mxu0 %v2921
        %v3351 = vpop.f32.mrb[0].mxu0
        %v3352 = vadd.f32 0.0, %v3351
        %v3353 = vpop.f32.mrb[0].mxu0
        %3354 = vmatprep.mubr.f32.mxu0 0.0
        %3355 = vmatmul.mubr.f32.gmra.mrb[0].mxu0 %v2922
        %v3356 = vpop.f32.mrb[0].mxu0
        %v3357 = vadd.f32 0.0, %v3356
        %v3358 = vpop.f32.mrb[0].mxu0
        %3359 = vmatprep.mubr.f32.mxu0 0.0
        %3360 = vmatmul.mubr.f32.gmra.mrb[0].mxu0 %v2924
        %v3361 = vpop.f32.mrb[0].mxu0
        %v3362 = vadd.f32 0.0, %v3361
        %v3363 = vpop.f32.mrb[0].mxu0
        %3364 = vmatprep.mubr.f32.mxu0 0.0
        %3365 = vmatmul.mubr.f32.gmra.mrb[0].mxu0 %v2925
        %v3366 = vpop.f32.mrb[0].mxu0
        %v3367 = vadd.f32 0.0, %v3366
        %v3368 = vpop.f32.mrb[0].mxu0
        %3369 = vmatprep.mubr.f32.mxu0 0.0
        %3370 = vmatmul.mubr.f32.gmra.mrb[0].mxu0 %v2927
        %v3371 = vpop.f32.mrb[0].mxu0
        %v3372 = vadd.f32 0.0, %v3371
        %v3373 = vpop.f32.mrb[0].mxu0
        %3374 = vmatprep.mubr.f32.mxu0 0.0
        %3375 = vmatmul.mubr.f32.gmra.mrb[0].mxu0 %v2928
        %v3376 = vpop.f32.mrb[0].mxu0
        %v3377 = vadd.f32 0.0, %v3376
        %v3378 = vpop.f32.mrb[0].mxu0
        %3379 = vmatprep.mubr.f32.mxu0 0.0
        %3380 = vmatmul.mubr.f32.gmra.mrb[0].mxu0 %v2930
        %v3381 = vpop.f32.mrb[0].mxu0
        %v3382 = vadd.f32 0.0, %v3381
        %v3383 = vpop.f32.mrb[0].mxu0
        %3384 = vmatprep.mubr.f32.mxu0 0.0
        %3385 = vmatmul.mubr.f32.gmra.mrb[0].mxu0 %v2931
        %v3386 = vpop.f32.mrb[0].mxu0
        %v3387 = vadd.f32 0.0, %v3386
        %v3388 = vpop.f32.mrb[0].mxu0
        %3389 = vmatprep.mubr.f32.mxu0 0.0
        %3390 = vmatmul.mubr.f32.gmra.mrb[0].mxu0 %v2933
        %v3391 = vpop.f32.mrb[0].mxu0
        %v3392 = vadd.f32 0.0, %v3391
        %v3393 = vpop.f32.mrb[0].mxu0
        %3394 = vmatprep.mubr.f32.mxu0 0.0
        %3395 = vmatmul.mubr.f32.gmra.mrb[0].mxu0 %v2934
        %v3396 = vpop.f32.mrb[0].mxu0
        %v3397 = vadd.f32 0.0, %v3396
        %v3398 = vpop.f32.mrb[0].mxu0
        %3399 = vmatprep.mubr.f32.mxu0 0.0
        %3400 = vmatmul.mubr.f32.gmra.mrb[0].mxu0 %v2936
        %v3401 = vpop.f32.mrb[0].mxu0
        %v3402 = vadd.f32 0.0, %v3401
        %v3403 = vpop.f32.mrb[0].mxu0
        %3404 = vmatprep.mubr.f32.mxu0 0.0
        %3405 = vmatmul.mubr.f32.gmra.mrb[0].mxu0 %v2937
        %v3406 = vpop.f32.mrb[0].mxu0
        %v3407 = vadd.f32 0.0, %v3406
        %v3408 = vpop.f32.mrb[0].mxu0
        %3409 = vmatprep.mubr.f32.mxu0 0.0
        %3410 = vmatmul.mubr.f32.gmra.mrb[0].mxu0 %v2939
        %v3411 = vpop.f32.mrb[0].mxu0
        %v3412 = vadd.f32 0.0, %v3411
        %v3413 = vpop.f32.mrb[0].mxu0
        %3414 = vmatprep.mubr.f32.mxu0 0.0
        %3415 = vmatmul.mubr.f32.gmra.mrb[0].mxu0 %v2940
        %v3416 = vpop.f32.mrb[0].mxu0
        %v3417 = vadd.f32 0.0, %v3416
        %v3418 = vpop.f32.mrb[0].mxu0
        %3419 = vmatprep.mubr.f32.mxu0 0.0
        %3420 = vmatmul.mubr.f32.gmra.mrb[0].mxu0 %v2942
        %v3421 = vpop.f32.mrb[0].mxu0
        %v3422 = vadd.f32 0.0, %v3421
        %v3423 = vpop.f32.mrb[0].mxu0
        %3424 = vmatprep.mubr.f32.mxu0 0.0
        %3425 = vmatmul.mubr.f32.gmra.mrb[0].mxu0 %v2943
        %v3426 = vpop.f32.mrb[0].mxu0
        %v3427 = vadd.f32 0.0, %v3426
        %v3428 = vpop.f32.mrb[0].mxu0
        %3429 = vdwg.mxu0
        %v3430 = vadd.f32 %v3190, %v3352
        %v3431 = vadd.f32 %v3195, %v3357
        %v3432 = vadd.f32 %v3200, %v3362
        %v3433 = vadd.f32 %v3205, %v3367
        %v3434 = vadd.f32 %v3210, %v3372
        %v3435 = vadd.f32 %v3215, %v3377
        %v3436 = vadd.f32 %v3220, %v3382
        %v3437 = vadd.f32 %v3225, %v3387
        %v3438 = vadd.f32 %v3230, %v3392
        %v3439 = vadd.f32 %v3235, %v3397
        %v3440 = vadd.f32 %v3240, %v3402
        %v3441 = vadd.f32 %v3245, %v3407
        %v3442 = vadd.f32 %v3250, %v3412
        %v3443 = vadd.f32 %v3255, %v3417
        %v3444 = vadd.f32 %v3260, %v3422
        %v3445 = vadd.f32 %v3265, %v3427
        %v3476 = vrot.slane %v2915, 1
        %v3477 = vrot.slane %v2916, 1
        %v3478 = vsel %vm1264, %v3476, %v3477
        %v3479 = vrot.slane %v2917, 1
        %v3480 = vsel %vm1264, %v3477, %v3479
        %v3481 = vrot.slane %v2918, 1
        %v3482 = vrot.slane %v2919, 1
        %v3483 = vsel %vm1264, %v3481, %v3482
        %v3484 = vrot.slane %v2920, 1
        %v3485 = vsel %vm1264, %v3482, %v3484
        %v3486 = vrot.slane %v2921, 1
        %v3487 = vrot.slane %v2922, 1
        %v3488 = vsel %vm1264, %v3486, %v3487
        %v3489 = vrot.slane %v2923, 1
        %v3490 = vsel %vm1264, %v3487, %v3489
        %v3491 = vrot.slane %v2924, 1
        %v3492 = vrot.slane %v2925, 1
        %v3493 = vsel %vm1264, %v3491, %v3492
        %v3494 = vrot.slane %v2926, 1
        %v3495 = vsel %vm1264, %v3492, %v3494
        %v3496 = vrot.slane %v2927, 1
        %v3497 = vrot.slane %v2928, 1
        %v3498 = vsel %vm1264, %v3496, %v3497
        %v3499 = vrot.slane %v2929, 1
        %v3500 = vsel %vm1264, %v3497, %v3499
        %v3501 = vrot.slane %v2930, 1
        %v3502 = vrot.slane %v2931, 1
        %v3503 = vsel %vm1264, %v3501, %v3502
        %v3504 = vrot.slane %v2932, 1
        %v3505 = vsel %vm1264, %v3502, %v3504
        %v3506 = vrot.slane %v2933, 1
        %v3507 = vrot.slane %v2934, 1
        %v3508 = vsel %vm1264, %v3506, %v3507
        %v3509 = vrot.slane %v2935, 1
        %v3510 = vsel %vm1264, %v3507, %v3509
        %v3511 = vrot.slane %v2936, 1
        %v3512 = vrot.slane %v2937, 1
        %v3513 = vsel %vm1264, %v3511, %v3512
        %v3514 = vrot.slane %v2938, 1
        %v3515 = vsel %vm1264, %v3512, %v3514
        %v3516 = vrot.slane %v2939, 1
        %v3517 = vrot.slane %v2940, 1
        %v3518 = vsel %vm1264, %v3516, %v3517
        %v3519 = vrot.slane %v2941, 1
        %v3520 = vsel %vm1264, %v3517, %v3519
        %v3521 = vrot.slane %v2942, 1
        %v3522 = vrot.slane %v2943, 1
        %v3523 = vsel %vm1264, %v3521, %v3522
        %v3524 = vrot.slane %v2944, 1
        %v3525 = vsel %vm1264, %v3522, %v3524
        %s3546 = scalar_lea.vmem [#allocation10], 128
        %v3547 = vld [vmem:[%s3546] sm:$0xff]
        %v3548 = vld [vmem:[%s3546 + $0x8] sm:$0xff]
        %v3549 = vld [vmem:[%s3546 + $0x10] sm:$0xff]
        %v3550 = vld [vmem:[%s3546 + $0x18] sm:$0xff]
        %v3551 = vld [vmem:[%s3546 + $0x20] sm:$0xff]
        %v3552 = vld [vmem:[%s3546 + $0x28] sm:$0xff]
        %v3553 = vld [vmem:[%s3546 + $0x30] sm:$0xff]
        %v3554 = vld [vmem:[%s3546 + $0x38] sm:$0xff]
        %v3555 = vld [vmem:[%s3546 + $0x40] sm:$0xff]
        %v3556 = vld [vmem:[%s3546 + $0x48] sm:$0xff]
        %v3557 = vld [vmem:[%s3546 + $0x50] sm:$0xff]
        %v3558 = vld [vmem:[%s3546 + $0x58] sm:$0xff]
        %v3559 = vld [vmem:[%s3546 + $0x60] sm:$0xff]
        %v3560 = vld [vmem:[%s3546 + $0x68] sm:$0xff]
        %v3561 = vld [vmem:[%s3546 + $0x70] sm:$0xff]
        %v3562 = vld [vmem:[%s3546 + $0x78] sm:$0xff]
        %3563 = vmatprep.subr.mxu0 0.0
        %3564 = vmatpush1.msra.mxu0 %v3547
        %3565 = vmatprep.subr.mxu0 0.0
        %3566 = vmatpush1.msra.mxu0 %v3548
        %3567 = vmatprep.subr.mxu0 0.0
        %3568 = vmatpush1.msra.mxu0 %v3549
        %3569 = vmatprep.subr.mxu0 0.0
        %3570 = vmatpush1.msra.mxu0 %v3550
        %3571 = vmatprep.subr.mxu0 0.0
        %3572 = vmatpush1.msra.mxu0 %v3551
        %3573 = vmatprep.subr.mxu0 0.0
        %3574 = vmatpush1.msra.mxu0 %v3552
        %3575 = vmatprep.subr.mxu0 0.0
        %3576 = vmatpush1.msra.mxu0 %v3553
        %3577 = vmatprep.subr.mxu0 0.0
        %3578 = vmatpush1.msra.mxu0 %v3554
        %3579 = vmatprep.subr.mxu0 0.0
        %3580 = vmatpush1.msra.mxu0 %v3555
        %3581 = vmatprep.subr.mxu0 0.0
        %3582 = vmatpush1.msra.mxu0 %v3556
        %3583 = vmatprep.subr.mxu0 0.0
        %3584 = vmatpush1.msra.mxu0 %v3557
        %3585 = vmatprep.subr.mxu0 0.0
        %3586 = vmatpush1.msra.mxu0 %v3558
        %3587 = vmatprep.subr.mxu0 0.0
        %3588 = vmatpush1.msra.mxu0 %v3559
        %3589 = vmatprep.subr.mxu0 0.0
        %3590 = vmatpush1.msra.mxu0 %v3560
        %3591 = vmatprep.subr.mxu0 0.0
        %3592 = vmatpush1.msra.mxu0 %v3561
        %3593 = vmatprep.subr.mxu0 0.0
        %3594 = vmatpush1.msra.mxu0 %v3562
        %3595 = vmatprep.subr.mxu0 0.0
        %3596 = vmatpush1.msra.mxu0 0.0
        %3597 = vmatprep.subr.mxu0 0.0
        %3598 = vmatpush1.msra.mxu0 0.0
        %3599 = vmatprep.subr.mxu0 0.0
        %3600 = vmatpush1.msra.mxu0 0.0
        %3601 = vmatprep.subr.mxu0 0.0
        %3602 = vmatpush1.msra.mxu0 0.0
        %3603 = vmatprep.subr.mxu0 0.0
        %3604 = vmatpush1.msra.mxu0 0.0
        %3605 = vmatprep.subr.mxu0 0.0
        %3606 = vmatpush1.msra.mxu0 0.0
        %3607 = vmatprep.subr.mxu0 0.0
        %3608 = vmatpush1.msra.mxu0 0.0
        %3609 = vmatprep.subr.mxu0 0.0
        %3610 = vmatpush1.msra.mxu0 0.0
        %3611 = vmatprep.subr.mxu0 0.0
        %3612 = vmatpush1.msra.mxu0 0.0
        %3613 = vmatprep.subr.mxu0 0.0
        %3614 = vmatpush1.msra.mxu0 0.0
        %3615 = vmatprep.subr.mxu0 0.0
        %3616 = vmatpush1.msra.mxu0 0.0
        %3617 = vmatprep.subr.mxu0 0.0
        %3618 = vmatpush1.msra.mxu0 0.0
        %3619 = vmatprep.subr.mxu0 0.0
        %3620 = vmatpush1.msra.mxu0 0.0
        %3621 = vmatprep.subr.mxu0 0.0
        %3622 = vmatpush1.msra.mxu0 0.0
        %3623 = vmatprep.subr.mxu0 0.0
        %3624 = vmatpush1.msra.mxu0 0.0
        %3625 = vmatprep.subr.mxu0 0.0
        %3626 = vmatpush1.msra.mxu0 0.0
        %3627 = vmatprep.mubr.f32.mxu0 0.0
        %3628 = vmatmul.mubr.f32.gmra.mrb[0].mxu0 %v3478
        %v3629 = vpop.f32.mrb[0].mxu0
        %v3630 = vadd.f32 0.0, %v3629
        %v3631 = vpop.f32.mrb[0].mxu0
        %3632 = vmatprep.mubr.f32.mxu0 0.0
        %3633 = vmatmul.mubr.f32.gmra.mrb[0].mxu0 %v3480
        %v3634 = vpop.f32.mrb[0].mxu0
        %v3635 = vadd.f32 0.0, %v3634
        %v3636 = vpop.f32.mrb[0].mxu0
        %3637 = vmatprep.mubr.f32.mxu0 0.0
        %3638 = vmatmul.mubr.f32.gmra.mrb[0].mxu0 %v3483
        %v3639 = vpop.f32.mrb[0].mxu0
        %v3640 = vadd.f32 0.0, %v3639
        %v3641 = vpop.f32.mrb[0].mxu0
        %3642 = vmatprep.mubr.f32.mxu0 0.0
        %3643 = vmatmul.mubr.f32.gmra.mrb[0].mxu0 %v3485
        %v3644 = vpop.f32.mrb[0].mxu0
        %v3645 = vadd.f32 0.0, %v3644
        %v3646 = vpop.f32.mrb[0].mxu0
        %3647 = vmatprep.mubr.f32.mxu0 0.0
        %3648 = vmatmul.mubr.f32.gmra.mrb[0].mxu0 %v3488
        %v3649 = vpop.f32.mrb[0].mxu0
        %v3650 = vadd.f32 0.0, %v3649
        %v3651 = vpop.f32.mrb[0].mxu0
        %3652 = vmatprep.mubr.f32.mxu0 0.0
        %3653 = vmatmul.mubr.f32.gmra.mrb[0].mxu0 %v3490
        %v3654 = vpop.f32.mrb[0].mxu0
        %v3655 = vadd.f32 0.0, %v3654
        %v3656 = vpop.f32.mrb[0].mxu0
        %3657 = vmatprep.mubr.f32.mxu0 0.0
        %3658 = vmatmul.mubr.f32.gmra.mrb[0].mxu0 %v3493
        %v3659 = vpop.f32.mrb[0].mxu0
        %v3660 = vadd.f32 0.0, %v3659
        %v3661 = vpop.f32.mrb[0].mxu0
        %3662 = vmatprep.mubr.f32.mxu0 0.0
        %3663 = vmatmul.mubr.f32.gmra.mrb[0].mxu0 %v3495
        %v3664 = vpop.f32.mrb[0].mxu0
        %v3665 = vadd.f32 0.0, %v3664
        %v3666 = vpop.f32.mrb[0].mxu0
        %3667 = vmatprep.mubr.f32.mxu0 0.0
        %3668 = vmatmul.mubr.f32.gmra.mrb[0].mxu0 %v3498
        %v3669 = vpop.f32.mrb[0].mxu0
        %v3670 = vadd.f32 0.0, %v3669
        %v3671 = vpop.f32.mrb[0].mxu0
        %3672 = vmatprep.mubr.f32.mxu0 0.0
        %3673 = vmatmul.mubr.f32.gmra.mrb[0].mxu0 %v3500
        %v3674 = vpop.f32.mrb[0].mxu0
        %v3675 = vadd.f32 0.0, %v3674
        %v3676 = vpop.f32.mrb[0].mxu0
        %3677 = vmatprep.mubr.f32.mxu0 0.0
        %3678 = vmatmul.mubr.f32.gmra.mrb[0].mxu0 %v3503
        %v3679 = vpop.f32.mrb[0].mxu0
        %v3680 = vadd.f32 0.0, %v3679
        %v3681 = vpop.f32.mrb[0].mxu0
        %3682 = vmatprep.mubr.f32.mxu0 0.0
        %3683 = vmatmul.mubr.f32.gmra.mrb[0].mxu0 %v3505
        %v3684 = vpop.f32.mrb[0].mxu0
        %v3685 = vadd.f32 0.0, %v3684
        %v3686 = vpop.f32.mrb[0].mxu0
        %3687 = vmatprep.mubr.f32.mxu0 0.0
        %3688 = vmatmul.mubr.f32.gmra.mrb[0].mxu0 %v3508
        %v3689 = vpop.f32.mrb[0].mxu0
        %v3690 = vadd.f32 0.0, %v3689
        %v3691 = vpop.f32.mrb[0].mxu0
        %3692 = vmatprep.mubr.f32.mxu0 0.0
        %3693 = vmatmul.mubr.f32.gmra.mrb[0].mxu0 %v3510
        %v3694 = vpop.f32.mrb[0].mxu0
        %v3695 = vadd.f32 0.0, %v3694
        %v3696 = vpop.f32.mrb[0].mxu0
        %3697 = vmatprep.mubr.f32.mxu0 0.0
        %3698 = vmatmul.mubr.f32.gmra.mrb[0].mxu0 %v3513
        %v3699 = vpop.f32.mrb[0].mxu0
        %v3700 = vadd.f32 0.0, %v3699
        %v3701 = vpop.f32.mrb[0].mxu0
        %3702 = vmatprep.mubr.f32.mxu0 0.0
        %3703 = vmatmul.mubr.f32.gmra.mrb[0].mxu0 %v3515
        %v3704 = vpop.f32.mrb[0].mxu0
        %v3705 = vadd.f32 0.0, %v3704
        %v3706 = vpop.f32.mrb[0].mxu0
        %3707 = vdwg.mxu0
        %v3708 = vadd.f32 %v3430, %v3630
        %v3709 = vadd.f32 %v3431, %v3635
        %v3710 = vadd.f32 %v3432, %v3640
        %v3711 = vadd.f32 %v3433, %v3645
        %v3712 = vadd.f32 %v3434, %v3650
        %v3713 = vadd.f32 %v3435, %v3655
        %v3714 = vadd.f32 %v3436, %v3660
        %v3715 = vadd.f32 %v3437, %v3665
        %v3716 = vadd.f32 %v3438, %v3670
        %v3717 = vadd.f32 %v3439, %v3675
        %v3718 = vadd.f32 %v3440, %v3680
        %v3719 = vadd.f32 %v3441, %v3685
        %v3720 = vadd.f32 %v3442, %v3690
        %v3721 = vadd.f32 %v3443, %v3695
        %v3722 = vadd.f32 %v3444, %v3700
        %v3723 = vadd.f32 %v3445, %v3705
        %s3724 = scalar_lea.vmem [#allocation10], 512
        %v3725 = vld [vmem:[%s3724] sm:$0xff]
        %v3726 = vld [vmem:[%s3724 + $0x8] sm:$0xff]
        %v3727 = vld [vmem:[%s3724 + $0x10] sm:$0xff]
        %v3728 = vld [vmem:[%s3724 + $0x18] sm:$0xff]
        %v3729 = vld [vmem:[%s3724 + $0x20] sm:$0xff]
        %v3730 = vld [vmem:[%s3724 + $0x28] sm:$0xff]
        %v3731 = vld [vmem:[%s3724 + $0x30] sm:$0xff]
        %v3732 = vld [vmem:[%s3724 + $0x38] sm:$0xff]
        %v3733 = vld [vmem:[%s3724 + $0x40] sm:$0xff]
        %v3734 = vld [vmem:[%s3724 + $0x48] sm:$0xff]
        %v3735 = vld [vmem:[%s3724 + $0x50] sm:$0xff]
        %v3736 = vld [vmem:[%s3724 + $0x58] sm:$0xff]
        %v3737 = vld [vmem:[%s3724 + $0x60] sm:$0xff]
        %v3738 = vld [vmem:[%s3724 + $0x68] sm:$0xff]
        %v3739 = vld [vmem:[%s3724 + $0x70] sm:$0xff]
        %v3740 = vld [vmem:[%s3724 + $0x78] sm:$0xff]
        %3741 = vmatprep.subr.mxu0 0.0
        %3742 = vmatpush1.msra.mxu0 %v3725
        %3743 = vmatprep.subr.mxu0 0.0
        %3744 = vmatpush1.msra.mxu0 %v3726
        %3745 = vmatprep.subr.mxu0 0.0
        %3746 = vmatpush1.msra.mxu0 %v3727
        %3747 = vmatprep.subr.mxu0 0.0
        %3748 = vmatpush1.msra.mxu0 %v3728
        %3749 = vmatprep.subr.mxu0 0.0
        %3750 = vmatpush1.msra.mxu0 %v3729
        %3751 = vmatprep.subr.mxu0 0.0
        %3752 = vmatpush1.msra.mxu0 %v3730
        %3753 = vmatprep.subr.mxu0 0.0
        %3754 = vmatpush1.msra.mxu0 %v3731
        %3755 = vmatprep.subr.mxu0 0.0
        %3756 = vmatpush1.msra.mxu0 %v3732
        %3757 = vmatprep.subr.mxu0 0.0
        %3758 = vmatpush1.msra.mxu0 %v3733
        %3759 = vmatprep.subr.mxu0 0.0
        %3760 = vmatpush1.msra.mxu0 %v3734
        %3761 = vmatprep.subr.mxu0 0.0
        %3762 = vmatpush1.msra.mxu0 %v3735
        %3763 = vmatprep.subr.mxu0 0.0
        %3764 = vmatpush1.msra.mxu0 %v3736
        %3765 = vmatprep.subr.mxu0 0.0
        %3766 = vmatpush1.msra.mxu0 %v3737
        %3767 = vmatprep.subr.mxu0 0.0
        %3768 = vmatpush1.msra.mxu0 %v3738
        %3769 = vmatprep.subr.mxu0 0.0
        %3770 = vmatpush1.msra.mxu0 %v3739
        %3771 = vmatprep.subr.mxu0 0.0
        %3772 = vmatpush1.msra.mxu0 %v3740
        %3773 = vmatprep.subr.mxu0 0.0
        %3774 = vmatpush1.msra.mxu0 0.0
        %3775 = vmatprep.subr.mxu0 0.0
        %3776 = vmatpush1.msra.mxu0 0.0
        %3777 = vmatprep.subr.mxu0 0.0
        %3778 = vmatpush1.msra.mxu0 0.0
        %3779 = vmatprep.subr.mxu0 0.0
        %3780 = vmatpush1.msra.mxu0 0.0
        %3781 = vmatprep.subr.mxu0 0.0
        %3782 = vmatpush1.msra.mxu0 0.0
        %3783 = vmatprep.subr.mxu0 0.0
        %3784 = vmatpush1.msra.mxu0 0.0
        %3785 = vmatprep.subr.mxu0 0.0
        %3786 = vmatpush1.msra.mxu0 0.0
        %3787 = vmatprep.subr.mxu0 0.0
        %3788 = vmatpush1.msra.mxu0 0.0
        %3789 = vmatprep.subr.mxu0 0.0
        %3790 = vmatpush1.msra.mxu0 0.0
        %3791 = vmatprep.subr.mxu0 0.0
        %3792 = vmatpush1.msra.mxu0 0.0
        %3793 = vmatprep.subr.mxu0 0.0
        %3794 = vmatpush1.msra.mxu0 0.0
        %3795 = vmatprep.subr.mxu0 0.0
        %3796 = vmatpush1.msra.mxu0 0.0
        %3797 = vmatprep.subr.mxu0 0.0
        %3798 = vmatpush1.msra.mxu0 0.0
        %3799 = vmatprep.subr.mxu0 0.0
        %3800 = vmatpush1.msra.mxu0 0.0
        %3801 = vmatprep.subr.mxu0 0.0
        %3802 = vmatpush1.msra.mxu0 0.0
        %3803 = vmatprep.subr.mxu0 0.0
        %3804 = vmatpush1.msra.mxu0 0.0
        %3805 = vmatprep.mubr.f32.mxu0 0.0
        %3806 = vmatmul.mubr.f32.gmra.mrb[0].mxu0 %v3483
        %v3807 = vpop.f32.mrb[0].mxu0
        %v3808 = vadd.f32 0.0, %v3807
        %v3809 = vpop.f32.mrb[0].mxu0
        %3810 = vmatprep.mubr.f32.mxu0 0.0
        %3811 = vmatmul.mubr.f32.gmra.mrb[0].mxu0 %v3485
        %v3812 = vpop.f32.mrb[0].mxu0
        %v3813 = vadd.f32 0.0, %v3812
        %v3814 = vpop.f32.mrb[0].mxu0
        %3815 = vmatprep.mubr.f32.mxu0 0.0
        %3816 = vmatmul.mubr.f32.gmra.mrb[0].mxu0 %v3488
        %v3817 = vpop.f32.mrb[0].mxu0
        %v3818 = vadd.f32 0.0, %v3817
        %v3819 = vpop.f32.mrb[0].mxu0
        %3820 = vmatprep.mubr.f32.mxu0 0.0
        %3821 = vmatmul.mubr.f32.gmra.mrb[0].mxu0 %v3490
        %v3822 = vpop.f32.mrb[0].mxu0
        %v3823 = vadd.f32 0.0, %v3822
        %v3824 = vpop.f32.mrb[0].mxu0
        %3825 = vmatprep.mubr.f32.mxu0 0.0
        %3826 = vmatmul.mubr.f32.gmra.mrb[0].mxu0 %v3493
        %v3827 = vpop.f32.mrb[0].mxu0
        %v3828 = vadd.f32 0.0, %v3827
        %v3829 = vpop.f32.mrb[0].mxu0
        %3830 = vmatprep.mubr.f32.mxu0 0.0
        %3831 = vmatmul.mubr.f32.gmra.mrb[0].mxu0 %v3495
        %v3832 = vpop.f32.mrb[0].mxu0
        %v3833 = vadd.f32 0.0, %v3832
        %v3834 = vpop.f32.mrb[0].mxu0
        %3835 = vmatprep.mubr.f32.mxu0 0.0
        %3836 = vmatmul.mubr.f32.gmra.mrb[0].mxu0 %v3498
        %v3837 = vpop.f32.mrb[0].mxu0
        %v3838 = vadd.f32 0.0, %v3837
        %v3839 = vpop.f32.mrb[0].mxu0
        %3840 = vmatprep.mubr.f32.mxu0 0.0
        %3841 = vmatmul.mubr.f32.gmra.mrb[0].mxu0 %v3500
        %v3842 = vpop.f32.mrb[0].mxu0
        %v3843 = vadd.f32 0.0, %v3842
        %v3844 = vpop.f32.mrb[0].mxu0
        %3845 = vmatprep.mubr.f32.mxu0 0.0
        %3846 = vmatmul.mubr.f32.gmra.mrb[0].mxu0 %v3503
        %v3847 = vpop.f32.mrb[0].mxu0
        %v3848 = vadd.f32 0.0, %v3847
        %v3849 = vpop.f32.mrb[0].mxu0
        %3850 = vmatprep.mubr.f32.mxu0 0.0
        %3851 = vmatmul.mubr.f32.gmra.mrb[0].mxu0 %v3505
        %v3852 = vpop.f32.mrb[0].mxu0
        %v3853 = vadd.f32 0.0, %v3852
        %v3854 = vpop.f32.mrb[0].mxu0
        %3855 = vmatprep.mubr.f32.mxu0 0.0
        %3856 = vmatmul.mubr.f32.gmra.mrb[0].mxu0 %v3508
        %v3857 = vpop.f32.mrb[0].mxu0
        %v3858 = vadd.f32 0.0, %v3857
        %v3859 = vpop.f32.mrb[0].mxu0
        %3860 = vmatprep.mubr.f32.mxu0 0.0
        %3861 = vmatmul.mubr.f32.gmra.mrb[0].mxu0 %v3510
        %v3862 = vpop.f32.mrb[0].mxu0
        %v3863 = vadd.f32 0.0, %v3862
        %v3864 = vpop.f32.mrb[0].mxu0
        %3865 = vmatprep.mubr.f32.mxu0 0.0
        %3866 = vmatmul.mubr.f32.gmra.mrb[0].mxu0 %v3513
        %v3867 = vpop.f32.mrb[0].mxu0
        %v3868 = vadd.f32 0.0, %v3867
        %v3869 = vpop.f32.mrb[0].mxu0
        %3870 = vmatprep.mubr.f32.mxu0 0.0
        %3871 = vmatmul.mubr.f32.gmra.mrb[0].mxu0 %v3515
        %v3872 = vpop.f32.mrb[0].mxu0
        %v3873 = vadd.f32 0.0, %v3872
        %v3874 = vpop.f32.mrb[0].mxu0
        %3875 = vmatprep.mubr.f32.mxu0 0.0
        %3876 = vmatmul.mubr.f32.gmra.mrb[0].mxu0 %v3518
        %v3877 = vpop.f32.mrb[0].mxu0
        %v3878 = vadd.f32 0.0, %v3877
        %v3879 = vpop.f32.mrb[0].mxu0
        %3880 = vmatprep.mubr.f32.mxu0 0.0
        %3881 = vmatmul.mubr.f32.gmra.mrb[0].mxu0 %v3520
        %v3882 = vpop.f32.mrb[0].mxu0
        %v3883 = vadd.f32 0.0, %v3882
        %v3884 = vpop.f32.mrb[0].mxu0
        %3885 = vdwg.mxu0
        %v3886 = vadd.f32 %v3708, %v3808
        %v3887 = vadd.f32 %v3709, %v3813
        %v3888 = vadd.f32 %v3710, %v3818
        %v3889 = vadd.f32 %v3711, %v3823
        %v3890 = vadd.f32 %v3712, %v3828
        %v3891 = vadd.f32 %v3713, %v3833
        %v3892 = vadd.f32 %v3714, %v3838
        %v3893 = vadd.f32 %v3715, %v3843
        %v3894 = vadd.f32 %v3716, %v3848
        %v3895 = vadd.f32 %v3717, %v3853
        %v3896 = vadd.f32 %v3718, %v3858
        %v3897 = vadd.f32 %v3719, %v3863
        %v3898 = vadd.f32 %v3720, %v3868
        %v3899 = vadd.f32 %v3721, %v3873
        %v3900 = vadd.f32 %v3722, %v3878
        %v3901 = vadd.f32 %v3723, %v3883
        %s3902 = scalar_lea.vmem [#allocation10], 896
        %v3903 = vld [vmem:[%s3902] sm:$0xff]
        %v3904 = vld [vmem:[%s3902 + $0x8] sm:$0xff]
        %v3905 = vld [vmem:[%s3902 + $0x10] sm:$0xff]
        %v3906 = vld [vmem:[%s3902 + $0x18] sm:$0xff]
        %v3907 = vld [vmem:[%s3902 + $0x20] sm:$0xff]
        %v3908 = vld [vmem:[%s3902 + $0x28] sm:$0xff]
        %v3909 = vld [vmem:[%s3902 + $0x30] sm:$0xff]
        %v3910 = vld [vmem:[%s3902 + $0x38] sm:$0xff]
        %v3911 = vld [vmem:[%s3902 + $0x40] sm:$0xff]
        %v3912 = vld [vmem:[%s3902 + $0x48] sm:$0xff]
        %v3913 = vld [vmem:[%s3902 + $0x50] sm:$0xff]
        %v3914 = vld [vmem:[%s3902 + $0x58] sm:$0xff]
        %v3915 = vld [vmem:[%s3902 + $0x60] sm:$0xff]
        %v3916 = vld [vmem:[%s3902 + $0x68] sm:$0xff]
        %v3917 = vld [vmem:[%s3902 + $0x70] sm:$0xff]
        %v3918 = vld [vmem:[%s3902 + $0x78] sm:$0xff]
        %3919 = vmatprep.subr.mxu0 0.0
        %3920 = vmatpush1.msra.mxu0 %v3903
        %3921 = vmatprep.subr.mxu0 0.0
        %3922 = vmatpush1.msra.mxu0 %v3904
        %3923 = vmatprep.subr.mxu0 0.0
        %3924 = vmatpush1.msra.mxu0 %v3905
        %3925 = vmatprep.subr.mxu0 0.0
        %3926 = vmatpush1.msra.mxu0 %v3906
        %3927 = vmatprep.subr.mxu0 0.0
        %3928 = vmatpush1.msra.mxu0 %v3907
        %3929 = vmatprep.subr.mxu0 0.0
        %3930 = vmatpush1.msra.mxu0 %v3908
        %3931 = vmatprep.subr.mxu0 0.0
        %3932 = vmatpush1.msra.mxu0 %v3909
        %3933 = vmatprep.subr.mxu0 0.0
        %3934 = vmatpush1.msra.mxu0 %v3910
        %3935 = vmatprep.subr.mxu0 0.0
        %3936 = vmatpush1.msra.mxu0 %v3911
        %3937 = vmatprep.subr.mxu0 0.0
        %3938 = vmatpush1.msra.mxu0 %v3912
        %3939 = vmatprep.subr.mxu0 0.0
        %3940 = vmatpush1.msra.mxu0 %v3913
        %3941 = vmatprep.subr.mxu0 0.0
        %3942 = vmatpush1.msra.mxu0 %v3914
        %3943 = vmatprep.subr.mxu0 0.0
        %3944 = vmatpush1.msra.mxu0 %v3915
        %3945 = vmatprep.subr.mxu0 0.0
        %3946 = vmatpush1.msra.mxu0 %v3916
        %3947 = vmatprep.subr.mxu0 0.0
        %3948 = vmatpush1.msra.mxu0 %v3917
        %3949 = vmatprep.subr.mxu0 0.0
        %3950 = vmatpush1.msra.mxu0 %v3918
        %3951 = vmatprep.subr.mxu0 0.0
        %3952 = vmatpush1.msra.mxu0 0.0
        %3953 = vmatprep.subr.mxu0 0.0
        %3954 = vmatpush1.msra.mxu0 0.0
        %3955 = vmatprep.subr.mxu0 0.0
        %3956 = vmatpush1.msra.mxu0 0.0
        %3957 = vmatprep.subr.mxu0 0.0
        %3958 = vmatpush1.msra.mxu0 0.0
        %3959 = vmatprep.subr.mxu0 0.0
        %3960 = vmatpush1.msra.mxu0 0.0
        %3961 = vmatprep.subr.mxu0 0.0
        %3962 = vmatpush1.msra.mxu0 0.0
        %3963 = vmatprep.subr.mxu0 0.0
        %3964 = vmatpush1.msra.mxu0 0.0
        %3965 = vmatprep.subr.mxu0 0.0
        %3966 = vmatpush1.msra.mxu0 0.0
        %3967 = vmatprep.subr.mxu0 0.0
        %3968 = vmatpush1.msra.mxu0 0.0
        %3969 = vmatprep.subr.mxu0 0.0
        %3970 = vmatpush1.msra.mxu0 0.0
        %3971 = vmatprep.subr.mxu0 0.0
        %3972 = vmatpush1.msra.mxu0 0.0
        %3973 = vmatprep.subr.mxu0 0.0
        %3974 = vmatpush1.msra.mxu0 0.0
        %3975 = vmatprep.subr.mxu0 0.0
        %3976 = vmatpush1.msra.mxu0 0.0
        %3977 = vmatprep.subr.mxu0 0.0
        %3978 = vmatpush1.msra.mxu0 0.0
        %3979 = vmatprep.subr.mxu0 0.0
        %3980 = vmatpush1.msra.mxu0 0.0
        %3981 = vmatprep.subr.mxu0 0.0
        %3982 = vmatpush1.msra.mxu0 0.0
        %3983 = vmatprep.mubr.f32.mxu0 0.0
        %3984 = vmatmul.mubr.f32.gmra.mrb[0].mxu0 %v3488
        %v3985 = vpop.f32.mrb[0].mxu0
        %v3986 = vadd.f32 0.0, %v3985
        %v3987 = vpop.f32.mrb[0].mxu0
        %3988 = vmatprep.mubr.f32.mxu0 0.0
        %3989 = vmatmul.mubr.f32.gmra.mrb[0].mxu0 %v3490
        %v3990 = vpop.f32.mrb[0].mxu0
        %v3991 = vadd.f32 0.0, %v3990
        %v3992 = vpop.f32.mrb[0].mxu0
        %3993 = vmatprep.mubr.f32.mxu0 0.0
        %3994 = vmatmul.mubr.f32.gmra.mrb[0].mxu0 %v3493
        %v3995 = vpop.f32.mrb[0].mxu0
        %v3996 = vadd.f32 0.0, %v3995
        %v3997 = vpop.f32.mrb[0].mxu0
        %3998 = vmatprep.mubr.f32.mxu0 0.0
        %3999 = vmatmul.mubr.f32.gmra.mrb[0].mxu0 %v3495
        %v4000 = vpop.f32.mrb[0].mxu0
        %v4001 = vadd.f32 0.0, %v4000
        %v4002 = vpop.f32.mrb[0].mxu0
        %4003 = vmatprep.mubr.f32.mxu0 0.0
        %4004 = vmatmul.mubr.f32.gmra.mrb[0].mxu0 %v3498
        %v4005 = vpop.f32.mrb[0].mxu0
        %v4006 = vadd.f32 0.0, %v4005
        %v4007 = vpop.f32.mrb[0].mxu0
        %4008 = vmatprep.mubr.f32.mxu0 0.0
        %4009 = vmatmul.mubr.f32.gmra.mrb[0].mxu0 %v3500
        %v4010 = vpop.f32.mrb[0].mxu0
        %v4011 = vadd.f32 0.0, %v4010
        %v4012 = vpop.f32.mrb[0].mxu0
        %4013 = vmatprep.mubr.f32.mxu0 0.0
        %4014 = vmatmul.mubr.f32.gmra.mrb[0].mxu0 %v3503
        %v4015 = vpop.f32.mrb[0].mxu0
        %v4016 = vadd.f32 0.0, %v4015
        %v4017 = vpop.f32.mrb[0].mxu0
        %4018 = vmatprep.mubr.f32.mxu0 0.0
        %4019 = vmatmul.mubr.f32.gmra.mrb[0].mxu0 %v3505
        %v4020 = vpop.f32.mrb[0].mxu0
        %v4021 = vadd.f32 0.0, %v4020
        %v4022 = vpop.f32.mrb[0].mxu0
        %4023 = vmatprep.mubr.f32.mxu0 0.0
        %4024 = vmatmul.mubr.f32.gmra.mrb[0].mxu0 %v3508
        %v4025 = vpop.f32.mrb[0].mxu0
        %v4026 = vadd.f32 0.0, %v4025
        %v4027 = vpop.f32.mrb[0].mxu0
        %4028 = vmatprep.mubr.f32.mxu0 0.0
        %4029 = vmatmul.mubr.f32.gmra.mrb[0].mxu0 %v3510
        %v4030 = vpop.f32.mrb[0].mxu0
        %v4031 = vadd.f32 0.0, %v4030
        %v4032 = vpop.f32.mrb[0].mxu0
        %4033 = vmatprep.mubr.f32.mxu0 0.0
        %4034 = vmatmul.mubr.f32.gmra.mrb[0].mxu0 %v3513
        %v4035 = vpop.f32.mrb[0].mxu0
        %v4036 = vadd.f32 0.0, %v4035
        %v4037 = vpop.f32.mrb[0].mxu0
        %4038 = vmatprep.mubr.f32.mxu0 0.0
        %4039 = vmatmul.mubr.f32.gmra.mrb[0].mxu0 %v3515
        %v4040 = vpop.f32.mrb[0].mxu0
        %v4041 = vadd.f32 0.0, %v4040
        %v4042 = vpop.f32.mrb[0].mxu0
        %4043 = vmatprep.mubr.f32.mxu0 0.0
        %4044 = vmatmul.mubr.f32.gmra.mrb[0].mxu0 %v3518
        %v4045 = vpop.f32.mrb[0].mxu0
        %v4046 = vadd.f32 0.0, %v4045
        %v4047 = vpop.f32.mrb[0].mxu0
        %4048 = vmatprep.mubr.f32.mxu0 0.0
        %4049 = vmatmul.mubr.f32.gmra.mrb[0].mxu0 %v3520
        %v4050 = vpop.f32.mrb[0].mxu0
        %v4051 = vadd.f32 0.0, %v4050
        %v4052 = vpop.f32.mrb[0].mxu0
        %4053 = vmatprep.mubr.f32.mxu0 0.0
        %4054 = vmatmul.mubr.f32.gmra.mrb[0].mxu0 %v3523
        %v4055 = vpop.f32.mrb[0].mxu0
        %v4056 = vadd.f32 0.0, %v4055
        %v4057 = vpop.f32.mrb[0].mxu0
        %4058 = vmatprep.mubr.f32.mxu0 0.0
        %4059 = vmatmul.mubr.f32.gmra.mrb[0].mxu0 %v3525
        %v4060 = vpop.f32.mrb[0].mxu0
        %v4061 = vadd.f32 0.0, %v4060
        %v4062 = vpop.f32.mrb[0].mxu0
        %4063 = vdwg.mxu0
        %v4064 = vadd.f32 %v3886, %v3986
        %v4065 = vadd.f32 %v3887, %v3991
        %v4066 = vadd.f32 %v3888, %v3996
        %v4067 = vadd.f32 %v3889, %v4001
        %v4068 = vadd.f32 %v3890, %v4006
        %v4069 = vadd.f32 %v3891, %v4011
        %v4070 = vadd.f32 %v3892, %v4016
        %v4071 = vadd.f32 %v3893, %v4021
        %v4072 = vadd.f32 %v3894, %v4026
        %v4073 = vadd.f32 %v3895, %v4031
        %v4074 = vadd.f32 %v3896, %v4036
        %v4075 = vadd.f32 %v3897, %v4041
        %v4076 = vadd.f32 %v3898, %v4046
        %v4077 = vadd.f32 %v3899, %v4051
        %v4078 = vadd.f32 %v3900, %v4056
        %v4079 = vadd.f32 %v3901, %v4061
        %v4080 = vrot.slane %v2915, 2
        %v4081 = vrot.slane %v2916, 2
        %v4082 = vsel %vm1955, %v4080, %v4081
        %v4083 = vrot.slane %v2917, 2
        %v4084 = vsel %vm1955, %v4081, %v4083
        %v4085 = vrot.slane %v2918, 2
        %v4086 = vrot.slane %v2919, 2
        %v4087 = vsel %vm1955, %v4085, %v4086
        %v4088 = vrot.slane %v2920, 2
        %v4089 = vsel %vm1955, %v4086, %v4088
        %v4090 = vrot.slane %v2921, 2
        %v4091 = vrot.slane %v2922, 2
        %v4092 = vsel %vm1955, %v4090, %v4091
        %v4093 = vrot.slane %v2923, 2
        %v4094 = vsel %vm1955, %v4091, %v4093
        %v4095 = vrot.slane %v2924, 2
        %v4096 = vrot.slane %v2925, 2
        %v4097 = vsel %vm1955, %v4095, %v4096
        %v4098 = vrot.slane %v2926, 2
        %v4099 = vsel %vm1955, %v4096, %v4098
        %v4100 = vrot.slane %v2927, 2
        %v4101 = vrot.slane %v2928, 2
        %v4102 = vsel %vm1955, %v4100, %v4101
        %v4103 = vrot.slane %v2929, 2
        %v4104 = vsel %vm1955, %v4101, %v4103
        %v4105 = vrot.slane %v2930, 2
        %v4106 = vrot.slane %v2931, 2
        %v4107 = vsel %vm1955, %v4105, %v4106
        %v4108 = vrot.slane %v2932, 2
        %v4109 = vsel %vm1955, %v4106, %v4108
        %v4110 = vrot.slane %v2933, 2
        %v4111 = vrot.slane %v2934, 2
        %v4112 = vsel %vm1955, %v4110, %v4111
        %v4113 = vrot.slane %v2935, 2
        %v4114 = vsel %vm1955, %v4111, %v4113
        %v4115 = vrot.slane %v2936, 2
        %v4116 = vrot.slane %v2937, 2
        %v4117 = vsel %vm1955, %v4115, %v4116
        %v4118 = vrot.slane %v2938, 2
        %v4119 = vsel %vm1955, %v4116, %v4118
        %v4120 = vrot.slane %v2939, 2
        %v4121 = vrot.slane %v2940, 2
        %v4122 = vsel %vm1955, %v4120, %v4121
        %v4123 = vrot.slane %v2941, 2
        %v4124 = vsel %vm1955, %v4121, %v4123
        %v4125 = vrot.slane %v2942, 2
        %v4126 = vrot.slane %v2943, 2
        %v4127 = vsel %vm1955, %v4125, %v4126
        %v4128 = vrot.slane %v2944, 2
        %v4129 = vsel %vm1955, %v4126, %v4128
        %s4150 = scalar_lea.vmem [#allocation10], 256
        %v4151 = vld [vmem:[%s4150] sm:$0xff]
        %v4152 = vld [vmem:[%s4150 + $0x8] sm:$0xff]
        %v4153 = vld [vmem:[%s4150 + $0x10] sm:$0xff]
        %v4154 = vld [vmem:[%s4150 + $0x18] sm:$0xff]
        %v4155 = vld [vmem:[%s4150 + $0x20] sm:$0xff]
        %v4156 = vld [vmem:[%s4150 + $0x28] sm:$0xff]
        %v4157 = vld [vmem:[%s4150 + $0x30] sm:$0xff]
        %v4158 = vld [vmem:[%s4150 + $0x38] sm:$0xff]
        %v4159 = vld [vmem:[%s4150 + $0x40] sm:$0xff]
        %v4160 = vld [vmem:[%s4150 + $0x48] sm:$0xff]
        %v4161 = vld [vmem:[%s4150 + $0x50] sm:$0xff]
        %v4162 = vld [vmem:[%s4150 + $0x58] sm:$0xff]
        %v4163 = vld [vmem:[%s4150 + $0x60] sm:$0xff]
        %v4164 = vld [vmem:[%s4150 + $0x68] sm:$0xff]
        %v4165 = vld [vmem:[%s4150 + $0x70] sm:$0xff]
        %v4166 = vld [vmem:[%s4150 + $0x78] sm:$0xff]
        %4167 = vmatprep.subr.mxu0 0.0
        %4168 = vmatpush1.msra.mxu0 %v4151
        %4169 = vmatprep.subr.mxu0 0.0
        %4170 = vmatpush1.msra.mxu0 %v4152
        %4171 = vmatprep.subr.mxu0 0.0
        %4172 = vmatpush1.msra.mxu0 %v4153
        %4173 = vmatprep.subr.mxu0 0.0
        %4174 = vmatpush1.msra.mxu0 %v4154
        %4175 = vmatprep.subr.mxu0 0.0
        %4176 = vmatpush1.msra.mxu0 %v4155
        %4177 = vmatprep.subr.mxu0 0.0
        %4178 = vmatpush1.msra.mxu0 %v4156
        %4179 = vmatprep.subr.mxu0 0.0
        %4180 = vmatpush1.msra.mxu0 %v4157
        %4181 = vmatprep.subr.mxu0 0.0
        %4182 = vmatpush1.msra.mxu0 %v4158
        %4183 = vmatprep.subr.mxu0 0.0
        %4184 = vmatpush1.msra.mxu0 %v4159
        %4185 = vmatprep.subr.mxu0 0.0
        %4186 = vmatpush1.msra.mxu0 %v4160
        %4187 = vmatprep.subr.mxu0 0.0
        %4188 = vmatpush1.msra.mxu0 %v4161
        %4189 = vmatprep.subr.mxu0 0.0
        %4190 = vmatpush1.msra.mxu0 %v4162
        %4191 = vmatprep.subr.mxu0 0.0
        %4192 = vmatpush1.msra.mxu0 %v4163
        %4193 = vmatprep.subr.mxu0 0.0
        %4194 = vmatpush1.msra.mxu0 %v4164
        %4195 = vmatprep.subr.mxu0 0.0
        %4196 = vmatpush1.msra.mxu0 %v4165
        %4197 = vmatprep.subr.mxu0 0.0
        %4198 = vmatpush1.msra.mxu0 %v4166
        %4199 = vmatprep.subr.mxu0 0.0
        %4200 = vmatpush1.msra.mxu0 0.0
        %4201 = vmatprep.subr.mxu0 0.0
        %4202 = vmatpush1.msra.mxu0 0.0
        %4203 = vmatprep.subr.mxu0 0.0
        %4204 = vmatpush1.msra.mxu0 0.0
        %4205 = vmatprep.subr.mxu0 0.0
        %4206 = vmatpush1.msra.mxu0 0.0
        %4207 = vmatprep.subr.mxu0 0.0
        %4208 = vmatpush1.msra.mxu0 0.0
        %4209 = vmatprep.subr.mxu0 0.0
        %4210 = vmatpush1.msra.mxu0 0.0
        %4211 = vmatprep.subr.mxu0 0.0
        %4212 = vmatpush1.msra.mxu0 0.0
        %4213 = vmatprep.subr.mxu0 0.0
        %4214 = vmatpush1.msra.mxu0 0.0
        %4215 = vmatprep.subr.mxu0 0.0
        %4216 = vmatpush1.msra.mxu0 0.0
        %4217 = vmatprep.subr.mxu0 0.0
        %4218 = vmatpush1.msra.mxu0 0.0
        %4219 = vmatprep.subr.mxu0 0.0
        %4220 = vmatpush1.msra.mxu0 0.0
        %4221 = vmatprep.subr.mxu0 0.0
        %4222 = vmatpush1.msra.mxu0 0.0
        %4223 = vmatprep.subr.mxu0 0.0
        %4224 = vmatpush1.msra.mxu0 0.0
        %4225 = vmatprep.subr.mxu0 0.0
        %4226 = vmatpush1.msra.mxu0 0.0
        %4227 = vmatprep.subr.mxu0 0.0
        %4228 = vmatpush1.msra.mxu0 0.0
        %4229 = vmatprep.subr.mxu0 0.0
        %4230 = vmatpush1.msra.mxu0 0.0
        %4231 = vmatprep.mubr.f32.mxu0 0.0
        %4232 = vmatmul.mubr.f32.gmra.mrb[0].mxu0 %v4082
        %v4233 = vpop.f32.mrb[0].mxu0
        %v4234 = vadd.f32 0.0, %v4233
        %v4235 = vpop.f32.mrb[0].mxu0
        %4236 = vmatprep.mubr.f32.mxu0 0.0
        %4237 = vmatmul.mubr.f32.gmra.mrb[0].mxu0 %v4084
        %v4238 = vpop.f32.mrb[0].mxu0
        %v4239 = vadd.f32 0.0, %v4238
        %v4240 = vpop.f32.mrb[0].mxu0
        %4241 = vmatprep.mubr.f32.mxu0 0.0
        %4242 = vmatmul.mubr.f32.gmra.mrb[0].mxu0 %v4087
        %v4243 = vpop.f32.mrb[0].mxu0
        %v4244 = vadd.f32 0.0, %v4243
        %v4245 = vpop.f32.mrb[0].mxu0
        %4246 = vmatprep.mubr.f32.mxu0 0.0
        %4247 = vmatmul.mubr.f32.gmra.mrb[0].mxu0 %v4089
        %v4248 = vpop.f32.mrb[0].mxu0
        %v4249 = vadd.f32 0.0, %v4248
        %v4250 = vpop.f32.mrb[0].mxu0
        %4251 = vmatprep.mubr.f32.mxu0 0.0
        %4252 = vmatmul.mubr.f32.gmra.mrb[0].mxu0 %v4092
        %v4253 = vpop.f32.mrb[0].mxu0
        %v4254 = vadd.f32 0.0, %v4253
        %v4255 = vpop.f32.mrb[0].mxu0
        %4256 = vmatprep.mubr.f32.mxu0 0.0
        %4257 = vmatmul.mubr.f32.gmra.mrb[0].mxu0 %v4094
        %v4258 = vpop.f32.mrb[0].mxu0
        %v4259 = vadd.f32 0.0, %v4258
        %v4260 = vpop.f32.mrb[0].mxu0
        %4261 = vmatprep.mubr.f32.mxu0 0.0
        %4262 = vmatmul.mubr.f32.gmra.mrb[0].mxu0 %v4097
        %v4263 = vpop.f32.mrb[0].mxu0
        %v4264 = vadd.f32 0.0, %v4263
        %v4265 = vpop.f32.mrb[0].mxu0
        %4266 = vmatprep.mubr.f32.mxu0 0.0
        %4267 = vmatmul.mubr.f32.gmra.mrb[0].mxu0 %v4099
        %v4268 = vpop.f32.mrb[0].mxu0
        %v4269 = vadd.f32 0.0, %v4268
        %v4270 = vpop.f32.mrb[0].mxu0
        %4271 = vmatprep.mubr.f32.mxu0 0.0
        %4272 = vmatmul.mubr.f32.gmra.mrb[0].mxu0 %v4102
        %v4273 = vpop.f32.mrb[0].mxu0
        %v4274 = vadd.f32 0.0, %v4273
        %v4275 = vpop.f32.mrb[0].mxu0
        %4276 = vmatprep.mubr.f32.mxu0 0.0
        %4277 = vmatmul.mubr.f32.gmra.mrb[0].mxu0 %v4104
        %v4278 = vpop.f32.mrb[0].mxu0
        %v4279 = vadd.f32 0.0, %v4278
        %v4280 = vpop.f32.mrb[0].mxu0
        %4281 = vmatprep.mubr.f32.mxu0 0.0
        %4282 = vmatmul.mubr.f32.gmra.mrb[0].mxu0 %v4107
        %v4283 = vpop.f32.mrb[0].mxu0
        %v4284 = vadd.f32 0.0, %v4283
        %v4285 = vpop.f32.mrb[0].mxu0
        %4286 = vmatprep.mubr.f32.mxu0 0.0
        %4287 = vmatmul.mubr.f32.gmra.mrb[0].mxu0 %v4109
        %v4288 = vpop.f32.mrb[0].mxu0
        %v4289 = vadd.f32 0.0, %v4288
        %v4290 = vpop.f32.mrb[0].mxu0
        %4291 = vmatprep.mubr.f32.mxu0 0.0
        %4292 = vmatmul.mubr.f32.gmra.mrb[0].mxu0 %v4112
        %v4293 = vpop.f32.mrb[0].mxu0
        %v4294 = vadd.f32 0.0, %v4293
        %v4295 = vpop.f32.mrb[0].mxu0
        %4296 = vmatprep.mubr.f32.mxu0 0.0
        %4297 = vmatmul.mubr.f32.gmra.mrb[0].mxu0 %v4114
        %v4298 = vpop.f32.mrb[0].mxu0
        %v4299 = vadd.f32 0.0, %v4298
        %v4300 = vpop.f32.mrb[0].mxu0
        %4301 = vmatprep.mubr.f32.mxu0 0.0
        %4302 = vmatmul.mubr.f32.gmra.mrb[0].mxu0 %v4117
        %v4303 = vpop.f32.mrb[0].mxu0
        %v4304 = vadd.f32 0.0, %v4303
        %v4305 = vpop.f32.mrb[0].mxu0
        %4306 = vmatprep.mubr.f32.mxu0 0.0
        %4307 = vmatmul.mubr.f32.gmra.mrb[0].mxu0 %v4119
        %v4308 = vpop.f32.mrb[0].mxu0
        %v4309 = vadd.f32 0.0, %v4308
        %v4310 = vpop.f32.mrb[0].mxu0
        %4311 = vdwg.mxu0
        %v4312 = vadd.f32 %v4064, %v4234
        %v4313 = vadd.f32 %v4065, %v4239
        %v4314 = vadd.f32 %v4066, %v4244
        %v4315 = vadd.f32 %v4067, %v4249
        %v4316 = vadd.f32 %v4068, %v4254
        %v4317 = vadd.f32 %v4069, %v4259
        %v4318 = vadd.f32 %v4070, %v4264
        %v4319 = vadd.f32 %v4071, %v4269
        %v4320 = vadd.f32 %v4072, %v4274
        %v4321 = vadd.f32 %v4073, %v4279
        %v4322 = vadd.f32 %v4074, %v4284
        %v4323 = vadd.f32 %v4075, %v4289
        %v4324 = vadd.f32 %v4076, %v4294
        %v4325 = vadd.f32 %v4077, %v4299
        %v4326 = vadd.f32 %v4078, %v4304
        %v4327 = vadd.f32 %v4079, %v4309
        %s4328 = scalar_lea.vmem [#allocation10], 640
        %v4329 = vld [vmem:[%s4328] sm:$0xff]
        %v4330 = vld [vmem:[%s4328 + $0x8] sm:$0xff]
        %v4331 = vld [vmem:[%s4328 + $0x10] sm:$0xff]
        %v4332 = vld [vmem:[%s4328 + $0x18] sm:$0xff]
        %v4333 = vld [vmem:[%s4328 + $0x20] sm:$0xff]
        %v4334 = vld [vmem:[%s4328 + $0x28] sm:$0xff]
        %v4335 = vld [vmem:[%s4328 + $0x30] sm:$0xff]
        %v4336 = vld [vmem:[%s4328 + $0x38] sm:$0xff]
        %v4337 = vld [vmem:[%s4328 + $0x40] sm:$0xff]
        %v4338 = vld [vmem:[%s4328 + $0x48] sm:$0xff]
        %v4339 = vld [vmem:[%s4328 + $0x50] sm:$0xff]
        %v4340 = vld [vmem:[%s4328 + $0x58] sm:$0xff]
        %v4341 = vld [vmem:[%s4328 + $0x60] sm:$0xff]
        %v4342 = vld [vmem:[%s4328 + $0x68] sm:$0xff]
        %v4343 = vld [vmem:[%s4328 + $0x70] sm:$0xff]
        %v4344 = vld [vmem:[%s4328 + $0x78] sm:$0xff]
        %4345 = vmatprep.subr.mxu0 0.0
        %4346 = vmatpush1.msra.mxu0 %v4329
        %4347 = vmatprep.subr.mxu0 0.0
        %4348 = vmatpush1.msra.mxu0 %v4330
        %4349 = vmatprep.subr.mxu0 0.0
        %4350 = vmatpush1.msra.mxu0 %v4331
        %4351 = vmatprep.subr.mxu0 0.0
        %4352 = vmatpush1.msra.mxu0 %v4332
        %4353 = vmatprep.subr.mxu0 0.0
        %4354 = vmatpush1.msra.mxu0 %v4333
        %4355 = vmatprep.subr.mxu0 0.0
        %4356 = vmatpush1.msra.mxu0 %v4334
        %4357 = vmatprep.subr.mxu0 0.0
        %4358 = vmatpush1.msra.mxu0 %v4335
        %4359 = vmatprep.subr.mxu0 0.0
        %4360 = vmatpush1.msra.mxu0 %v4336
        %4361 = vmatprep.subr.mxu0 0.0
        %4362 = vmatpush1.msra.mxu0 %v4337
        %4363 = vmatprep.subr.mxu0 0.0
        %4364 = vmatpush1.msra.mxu0 %v4338
        %4365 = vmatprep.subr.mxu0 0.0
        %4366 = vmatpush1.msra.mxu0 %v4339
        %4367 = vmatprep.subr.mxu0 0.0
        %4368 = vmatpush1.msra.mxu0 %v4340
        %4369 = vmatprep.subr.mxu0 0.0
        %4370 = vmatpush1.msra.mxu0 %v4341
        %4371 = vmatprep.subr.mxu0 0.0
        %4372 = vmatpush1.msra.mxu0 %v4342
        %4373 = vmatprep.subr.mxu0 0.0
        %4374 = vmatpush1.msra.mxu0 %v4343
        %4375 = vmatprep.subr.mxu0 0.0
        %4376 = vmatpush1.msra.mxu0 %v4344
        %4377 = vmatprep.subr.mxu0 0.0
        %4378 = vmatpush1.msra.mxu0 0.0
        %4379 = vmatprep.subr.mxu0 0.0
        %4380 = vmatpush1.msra.mxu0 0.0
        %4381 = vmatprep.subr.mxu0 0.0
        %4382 = vmatpush1.msra.mxu0 0.0
        %4383 = vmatprep.subr.mxu0 0.0
        %4384 = vmatpush1.msra.mxu0 0.0
        %4385 = vmatprep.subr.mxu0 0.0
        %4386 = vmatpush1.msra.mxu0 0.0
        %4387 = vmatprep.subr.mxu0 0.0
        %4388 = vmatpush1.msra.mxu0 0.0
        %4389 = vmatprep.subr.mxu0 0.0
        %4390 = vmatpush1.msra.mxu0 0.0
        %4391 = vmatprep.subr.mxu0 0.0
        %4392 = vmatpush1.msra.mxu0 0.0
        %4393 = vmatprep.subr.mxu0 0.0
        %4394 = vmatpush1.msra.mxu0 0.0
        %4395 = vmatprep.subr.mxu0 0.0
        %4396 = vmatpush1.msra.mxu0 0.0
        %4397 = vmatprep.subr.mxu0 0.0
        %4398 = vmatpush1.msra.mxu0 0.0
        %4399 = vmatprep.subr.mxu0 0.0
        %4400 = vmatpush1.msra.mxu0 0.0
        %4401 = vmatprep.subr.mxu0 0.0
        %4402 = vmatpush1.msra.mxu0 0.0
        %4403 = vmatprep.subr.mxu0 0.0
        %4404 = vmatpush1.msra.mxu0 0.0
        %4405 = vmatprep.subr.mxu0 0.0
        %4406 = vmatpush1.msra.mxu0 0.0
        %4407 = vmatprep.subr.mxu0 0.0
        %4408 = vmatpush1.msra.mxu0 0.0
        %4409 = vmatprep.mubr.f32.mxu0 0.0
        %4410 = vmatmul.mubr.f32.gmra.mrb[0].mxu0 %v4087
        %v4411 = vpop.f32.mrb[0].mxu0
        %v4412 = vadd.f32 0.0, %v4411
        %v4413 = vpop.f32.mrb[0].mxu0
        %4414 = vmatprep.mubr.f32.mxu0 0.0
        %4415 = vmatmul.mubr.f32.gmra.mrb[0].mxu0 %v4089
        %v4416 = vpop.f32.mrb[0].mxu0
        %v4417 = vadd.f32 0.0, %v4416
        %v4418 = vpop.f32.mrb[0].mxu0
        %4419 = vmatprep.mubr.f32.mxu0 0.0
        %4420 = vmatmul.mubr.f32.gmra.mrb[0].mxu0 %v4092
        %v4421 = vpop.f32.mrb[0].mxu0
        %v4422 = vadd.f32 0.0, %v4421
        %v4423 = vpop.f32.mrb[0].mxu0
        %4424 = vmatprep.mubr.f32.mxu0 0.0
        %4425 = vmatmul.mubr.f32.gmra.mrb[0].mxu0 %v4094
        %v4426 = vpop.f32.mrb[0].mxu0
        %v4427 = vadd.f32 0.0, %v4426
        %v4428 = vpop.f32.mrb[0].mxu0
        %4429 = vmatprep.mubr.f32.mxu0 0.0
        %4430 = vmatmul.mubr.f32.gmra.mrb[0].mxu0 %v4097
        %v4431 = vpop.f32.mrb[0].mxu0
        %v4432 = vadd.f32 0.0, %v4431
        %v4433 = vpop.f32.mrb[0].mxu0
        %4434 = vmatprep.mubr.f32.mxu0 0.0
        %4435 = vmatmul.mubr.f32.gmra.mrb[0].mxu0 %v4099
        %v4436 = vpop.f32.mrb[0].mxu0
        %v4437 = vadd.f32 0.0, %v4436
        %v4438 = vpop.f32.mrb[0].mxu0
        %4439 = vmatprep.mubr.f32.mxu0 0.0
        %4440 = vmatmul.mubr.f32.gmra.mrb[0].mxu0 %v4102
        %v4441 = vpop.f32.mrb[0].mxu0
        %v4442 = vadd.f32 0.0, %v4441
        %v4443 = vpop.f32.mrb[0].mxu0
        %4444 = vmatprep.mubr.f32.mxu0 0.0
        %4445 = vmatmul.mubr.f32.gmra.mrb[0].mxu0 %v4104
        %v4446 = vpop.f32.mrb[0].mxu0
        %v4447 = vadd.f32 0.0, %v4446
        %v4448 = vpop.f32.mrb[0].mxu0
        %4449 = vmatprep.mubr.f32.mxu0 0.0
        %4450 = vmatmul.mubr.f32.gmra.mrb[0].mxu0 %v4107
        %v4451 = vpop.f32.mrb[0].mxu0
        %v4452 = vadd.f32 0.0, %v4451
        %v4453 = vpop.f32.mrb[0].mxu0
        %4454 = vmatprep.mubr.f32.mxu0 0.0
        %4455 = vmatmul.mubr.f32.gmra.mrb[0].mxu0 %v4109
        %v4456 = vpop.f32.mrb[0].mxu0
        %v4457 = vadd.f32 0.0, %v4456
        %v4458 = vpop.f32.mrb[0].mxu0
        %4459 = vmatprep.mubr.f32.mxu0 0.0
        %4460 = vmatmul.mubr.f32.gmra.mrb[0].mxu0 %v4112
        %v4461 = vpop.f32.mrb[0].mxu0
        %v4462 = vadd.f32 0.0, %v4461
        %v4463 = vpop.f32.mrb[0].mxu0
        %4464 = vmatprep.mubr.f32.mxu0 0.0
        %4465 = vmatmul.mubr.f32.gmra.mrb[0].mxu0 %v4114
        %v4466 = vpop.f32.mrb[0].mxu0
        %v4467 = vadd.f32 0.0, %v4466
        %v4468 = vpop.f32.mrb[0].mxu0
        %4469 = vmatprep.mubr.f32.mxu0 0.0
        %4470 = vmatmul.mubr.f32.gmra.mrb[0].mxu0 %v4117
        %v4471 = vpop.f32.mrb[0].mxu0
        %v4472 = vadd.f32 0.0, %v4471
        %v4473 = vpop.f32.mrb[0].mxu0
        %4474 = vmatprep.mubr.f32.mxu0 0.0
        %4475 = vmatmul.mubr.f32.gmra.mrb[0].mxu0 %v4119
        %v4476 = vpop.f32.mrb[0].mxu0
        %v4477 = vadd.f32 0.0, %v4476
        %v4478 = vpop.f32.mrb[0].mxu0
        %4479 = vmatprep.mubr.f32.mxu0 0.0
        %4480 = vmatmul.mubr.f32.gmra.mrb[0].mxu0 %v4122
        %v4481 = vpop.f32.mrb[0].mxu0
        %v4482 = vadd.f32 0.0, %v4481
        %v4483 = vpop.f32.mrb[0].mxu0
        %4484 = vmatprep.mubr.f32.mxu0 0.0
        %4485 = vmatmul.mubr.f32.gmra.mrb[0].mxu0 %v4124
        %v4486 = vpop.f32.mrb[0].mxu0
        %v4487 = vadd.f32 0.0, %v4486
        %v4488 = vpop.f32.mrb[0].mxu0
        %4489 = vdwg.mxu0
        %v4490 = vadd.f32 %v4312, %v4412
        %v4491 = vadd.f32 %v4313, %v4417
        %v4492 = vadd.f32 %v4314, %v4422
        %v4493 = vadd.f32 %v4315, %v4427
        %v4494 = vadd.f32 %v4316, %v4432
        %v4495 = vadd.f32 %v4317, %v4437
        %v4496 = vadd.f32 %v4318, %v4442
        %v4497 = vadd.f32 %v4319, %v4447
        %v4498 = vadd.f32 %v4320, %v4452
        %v4499 = vadd.f32 %v4321, %v4457
        %v4500 = vadd.f32 %v4322, %v4462
        %v4501 = vadd.f32 %v4323, %v4467
        %v4502 = vadd.f32 %v4324, %v4472
        %v4503 = vadd.f32 %v4325, %v4477
        %v4504 = vadd.f32 %v4326, %v4482
        %v4505 = vadd.f32 %v4327, %v4487
        %s4506 = scalar_lea.vmem [#allocation10], 1024
        %v4507 = vld [vmem:[%s4506] sm:$0xff]
        %v4508 = vld [vmem:[%s4506 + $0x8] sm:$0xff]
        %v4509 = vld [vmem:[%s4506 + $0x10] sm:$0xff]
        %v4510 = vld [vmem:[%s4506 + $0x18] sm:$0xff]
        %v4511 = vld [vmem:[%s4506 + $0x20] sm:$0xff]
        %v4512 = vld [vmem:[%s4506 + $0x28] sm:$0xff]
        %v4513 = vld [vmem:[%s4506 + $0x30] sm:$0xff]
        %v4514 = vld [vmem:[%s4506 + $0x38] sm:$0xff]
        %v4515 = vld [vmem:[%s4506 + $0x40] sm:$0xff]
        %v4516 = vld [vmem:[%s4506 + $0x48] sm:$0xff]
        %v4517 = vld [vmem:[%s4506 + $0x50] sm:$0xff]
        %v4518 = vld [vmem:[%s4506 + $0x58] sm:$0xff]
        %v4519 = vld [vmem:[%s4506 + $0x60] sm:$0xff]
        %v4520 = vld [vmem:[%s4506 + $0x68] sm:$0xff]
        %v4521 = vld [vmem:[%s4506 + $0x70] sm:$0xff]
        %v4522 = vld [vmem:[%s4506 + $0x78] sm:$0xff]
        %4523 = vmatprep.subr.mxu0 0.0
        %4524 = vmatpush1.msra.mxu0 %v4507
        %4525 = vmatprep.subr.mxu0 0.0
        %4526 = vmatpush1.msra.mxu0 %v4508
        %4527 = vmatprep.subr.mxu0 0.0
        %4528 = vmatpush1.msra.mxu0 %v4509
        %4529 = vmatprep.subr.mxu0 0.0
        %4530 = vmatpush1.msra.mxu0 %v4510
        %4531 = vmatprep.subr.mxu0 0.0
        %4532 = vmatpush1.msra.mxu0 %v4511
        %4533 = vmatprep.subr.mxu0 0.0
        %4534 = vmatpush1.msra.mxu0 %v4512
        %4535 = vmatprep.subr.mxu0 0.0
        %4536 = vmatpush1.msra.mxu0 %v4513
        %4537 = vmatprep.subr.mxu0 0.0
        %4538 = vmatpush1.msra.mxu0 %v4514
        %4539 = vmatprep.subr.mxu0 0.0
        %4540 = vmatpush1.msra.mxu0 %v4515
        %4541 = vmatprep.subr.mxu0 0.0
        %4542 = vmatpush1.msra.mxu0 %v4516
        %4543 = vmatprep.subr.mxu0 0.0
        %4544 = vmatpush1.msra.mxu0 %v4517
        %4545 = vmatprep.subr.mxu0 0.0
        %4546 = vmatpush1.msra.mxu0 %v4518
        %4547 = vmatprep.subr.mxu0 0.0
        %4548 = vmatpush1.msra.mxu0 %v4519
        %4549 = vmatprep.subr.mxu0 0.0
        %4550 = vmatpush1.msra.mxu0 %v4520
        %4551 = vmatprep.subr.mxu0 0.0
        %4552 = vmatpush1.msra.mxu0 %v4521
        %4553 = vmatprep.subr.mxu0 0.0
        %4554 = vmatpush1.msra.mxu0 %v4522
        %4555 = vmatprep.subr.mxu0 0.0
        %4556 = vmatpush1.msra.mxu0 0.0
        %4557 = vmatprep.subr.mxu0 0.0
        %4558 = vmatpush1.msra.mxu0 0.0
        %4559 = vmatprep.subr.mxu0 0.0
        %4560 = vmatpush1.msra.mxu0 0.0
        %4561 = vmatprep.subr.mxu0 0.0
        %4562 = vmatpush1.msra.mxu0 0.0
        %4563 = vmatprep.subr.mxu0 0.0
        %4564 = vmatpush1.msra.mxu0 0.0
        %4565 = vmatprep.subr.mxu0 0.0
        %4566 = vmatpush1.msra.mxu0 0.0
        %4567 = vmatprep.subr.mxu0 0.0
        %4568 = vmatpush1.msra.mxu0 0.0
        %4569 = vmatprep.subr.mxu0 0.0
        %4570 = vmatpush1.msra.mxu0 0.0
        %4571 = vmatprep.subr.mxu0 0.0
        %4572 = vmatpush1.msra.mxu0 0.0
        %4573 = vmatprep.subr.mxu0 0.0
        %4574 = vmatpush1.msra.mxu0 0.0
        %4575 = vmatprep.subr.mxu0 0.0
        %4576 = vmatpush1.msra.mxu0 0.0
        %4577 = vmatprep.subr.mxu0 0.0
        %4578 = vmatpush1.msra.mxu0 0.0
        %4579 = vmatprep.subr.mxu0 0.0
        %4580 = vmatpush1.msra.mxu0 0.0
        %4581 = vmatprep.subr.mxu0 0.0
        %4582 = vmatpush1.msra.mxu0 0.0
        %4583 = vmatprep.subr.mxu0 0.0
        %4584 = vmatpush1.msra.mxu0 0.0
        %4585 = vmatprep.subr.mxu0 0.0
        %4586 = vmatpush1.msra.mxu0 0.0
        %4587 = vmatprep.mubr.f32.mxu0 0.0
        %4588 = vmatmul.mubr.f32.gmra.mrb[0].mxu0 %v4092
        %v4589 = vpop.f32.mrb[0].mxu0
        %v4590 = vadd.f32 0.0, %v4589
        %v4591 = vpop.f32.mrb[0].mxu0
        %4592 = vmatprep.mubr.f32.mxu0 0.0
        %4593 = vmatmul.mubr.f32.gmra.mrb[0].mxu0 %v4094
        %v4594 = vpop.f32.mrb[0].mxu0
        %v4595 = vadd.f32 0.0, %v4594
        %v4596 = vpop.f32.mrb[0].mxu0
        %4597 = vmatprep.mubr.f32.mxu0 0.0
        %4598 = vmatmul.mubr.f32.gmra.mrb[0].mxu0 %v4097
        %v4599 = vpop.f32.mrb[0].mxu0
        %v4600 = vadd.f32 0.0, %v4599
        %v4601 = vpop.f32.mrb[0].mxu0
        %4602 = vmatprep.mubr.f32.mxu0 0.0
        %4603 = vmatmul.mubr.f32.gmra.mrb[0].mxu0 %v4099
        %v4604 = vpop.f32.mrb[0].mxu0
        %v4605 = vadd.f32 0.0, %v4604
        %v4606 = vpop.f32.mrb[0].mxu0
        %4607 = vmatprep.mubr.f32.mxu0 0.0
        %4608 = vmatmul.mubr.f32.gmra.mrb[0].mxu0 %v4102
        %v4609 = vpop.f32.mrb[0].mxu0
        %v4610 = vadd.f32 0.0, %v4609
        %v4611 = vpop.f32.mrb[0].mxu0
        %4612 = vmatprep.mubr.f32.mxu0 0.0
        %4613 = vmatmul.mubr.f32.gmra.mrb[0].mxu0 %v4104
        %v4614 = vpop.f32.mrb[0].mxu0
        %v4615 = vadd.f32 0.0, %v4614
        %v4616 = vpop.f32.mrb[0].mxu0
        %4617 = vmatprep.mubr.f32.mxu0 0.0
        %4618 = vmatmul.mubr.f32.gmra.mrb[0].mxu0 %v4107
        %v4619 = vpop.f32.mrb[0].mxu0
        %v4620 = vadd.f32 0.0, %v4619
        %v4621 = vpop.f32.mrb[0].mxu0
        %4622 = vmatprep.mubr.f32.mxu0 0.0
        %4623 = vmatmul.mubr.f32.gmra.mrb[0].mxu0 %v4109
        %v4624 = vpop.f32.mrb[0].mxu0
        %v4625 = vadd.f32 0.0, %v4624
        %v4626 = vpop.f32.mrb[0].mxu0
        %4627 = vmatprep.mubr.f32.mxu0 0.0
        %4628 = vmatmul.mubr.f32.gmra.mrb[0].mxu0 %v4112
        %v4629 = vpop.f32.mrb[0].mxu0
        %v4630 = vadd.f32 0.0, %v4629
        %v4631 = vpop.f32.mrb[0].mxu0
        %4632 = vmatprep.mubr.f32.mxu0 0.0
        %4633 = vmatmul.mubr.f32.gmra.mrb[0].mxu0 %v4114
        %v4634 = vpop.f32.mrb[0].mxu0
        %v4635 = vadd.f32 0.0, %v4634
        %v4636 = vpop.f32.mrb[0].mxu0
        %4637 = vmatprep.mubr.f32.mxu0 0.0
        %4638 = vmatmul.mubr.f32.gmra.mrb[0].mxu0 %v4117
        %v4639 = vpop.f32.mrb[0].mxu0
        %v4640 = vadd.f32 0.0, %v4639
        %v4641 = vpop.f32.mrb[0].mxu0
        %4642 = vmatprep.mubr.f32.mxu0 0.0
        %4643 = vmatmul.mubr.f32.gmra.mrb[0].mxu0 %v4119
        %v4644 = vpop.f32.mrb[0].mxu0
        %v4645 = vadd.f32 0.0, %v4644
        %v4646 = vpop.f32.mrb[0].mxu0
        %4647 = vmatprep.mubr.f32.mxu0 0.0
        %4648 = vmatmul.mubr.f32.gmra.mrb[0].mxu0 %v4122
        %v4649 = vpop.f32.mrb[0].mxu0
        %v4650 = vadd.f32 0.0, %v4649
        %v4651 = vpop.f32.mrb[0].mxu0
        %4652 = vmatprep.mubr.f32.mxu0 0.0
        %4653 = vmatmul.mubr.f32.gmra.mrb[0].mxu0 %v4124
        %v4654 = vpop.f32.mrb[0].mxu0
        %v4655 = vadd.f32 0.0, %v4654
        %v4656 = vpop.f32.mrb[0].mxu0
        %4657 = vmatprep.mubr.f32.mxu0 0.0
        %4658 = vmatmul.mubr.f32.gmra.mrb[0].mxu0 %v4127
        %v4659 = vpop.f32.mrb[0].mxu0
        %v4660 = vadd.f32 0.0, %v4659
        %v4661 = vpop.f32.mrb[0].mxu0
        %4662 = vmatprep.mubr.f32.mxu0 0.0
        %4663 = vmatmul.mubr.f32.gmra.mrb[0].mxu0 %v4129
        %v4664 = vpop.f32.mrb[0].mxu0
        %v4665 = vadd.f32 0.0, %v4664
        %v4666 = vpop.f32.mrb[0].mxu0
        %4667 = vdwg.mxu0
        %v4668 = vadd.f32 %v4490, %v4590
        %v4669 = vadd.f32 %v4491, %v4595
        %v4670 = vadd.f32 %v4492, %v4600
        %v4671 = vadd.f32 %v4493, %v4605
        %v4672 = vadd.f32 %v4494, %v4610
        %v4673 = vadd.f32 %v4495, %v4615
        %v4674 = vadd.f32 %v4496, %v4620
        %v4675 = vadd.f32 %v4497, %v4625
        %v4676 = vadd.f32 %v4498, %v4630
        %v4677 = vadd.f32 %v4499, %v4635
        %v4678 = vadd.f32 %v4500, %v4640
        %v4679 = vadd.f32 %v4501, %v4645
        %v4680 = vadd.f32 %v4502, %v4650
        %v4681 = vadd.f32 %v4503, %v4655
        %v4682 = vadd.f32 %v4504, %v4660
        %v4683 = vadd.f32 %v4505, %v4665
        %v4684 = vld [vmem:[#allocation11] sm:$0x1]
        %v4686 = vlaneseq
        %v4687 = vshrl.u32 %v4686, 7
        %v4688 = vsub.s32 0, %v4687
        %v4689 = vrot.slane %v4684, %v4688
        %v4691 = vadd.f32 %v4668, %v4689
        %v4692 = vadd.f32 %v4669, %v4689
        %v4693 = vadd.f32 %v4670, %v4689
        %v4694 = vadd.f32 %v4671, %v4689
        %v4695 = vadd.f32 %v4672, %v4689
        %v4696 = vadd.f32 %v4673, %v4689
        %v4697 = vadd.f32 %v4674, %v4689
        %v4698 = vadd.f32 %v4675, %v4689
        %v4699 = vadd.f32 %v4676, %v4689
        %v4700 = vadd.f32 %v4677, %v4689
        %v4701 = vadd.f32 %v4678, %v4689
        %v4702 = vadd.f32 %v4679, %v4689
        %v4703 = vadd.f32 %v4680, %v4689
        %v4704 = vadd.f32 %v4681, %v4689
        %v4705 = vadd.f32 %v4682, %v4689
        %v4706 = vadd.f32 %v4683, %v4689
        %v4731 = vrot.slane %v381, 1
        %v4732 = vrot.slane %v382, 1
        %v4733 = vsel %vm1264, %v4731, %v4732
        %v4734 = vrot.slane %v383, 1
        %v4735 = vsel %vm1264, %v4732, %v4734
        %v4736 = vrot.slane %v384, 1
        %v4737 = vrot.slane %v385, 1
        %v4738 = vsel %vm1264, %v4736, %v4737
        %v4739 = vrot.slane %v386, 1
        %v4740 = vsel %vm1264, %v4737, %v4739
        %v4741 = vrot.slane %v387, 1
        %v4742 = vrot.slane %v388, 1
        %v4743 = vsel %vm1264, %v4741, %v4742
        %v4744 = vrot.slane %v389, 1
        %v4745 = vsel %vm1264, %v4742, %v4744
        %v4746 = vrot.slane %v390, 1
        %v4747 = vrot.slane %v391, 1
        %v4748 = vsel %vm1264, %v4746, %v4747
        %v4749 = vrot.slane %v392, 1
        %v4750 = vsel %vm1264, %v4747, %v4749
        %v4751 = vrot.slane %v393, 1
        %v4752 = vrot.slane %v394, 1
        %v4753 = vsel %vm1264, %v4751, %v4752
        %v4754 = vrot.slane %v395, 1
        %v4755 = vsel %vm1264, %v4752, %v4754
        %v4756 = vrot.slane %v396, 1
        %v4757 = vrot.slane %v397, 1
        %v4758 = vsel %vm1264, %v4756, %v4757
        %v4759 = vrot.slane %v398, 1
        %v4760 = vsel %vm1264, %v4757, %v4759
        %v4761 = vrot.slane %v399, 1
        %v4762 = vrot.slane %v400, 1
        %v4763 = vsel %vm1264, %v4761, %v4762
        %v4764 = vrot.slane %v401, 1
        %v4765 = vsel %vm1264, %v4762, %v4764
        %v4766 = vrot.slane %v402, 1
        %v4767 = vrot.slane %v403, 1
        %v4768 = vsel %vm1264, %v4766, %v4767
        %v4769 = vrot.slane %v404, 1
        %v4770 = vsel %vm1264, %v4767, %v4769
        %v4787 = vld [vmem:[#allocation13] sm:$0xff]
        %v4788 = vld [vmem:[#allocation13 + $0x8] sm:$0xff]
        %v4789 = vld [vmem:[#allocation13 + $0x10] sm:$0xff]
        %v4790 = vld [vmem:[#allocation13 + $0x18] sm:$0xff]
        %v4791 = vld [vmem:[#allocation13 + $0x20] sm:$0xff]
        %v4792 = vld [vmem:[#allocation13 + $0x28] sm:$0xff]
        %v4793 = vld [vmem:[#allocation13 + $0x30] sm:$0xff]
        %v4794 = vld [vmem:[#allocation13 + $0x38] sm:$0xff]
        %v4795 = vld [vmem:[#allocation13 + $0x40] sm:$0xff]
        %v4796 = vld [vmem:[#allocation13 + $0x48] sm:$0xff]
        %v4797 = vld [vmem:[#allocation13 + $0x50] sm:$0xff]
        %v4798 = vld [vmem:[#allocation13 + $0x58] sm:$0xff]
        %v4799 = vld [vmem:[#allocation13 + $0x60] sm:$0xff]
        %v4800 = vld [vmem:[#allocation13 + $0x68] sm:$0xff]
        %v4801 = vld [vmem:[#allocation13 + $0x70] sm:$0xff]
        %v4802 = vld [vmem:[#allocation13 + $0x78] sm:$0xff]
        %4803 = vmatprep.subr.mxu0 0.0
        %4804 = vmatpush1.msra.mxu0 %v4787
        %4805 = vmatprep.subr.mxu0 0.0
        %4806 = vmatpush1.msra.mxu0 %v4788
        %4807 = vmatprep.subr.mxu0 0.0
        %4808 = vmatpush1.msra.mxu0 %v4789
        %4809 = vmatprep.subr.mxu0 0.0
        %4810 = vmatpush1.msra.mxu0 %v4790
        %4811 = vmatprep.subr.mxu0 0.0
        %4812 = vmatpush1.msra.mxu0 %v4791
        %4813 = vmatprep.subr.mxu0 0.0
        %4814 = vmatpush1.msra.mxu0 %v4792
        %4815 = vmatprep.subr.mxu0 0.0
        %4816 = vmatpush1.msra.mxu0 %v4793
        %4817 = vmatprep.subr.mxu0 0.0
        %4818 = vmatpush1.msra.mxu0 %v4794
        %4819 = vmatprep.subr.mxu0 0.0
        %4820 = vmatpush1.msra.mxu0 %v4795
        %4821 = vmatprep.subr.mxu0 0.0
        %4822 = vmatpush1.msra.mxu0 %v4796
        %4823 = vmatprep.subr.mxu0 0.0
        %4824 = vmatpush1.msra.mxu0 %v4797
        %4825 = vmatprep.subr.mxu0 0.0
        %4826 = vmatpush1.msra.mxu0 %v4798
        %4827 = vmatprep.subr.mxu0 0.0
        %4828 = vmatpush1.msra.mxu0 %v4799
        %4829 = vmatprep.subr.mxu0 0.0
        %4830 = vmatpush1.msra.mxu0 %v4800
        %4831 = vmatprep.subr.mxu0 0.0
        %4832 = vmatpush1.msra.mxu0 %v4801
        %4833 = vmatprep.subr.mxu0 0.0
        %4834 = vmatpush1.msra.mxu0 %v4802
        %4835 = vmatprep.subr.mxu0 0.0
        %4836 = vmatpush1.msra.mxu0 0.0
        %4837 = vmatprep.subr.mxu0 0.0
        %4838 = vmatpush1.msra.mxu0 0.0
        %4839 = vmatprep.subr.mxu0 0.0
        %4840 = vmatpush1.msra.mxu0 0.0
        %4841 = vmatprep.subr.mxu0 0.0
        %4842 = vmatpush1.msra.mxu0 0.0
        %4843 = vmatprep.subr.mxu0 0.0
        %4844 = vmatpush1.msra.mxu0 0.0
        %4845 = vmatprep.subr.mxu0 0.0
        %4846 = vmatpush1.msra.mxu0 0.0
        %4847 = vmatprep.subr.mxu0 0.0
        %4848 = vmatpush1.msra.mxu0 0.0
        %4849 = vmatprep.subr.mxu0 0.0
        %4850 = vmatpush1.msra.mxu0 0.0
        %4851 = vmatprep.subr.mxu0 0.0
        %4852 = vmatpush1.msra.mxu0 0.0
        %4853 = vmatprep.subr.mxu0 0.0
        %4854 = vmatpush1.msra.mxu0 0.0
        %4855 = vmatprep.subr.mxu0 0.0
        %4856 = vmatpush1.msra.mxu0 0.0
        %4857 = vmatprep.subr.mxu0 0.0
        %4858 = vmatpush1.msra.mxu0 0.0
        %4859 = vmatprep.subr.mxu0 0.0
        %4860 = vmatpush1.msra.mxu0 0.0
        %4861 = vmatprep.subr.mxu0 0.0
        %4862 = vmatpush1.msra.mxu0 0.0
        %4863 = vmatprep.subr.mxu0 0.0
        %4864 = vmatpush1.msra.mxu0 0.0
        %4865 = vmatprep.subr.mxu0 0.0
        %4866 = vmatpush1.msra.mxu0 0.0
        %4867 = vmatprep.mubr.f32.mxu0 0.0
        %4868 = vmatmul.mubr.f32.gmra.mrb[0].mxu0 %v4733
        %v4869 = vpop.f32.mrb[0].mxu0
        %v4870 = vadd.f32 0.0, %v4869
        %v4871 = vpop.f32.mrb[0].mxu0
        %4872 = vmatprep.mubr.f32.mxu0 0.0
        %4873 = vmatmul.mubr.f32.gmra.mrb[0].mxu0 %v4735
        %v4874 = vpop.f32.mrb[0].mxu0
        %v4875 = vadd.f32 0.0, %v4874
        %v4876 = vpop.f32.mrb[0].mxu0
        %4877 = vmatprep.mubr.f32.mxu0 0.0
        %4878 = vmatmul.mubr.f32.gmra.mrb[0].mxu0 %v4738
        %v4879 = vpop.f32.mrb[0].mxu0
        %v4880 = vadd.f32 0.0, %v4879
        %v4881 = vpop.f32.mrb[0].mxu0
        %4882 = vmatprep.mubr.f32.mxu0 0.0
        %4883 = vmatmul.mubr.f32.gmra.mrb[0].mxu0 %v4740
        %v4884 = vpop.f32.mrb[0].mxu0
        %v4885 = vadd.f32 0.0, %v4884
        %v4886 = vpop.f32.mrb[0].mxu0
        %4887 = vmatprep.mubr.f32.mxu0 0.0
        %4888 = vmatmul.mubr.f32.gmra.mrb[0].mxu0 %v4743
        %v4889 = vpop.f32.mrb[0].mxu0
        %v4890 = vadd.f32 0.0, %v4889
        %v4891 = vpop.f32.mrb[0].mxu0
        %4892 = vmatprep.mubr.f32.mxu0 0.0
        %4893 = vmatmul.mubr.f32.gmra.mrb[0].mxu0 %v4745
        %v4894 = vpop.f32.mrb[0].mxu0
        %v4895 = vadd.f32 0.0, %v4894
        %v4896 = vpop.f32.mrb[0].mxu0
        %4897 = vmatprep.mubr.f32.mxu0 0.0
        %4898 = vmatmul.mubr.f32.gmra.mrb[0].mxu0 %v4748
        %v4899 = vpop.f32.mrb[0].mxu0
        %v4900 = vadd.f32 0.0, %v4899
        %v4901 = vpop.f32.mrb[0].mxu0
        %4902 = vmatprep.mubr.f32.mxu0 0.0
        %4903 = vmatmul.mubr.f32.gmra.mrb[0].mxu0 %v4750
        %v4904 = vpop.f32.mrb[0].mxu0
        %v4905 = vadd.f32 0.0, %v4904
        %v4906 = vpop.f32.mrb[0].mxu0
        %4907 = vmatprep.mubr.f32.mxu0 0.0
        %4908 = vmatmul.mubr.f32.gmra.mrb[0].mxu0 %v4753
        %v4909 = vpop.f32.mrb[0].mxu0
        %v4910 = vadd.f32 0.0, %v4909
        %v4911 = vpop.f32.mrb[0].mxu0
        %4912 = vmatprep.mubr.f32.mxu0 0.0
        %4913 = vmatmul.mubr.f32.gmra.mrb[0].mxu0 %v4755
        %v4914 = vpop.f32.mrb[0].mxu0
        %v4915 = vadd.f32 0.0, %v4914
        %v4916 = vpop.f32.mrb[0].mxu0
        %4917 = vmatprep.mubr.f32.mxu0 0.0
        %4918 = vmatmul.mubr.f32.gmra.mrb[0].mxu0 %v4758
        %v4919 = vpop.f32.mrb[0].mxu0
        %v4920 = vadd.f32 0.0, %v4919
        %v4921 = vpop.f32.mrb[0].mxu0
        %4922 = vmatprep.mubr.f32.mxu0 0.0
        %4923 = vmatmul.mubr.f32.gmra.mrb[0].mxu0 %v4760
        %v4924 = vpop.f32.mrb[0].mxu0
        %v4925 = vadd.f32 0.0, %v4924
        %v4926 = vpop.f32.mrb[0].mxu0
        %4927 = vmatprep.mubr.f32.mxu0 0.0
        %4928 = vmatmul.mubr.f32.gmra.mrb[0].mxu0 %v4763
        %v4929 = vpop.f32.mrb[0].mxu0
        %v4930 = vadd.f32 0.0, %v4929
        %v4931 = vpop.f32.mrb[0].mxu0
        %4932 = vmatprep.mubr.f32.mxu0 0.0
        %4933 = vmatmul.mubr.f32.gmra.mrb[0].mxu0 %v4765
        %v4934 = vpop.f32.mrb[0].mxu0
        %v4935 = vadd.f32 0.0, %v4934
        %v4936 = vpop.f32.mrb[0].mxu0
        %4937 = vmatprep.mubr.f32.mxu0 0.0
        %4938 = vmatmul.mubr.f32.gmra.mrb[0].mxu0 %v4768
        %v4939 = vpop.f32.mrb[0].mxu0
        %v4940 = vadd.f32 0.0, %v4939
        %v4941 = vpop.f32.mrb[0].mxu0
        %4942 = vmatprep.mubr.f32.mxu0 0.0
        %4943 = vmatmul.mubr.f32.gmra.mrb[0].mxu0 %v4770
        %v4944 = vpop.f32.mrb[0].mxu0
        %v4945 = vadd.f32 0.0, %v4944
        %v4946 = vpop.f32.mrb[0].mxu0
        %4947 = vdwg.mxu0
        %v4948 = vld [vmem:[#allocation14] sm:$0x1]
        %v4950 = vlaneseq
        %v4951 = vshrl.u32 %v4950, 7
        %v4952 = vsub.s32 0, %v4951
        %v4953 = vrot.slane %v4948, %v4952
        %v4955 = vadd.f32 %v4870, %v4953
        %v4956 = vadd.f32 %v4875, %v4953
        %v4957 = vadd.f32 %v4880, %v4953
        %v4958 = vadd.f32 %v4885, %v4953
        %v4959 = vadd.f32 %v4890, %v4953
        %v4960 = vadd.f32 %v4895, %v4953
        %v4961 = vadd.f32 %v4900, %v4953
        %v4962 = vadd.f32 %v4905, %v4953
        %v4963 = vadd.f32 %v4910, %v4953
        %v4964 = vadd.f32 %v4915, %v4953
        %v4965 = vadd.f32 %v4920, %v4953
        %v4966 = vadd.f32 %v4925, %v4953
        %v4967 = vadd.f32 %v4930, %v4953
        %v4968 = vadd.f32 %v4935, %v4953
        %v4969 = vadd.f32 %v4940, %v4953
        %v4970 = vadd.f32 %v4945, %v4953
        %v4971 = vadd.f32 %v4691, %v4955
        %v4972 = vadd.f32 %v4692, %v4956
        %v4973 = vadd.f32 %v4693, %v4957
        %v4974 = vadd.f32 %v4694, %v4958
        %v4975 = vadd.f32 %v4695, %v4959
        %v4976 = vadd.f32 %v4696, %v4960
        %v4977 = vadd.f32 %v4697, %v4961
        %v4978 = vadd.f32 %v4698, %v4962
        %v4979 = vadd.f32 %v4699, %v4963
        %v4980 = vadd.f32 %v4700, %v4964
        %v4981 = vadd.f32 %v4701, %v4965
        %v4982 = vadd.f32 %v4702, %v4966
        %v4983 = vadd.f32 %v4703, %v4967
        %v4984 = vadd.f32 %v4704, %v4968
        %v4985 = vadd.f32 %v4705, %v4969
        %v4986 = vadd.f32 %v4706, %v4970
        %4987 = vst [vmem:[%s326] sm:$0xff] %v4971
        %4988 = vst [vmem:[%s326 + $0x8] sm:$0xff] %v4972
        %4989 = vst [vmem:[%s326 + $0x10] sm:$0xff] %v4973
        %4990 = vst [vmem:[%s326 + $0x18] sm:$0xff] %v4974
        %4991 = vst [vmem:[%s326 + $0x20] sm:$0xff] %v4975
        %4992 = vst [vmem:[%s326 + $0x28] sm:$0xff] %v4976
        %4993 = vst [vmem:[%s326 + $0x30] sm:$0xff] %v4977
        %4994 = vst [vmem:[%s326 + $0x38] sm:$0xff] %v4978
        %4995 = vst [vmem:[%s326 + $0x40] sm:$0xff] %v4979
        %4996 = vst [vmem:[%s326 + $0x48] sm:$0xff] %v4980
        %4997 = vst [vmem:[%s326 + $0x50] sm:$0xff] %v4981
        %4998 = vst [vmem:[%s326 + $0x58] sm:$0xff] %v4982
        %4999 = vst [vmem:[%s326 + $0x60] sm:$0xff] %v4983
        %5000 = vst [vmem:[%s326 + $0x68] sm:$0xff] %v4984
        %5001 = vst [vmem:[%s326 + $0x70] sm:$0xff] %v4985
        %5002 = vst [vmem:[%s326 + $0x78] sm:$0xff] %v4986
        %s5003 = sand.u32 %s173, 1
        %s5004 = scalar_lea.sflag [#allocation7], %s5003
        %s5005 = sand.u32 %s173, 1
        %s5006 = smul.addr %s5005, 128
        %s5007 = scalar_lea.vmem [#allocation16], %s5006
        // Predicated region
        $region77: #{tpu_custom_call.1} parent=43 // pred_check
          %p5008 = pneg %p183
        $region78: #{tpu_custom_call.1} parent=43 // pred_check_branch
          %5010 = sbr.rel (%p5008) target = $region80
        $region79: #{tpu_custom_call.1} parent=43 // pred_region
          %s5011 = smul.u32 8, %s30
          %s5013 = ssub.s32 2048, 2048
          %5014 = vsyncadd %s5004, %s5013
          %s5015 = smul.addr %s5011, 2
          %s5016 = smul.addr %s29, 32
          %s5017 = sadd.s32 %s5015, %s5016
          %s5018 = smul.addr %s5017, 128
          %s5019 = scalar_lea.hbm %s7, %s5018
          %s5020 = sshll.u32 %s5007, 4
          %s5021 = int_to_ptr.vmem [resolvable:$true] %s5020
          %5026 = dma.vmem_to_hbm [thread:$0]  %s5021, 2048, %s5019, %s5004, 128, 128, 8
        $region80: #{tpu_custom_call.1} parent=43 // pred_fallthru
          _
      $region44: #{tpu_custom_call.1} parent=5 // pred_fallthru
        _
      %p5027 = scmp.le.s32.totalorder 2, %s20
      // Predicated region
      $region81: #{tpu_custom_call.1} parent=5 // pred_check
        %p5028 = pneg %p5027
      $region82: #{tpu_custom_call.1} parent=5 // pred_check_branch
        %5030 = sbr.rel (%p5028) target = $region84
      $region83: #{tpu_custom_call.1} parent=5 // pred_region
        %s5031 = ssub.s32 %s20, 2
        // Predicated region
        $region85: #{tpu_custom_call.1} parent=83 // pred_check
          %p5032 = pneg %p189
        $region86: #{tpu_custom_call.1} parent=83 // pred_check_branch
          %5034 = sbr.rel (%p5032) target = $region88
        $region87: #{tpu_custom_call.1} parent=83 // pred_region
          %s5035 = sand.u32 %s174, 1
          %s5036 = scalar_lea.sflag [#allocation7], %s5035
          %s5037 = sand.u32 %s174, 1
          %s5038 = smul.addr %s5037, 128
          %s5039 = scalar_lea.vmem [#allocation16], %s5038
          %5040 = dma.done %s5036, 2048
        $region88: #{tpu_custom_call.1} parent=83 // pred_fallthru
          _
      $region84: #{tpu_custom_call.1} parent=5 // pred_fallthru
        _
    $region6: #{tpu_custom_call.1} parent=1 // loop_footer
      %s24 = sadd.s32 1, %s20
    $region7: #{tpu_custom_call.1} parent=1 // loop_footer_branch
      %19 = sbr.rel target = $region3
    $region8: #{tpu_custom_call.1} parent=1 // loop_exit
      _
    %5041 = vsyncpa [#allocation6], 1
    %s5042 = scalar_lea.sflag [#allocation6], 1
    %5043 = vsyncpa %s5042, 1
    %5044 = vsyncpa [#allocation9], 1
    %5045 = vsyncpa [#allocation12], 1
    %5046 = vsyncpa [#allocation15], 1
    %5047 = vsyncpa [#allocation7], 1
    %s5048 = scalar_lea.sflag [#allocation7], 1
    %5049 = vsyncpa %s5048, 1
  %5050 = vsyncmov [#allocation3]
  %s5051 = vpop.sfrf %5050
  %p5052 = scmp.eq.s32.totalorder %s5051, 0
  %p5053 = pneg %p5052
  %5055 = shalt.err (%p5053)
  %s5056 = scalar_lea.sflag [#allocation3], 1
  %5057 = vsyncmov %s5056
  %s5058 = vpop.sfrf %5057
  %p5059 = scmp.eq.s32.totalorder %s5058, 0
  %p5060 = pneg %p5059
  %5062 = shalt.err (%p5060)

</llo_original>
